<compile_context>
chip_gen: v6e
topology: v6e:2x2x1
jax: 0.10.0
libtpu: 0.0.40
codegen_flags: <defaults>
</compile_context>

<pallas_src>
import jax
import jax.numpy as jnp
from jax.experimental import pallas as pl
from jax.experimental.pallas import tpu as pltpu

HIGHEST = jax.lax.Precision.HIGHEST


# ----------------------------- Pallas kernel ------------------------------- #

def _conv3x3_1ch(a, k_ref, bias):
    """3x3 'SAME' (pad=1) conv on a 1-channel map a: (NB, Hh, W2, 1).

    k_ref: SMEM ref (9,) with taps row-major; bias: f32 scalar (from SMEM).
    Pads once with explicit zero borders (2 concats) and accumulates 9 static
    shifted slices, each scaled by a scalar tap.
    """
    NB, Hh, W2, _ = a.shape
    zrow = jnp.zeros((NB, 1, W2, 1), a.dtype)
    ap = jnp.concatenate([zrow, a, zrow], axis=1)            # (NB, Hh+2, W2, 1)
    zcol = jnp.zeros((NB, Hh + 2, 1, 1), a.dtype)
    ap = jnp.concatenate([zcol, ap, zcol], axis=2)           # (NB, Hh+2, W2+2, 1)
    acc = None
    for ih in range(3):
        for iw in range(3):
            t = ap[:, ih:ih + Hh, iw:iw + W2, :] * k_ref[ih * 3 + iw]
            acc = t if acc is None else acc + t
    return acc + bias


def lmsa_kernel(x_ref, wf0_ref, wf1_ref, bf_ref, k1_ref, b1_ref, k2_ref, b2_ref,
                w12_ref, b12_ref, o_ref):
    NB, H, W2, C2 = x_ref.shape
    C = C2 // 2
    Hh = H // 2

    x = x_ref[...].astype(jnp.float32)                       # (NB, H, W2, 2C), lane-dense

    # conv1_1 (1x1) folded into stride_con (2x2 / stride 2): two K=128 MXU matmuls.
    xr = x.reshape(NB, Hh, 2, W2, C2)                        # split input row parity (free)
    x_er = xr[:, :, 0].reshape(NB * Hh * W2, C2)             # input rows 2k
    x_or = xr[:, :, 1].reshape(NB * Hh * W2, C2)             # input rows 2k+1
    stride = (jnp.dot(x_er, wf0_ref[...], precision=HIGHEST,
                      preferred_element_type=jnp.float32)
              + jnp.dot(x_or, wf1_ref[...], precision=HIGHEST,
                        preferred_element_type=jnp.float32)
              + bf_ref[...])                                  # (NB*Hh*W2, C)
    stride = stride.reshape(NB, Hh, W2, C)

    # channel max -> single-channel attention map.
    m = jnp.max(stride, axis=-1, keepdims=True)              # (NB, Hh, W2, 1)

    # three 1-channel 3x3 convs (conv3_2 applied twice, matching the PyTorch forward).
    c1 = _conv3x3_1ch(m, k1_ref, b1_ref[0])
    c2 = _conv3x3_1ch(c1, k2_ref, b2_ref[0])
    c3 = _conv3x3_1ch(c2, k2_ref, b2_ref[0])

    # conv1_2 (1x1, 3 -> C): per-channel outer product -> low-res gate logits.
    w12 = w12_ref[...]                                       # (3, C)
    low = (c1 * w12[0] + c2 * w12[1] + c3 * w12[2]
           + b12_ref[...])                                    # (NB, Hh, W2, C)

    # bilinear x2 upsample (align_corners=False) as parity planes with clamp-edge shifts.
    low_ph = jnp.concatenate([low[:, :1], low[:, :-1]], axis=1)   # row k-1 (clamped)
    low_nh = jnp.concatenate([low[:, 1:], low[:, -1:]], axis=1)   # row k+1 (clamped)
    y_e = 0.25 * low_ph + 0.75 * low                         # even output rows
    y_o = 0.75 * low + 0.25 * low_nh                         # odd output rows

    def wprev(z):
        return jnp.concatenate([z[:, :, :1], z[:, :, :-1]], axis=2)

    def wnext(z):
        return jnp.concatenate([z[:, :, 1:], z[:, :, -1:]], axis=2)

    # pack [even col | odd col] onto the lane axis (same packing as the input).
    g_e = jnp.concatenate([0.25 * wprev(y_e) + 0.75 * y_e,
                           0.75 * y_e + 0.25 * wnext(y_e)], axis=-1)   # (NB,Hh,W2,2C)
    g_o = jnp.concatenate([0.25 * wprev(y_o) + 0.75 * y_o,
                           0.75 * y_o + 0.25 * wnext(y_o)], axis=-1)
    g = jnp.stack([g_e, g_o], axis=2).reshape(NB, H, W2, C2)  # row interleave (free reshape)

    o_ref[...] = (x * jax.nn.sigmoid(g)).astype(o_ref.dtype)


# ------------------------------- wrapper ------------------------------------ #

def lmsa_forward(x_nchw, params):
    (w11, b11, ws, bs, k31, b31, k32, b32, k33, b33, w12, b12) = params
    B, C, H, W = x_nchw.shape
    assert C == 64 and H % 2 == 0 and W % 2 == 0
    Hh, W2 = H // 2, W // 2
    C2 = 2 * C

    # NHWC with width pairs packed onto the channel/lane axis (row-major contiguous -> free).
    x = jnp.transpose(x_nchw, (0, 2, 3, 1)).reshape(B, H, W2, C2)

    # Fold conv1_1 (1x1) into stride_con (2x2 / stride 2): exact linear composition.
    wfold = jnp.einsum('io,hwom->hwim', w11, ws, precision=HIGHEST)    # (2, 2, C, C)
    wf0 = jnp.concatenate([wfold[0, 0], wfold[0, 1]], axis=0)          # (2C, C): input rows 2k
    wf1 = jnp.concatenate([wfold[1, 0], wfold[1, 1]], axis=0)          # (2C, C): input rows 2k+1
    bf = (jnp.einsum('i,io->o', b11, ws.sum(axis=(0, 1)), precision=HIGHEST)
          + bs).reshape(1, C)

    k1 = k31.reshape(9)
    b1 = b31.reshape(1)
    k2 = k32.reshape(9)
    b2 = b32.reshape(1)
    b12v = b12.reshape(1, C)
    # NOTE: conv3_3 (k33, b33) exists in the module but is never used by its forward.

    # Batch blocking: several images per grid step, batch axis parallel (megacore).
    if B <= 8:
        NB = B
    else:
        NB = next(c for c in (8, 4, 2, 1) if B % c == 0)
    grid = (B // NB,)

    batch_map = lambda b: (b, 0, 0, 0)
    fixed2 = lambda b: (0, 0)
    smem_spec = pl.BlockSpec(memory_space=pltpu.MemorySpace.SMEM)

    out_packed = pl.pallas_call(
        lmsa_kernel,
        out_shape=jax.ShapeDtypeStruct((B, H, W2, C2), x.dtype),
        grid=grid,
        in_specs=[
            pl.BlockSpec((NB, H, W2, C2), batch_map),   # packed input block
            pl.BlockSpec((C2, C), fixed2),              # folded stride weights (even input rows)
            pl.BlockSpec((C2, C), fixed2),              # folded stride weights (odd input rows)
            pl.BlockSpec((1, C), fixed2),               # folded stride bias
            smem_spec,                                  # conv3_1 taps   (9,)  SMEM
            smem_spec,                                  # conv3_1 bias   (1,)  SMEM
            smem_spec,                                  # conv3_2 taps   (9,)  SMEM
            smem_spec,                                  # conv3_2 bias   (1,)  SMEM
            pl.BlockSpec((3, C), fixed2),               # conv1_2 weight (in, out)
            pl.BlockSpec((1, C), fixed2),               # conv1_2 bias
        ],
        out_specs=pl.BlockSpec((NB, H, W2, C2), batch_map),
        compiler_params=pltpu.CompilerParams(
            dimension_semantics=("parallel",)),
    )(x, wf0, wf1, bf, k1, b1, k2, b2, w12, b12v)

    out = out_packed.reshape(B, H, W, C)                # unpack width pairs (free reshape)
    return jnp.transpose(out, (0, 3, 1, 2))             # -> NCHW


# --------------------------- params & reference ----------------------------- #

def init_params(key, C=64):
    ks = jax.random.split(key, 12)
    s = 0.1
    w11 = s * jax.random.normal(ks[0], (C, 64), jnp.float32)         # conv1_1 (in, out)
    b11 = s * jax.random.normal(ks[1], (64,), jnp.float32)
    ws = s * jax.random.normal(ks[2], (2, 2, 64, 64), jnp.float32)   # stride_con HWIO
    bs = s * jax.random.normal(ks[3], (64,), jnp.float32)
    k31 = s * jax.random.normal(ks[4], (3, 3), jnp.float32)
    b31 = s * jax.random.normal(ks[5], (), jnp.float32)
    k32 = s * jax.random.normal(ks[6], (3, 3), jnp.float32)
    b32 = s * jax.random.normal(ks[7], (), jnp.float32)
    k33 = s * jax.random.normal(ks[8], (3, 3), jnp.float32)          # defined but unused in forward
    b33 = s * jax.random.normal(ks[9], (), jnp.float32)
    w12 = s * jax.random.normal(ks[10], (3, 64), jnp.float32)        # conv1_2 (in, out)
    b12 = s * jax.random.normal(ks[11], (64,), jnp.float32)
    return (w11, b11, ws, bs, k31, b31, k32, b32, k33, b33, w12, b12)


def _upsample_bilinear_x2(x):
    """(B,h,w,c) -> (B,2h,2w,c); torch Upsample(scale_factor=2, bilinear, align_corners=False)."""
    B, h, w, c = x.shape

    def idx(n_out, n_in):
        s = (jnp.arange(n_out, dtype=jnp.float32) + 0.5) * 0.5 - 0.5
        s = jnp.maximum(s, 0.0)
        i0 = jnp.minimum(jnp.floor(s).astype(jnp.int32), n_in - 1)
        i1 = jnp.minimum(i0 + 1, n_in - 1)
        lam = s - i0.astype(jnp.float32)
        return i0, i1, lam

    h0, h1, lh = idx(2 * h, h)
    w0, w1, lw = idx(2 * w, w)
    rows = (x[:, h0] * (1.0 - lh)[None, :, None, None]
            + x[:, h1] * lh[None, :, None, None])
    out = (rows[:, :, w0] * (1.0 - lw)[None, None, :, None]
           + rows[:, :, w1] * lw[None, None, :, None])
    return out


def lmsa_reference(x_nchw, params):
    """Pure-JAX reference mirroring the PyTorch forward op by op (NHWC internally)."""
    (w11, b11, ws, bs, k31, b31, k32, b32, k33, b33, w12, b12) = params
    x = jnp.transpose(x_nchw, (0, 2, 3, 1))
    residual = x
    x1 = jnp.einsum('bhwi,io->bhwo', x, w11, precision=HIGHEST) + b11
    stride = jax.lax.conv_general_dilated(
        x1, ws, window_strides=(2, 2), padding='VALID',
        dimension_numbers=('NHWC', 'HWIO', 'NHWC'), precision=HIGHEST) + bs
    maxout = jnp.max(stride, axis=-1, keepdims=True)

    def conv3(a, k, b):
        y = jax.lax.conv_general_dilated(
            a, k.reshape(3, 3, 1, 1), (1, 1), 'SAME',
            dimension_numbers=('NHWC', 'HWIO', 'NHWC'), precision=HIGHEST)
        return y + b

    c1 = conv3(maxout, k31, b31)
    c2 = conv3(c1, k32, b32)
    c3 = conv3(c2, k32, b32)                                  # conv3_2 applied twice
    cat = jnp.concatenate([c1, c2, c3], axis=-1)
    y = jnp.einsum('bhwi,io->bhwo', cat, w12, precision=HIGHEST) + b12
    up = _upsample_bilinear_x2(y)
    out = residual * jax.nn.sigmoid(up)
    return jnp.transpose(out, (0, 3, 1, 2))


# --------------------------------- main -------------------------------------- #

if __name__ == "__main__":
    key = jax.random.PRNGKey(0)
    kx, kp = jax.random.split(key)
    B, C, H, W = 2, 64, 16, 16   # module hard-wires 64 channels (conv1_1 -> stride_con)
    x = jax.random.normal(kx, (B, C, H, W), jnp.float32)
    params = init_params(kp, C)

    fwd = jax.jit(lmsa_forward)
    out = jax.block_until_ready(fwd(x, params))
    ref = jax.block_until_ready(lmsa_reference(x, params))

    assert out.shape == (B, C, H, W)
    max_err = float(jnp.max(jnp.abs(out - ref)))
    assert max_err < 2e-3, f"mismatch vs reference, max_err={max_err}"
    print("KERNEL_OK")
</pallas_src>

<mosaic_0001>
module attributes {stable_mosaic.version = 11 : i64} {
  func.func @lmsa_kernel(%arg0: i32, %arg1: memref<2x16x8x128xf32, #tpu.memory_space<vmem>>, %arg2: memref<128x64xf32, #tpu.memory_space<vmem>>, %arg3: memref<128x64xf32, #tpu.memory_space<vmem>>, %arg4: memref<1x64xf32, #tpu.memory_space<vmem>>, %arg5: memref<9xf32, #tpu.memory_space<smem>>, %arg6: memref<1xf32, #tpu.memory_space<smem>>, %arg7: memref<9xf32, #tpu.memory_space<smem>>, %arg8: memref<1xf32, #tpu.memory_space<smem>>, %arg9: memref<3x64xf32, #tpu.memory_space<vmem>>, %arg10: memref<1x64xf32, #tpu.memory_space<vmem>>, %arg11: memref<2x16x8x128xf32, #tpu.memory_space<vmem>>) attributes {dimension_semantics = [#tpu.dimension_semantics<parallel>], iteration_bounds = array<i64: 1>, scalar_prefetch = 0 : i64, scratch_operands = 0 : i64, tpu.core_type = #tpu.core_type<tc>, window_params = [{transform_indices = @transform_0, window_bounds = array<i64: 2, 16, 8, 128>}, {pipeline_mode = #tpu.pipeline_mode<synchronous>, transform_indices = @transform_1, window_bounds = array<i64: 128, 64>}, {pipeline_mode = #tpu.pipeline_mode<synchronous>, transform_indices = @transform_2, window_bounds = array<i64: 128, 64>}, {pipeline_mode = #tpu.pipeline_mode<synchronous>, transform_indices = @transform_3, window_bounds = array<i64: 1, 64>}, {transform_indices = @transform_4, window_bounds = array<i64: 9>}, {transform_indices = @transform_5, window_bounds = array<i64: 1>}, {transform_indices = @transform_6, window_bounds = array<i64: 9>}, {transform_indices = @transform_7, window_bounds = array<i64: 1>}, {pipeline_mode = #tpu.pipeline_mode<synchronous>, transform_indices = @transform_8, window_bounds = array<i64: 3, 64>}, {pipeline_mode = #tpu.pipeline_mode<synchronous>, transform_indices = @transform_9, window_bounds = array<i64: 1, 64>}, {transform_indices = @transform_10, window_bounds = array<i64: 2, 16, 8, 128>}]} {
    %c0 = arith.constant 0 : index
    %c0_0 = arith.constant 0 : index
    %c0_1 = arith.constant 0 : index
    %c0_2 = arith.constant 0 : index
    %0 = vector.load %arg1[%c0, %c0_0, %c0_1, %c0_2] : memref<2x16x8x128xf32, #tpu.memory_space<vmem>>, vector<2x16x8x128xf32>
    %1 = vector.shape_cast %0 : vector<2x16x8x128xf32> to vector<2x8x2x8x128xf32>
    %2 = vector.extract_strided_slice %1 {offsets = [0, 0, 0, 0, 0], sizes = [2, 8, 1, 8, 128], strides = [1, 1, 1, 1, 1]} : vector<2x8x2x8x128xf32> to vector<2x8x1x8x128xf32>
    %3 = vector.shape_cast %2 : vector<2x8x1x8x128xf32> to vector<2x8x8x128xf32>
    %4 = vector.shape_cast %3 : vector<2x8x8x128xf32> to vector<128x128xf32>
    %5 = vector.extract_strided_slice %1 {offsets = [0, 0, 1, 0, 0], sizes = [2, 8, 1, 8, 128], strides = [1, 1, 1, 1, 1]} : vector<2x8x2x8x128xf32> to vector<2x8x1x8x128xf32>
    %6 = vector.shape_cast %5 : vector<2x8x1x8x128xf32> to vector<2x8x8x128xf32>
    %7 = vector.shape_cast %6 : vector<2x8x8x128xf32> to vector<128x128xf32>
    %c0_3 = arith.constant 0 : index
    %c0_4 = arith.constant 0 : index
    %8 = vector.load %arg2[%c0_3, %c0_4] : memref<128x64xf32, #tpu.memory_space<vmem>>, vector<128x64xf32>
    %cst = arith.constant dense<0.000000e+00> : vector<128x64xf32>
    %9 = tpu.matmul %4, %8, %cst {dimension_numbers = #tpu.dot_dimension_numbers<[1], [0], [0], [1], [0, 0, 1, 1], [], []>, precision = #tpu.contract_precision<fp32>} : vector<128x128xf32>, vector<128x64xf32>, vector<128x64xf32> -> vector<128x64xf32>
    %c0_5 = arith.constant 0 : index
    %c0_6 = arith.constant 0 : index
    %10 = vector.load %arg3[%c0_5, %c0_6] : memref<128x64xf32, #tpu.memory_space<vmem>>, vector<128x64xf32>
    %cst_7 = arith.constant dense<0.000000e+00> : vector<128x64xf32>
    %11 = tpu.matmul %7, %10, %cst_7 {dimension_numbers = #tpu.dot_dimension_numbers<[1], [0], [0], [1], [0, 0, 1, 1], [], []>, precision = #tpu.contract_precision<fp32>} : vector<128x128xf32>, vector<128x64xf32>, vector<128x64xf32> -> vector<128x64xf32>
    %12 = arith.addf %9, %11 : vector<128x64xf32>
    %c0_8 = arith.constant 0 : index
    %c0_9 = arith.constant 0 : index
    %13 = vector.load %arg4[%c0_8, %c0_9] : memref<1x64xf32, #tpu.memory_space<vmem>>, vector<1x64xf32>
    %14 = vector.broadcast %13 : vector<1x64xf32> to vector<128x64xf32>
    %15 = arith.addf %12, %14 : vector<128x64xf32>
    %16 = vector.shape_cast %15 : vector<128x64xf32> to vector<2x8x8x64xf32>
    %cst_10 = arith.constant dense<0xFF800000> : vector<2x8x8xf32>
    %17 = vector.multi_reduction <maximumf>, %16, %cst_10 [3] : vector<2x8x8x64xf32> to vector<2x8x8xf32>
    %18 = vector.shape_cast %17 : vector<2x8x8xf32> to vector<2x8x8x1xf32>
    %c0_11 = arith.constant 0 : index
    %19 = memref.load %arg6[%c0_11] : memref<1xf32, #tpu.memory_space<smem>>
    %cst_12 = arith.constant 0.000000e+00 : f32
    %20 = vector.broadcast %cst_12 : f32 to vector<2x1x8x1xf32>
    %21 = tpu.concatenate %20, %18, %20 in 1 : vector<2x1x8x1xf32>, vector<2x8x8x1xf32>, vector<2x1x8x1xf32> -> vector<2x10x8x1xf32>
    %cst_13 = arith.constant 0.000000e+00 : f32
    %22 = vector.broadcast %cst_13 : f32 to vector<2x10x1x1xf32>
    %23 = tpu.concatenate %22, %21, %22 in 2 : vector<2x10x1x1xf32>, vector<2x10x8x1xf32>, vector<2x10x1x1xf32> -> vector<2x10x10x1xf32>
    %24 = vector.extract_strided_slice %23 {offsets = [0, 0, 0, 0], sizes = [2, 8, 8, 1], strides = [1, 1, 1, 1]} : vector<2x10x10x1xf32> to vector<2x8x8x1xf32>
    %c0_14 = arith.constant 0 : index
    %25 = memref.load %arg5[%c0_14] : memref<9xf32, #tpu.memory_space<smem>>
    %26 = vector.broadcast %25 : f32 to vector<2x8x8x1xf32>
    %27 = arith.mulf %24, %26 : vector<2x8x8x1xf32>
    %28 = vector.extract_strided_slice %23 {offsets = [0, 0, 1, 0], sizes = [2, 8, 8, 1], strides = [1, 1, 1, 1]} : vector<2x10x10x1xf32> to vector<2x8x8x1xf32>
    %c1 = arith.constant 1 : index
    %29 = memref.load %arg5[%c1] : memref<9xf32, #tpu.memory_space<smem>>
    %30 = vector.broadcast %29 : f32 to vector<2x8x8x1xf32>
    %31 = arith.mulf %28, %30 : vector<2x8x8x1xf32>
    %32 = arith.addf %27, %31 : vector<2x8x8x1xf32>
    %33 = vector.extract_strided_slice %23 {offsets = [0, 0, 2, 0], sizes = [2, 8, 8, 1], strides = [1, 1, 1, 1]} : vector<2x10x10x1xf32> to vector<2x8x8x1xf32>
    %c2 = arith.constant 2 : index
    %34 = memref.load %arg5[%c2] : memref<9xf32, #tpu.memory_space<smem>>
    %35 = vector.broadcast %34 : f32 to vector<2x8x8x1xf32>
    %36 = arith.mulf %33, %35 : vector<2x8x8x1xf32>
    %37 = arith.addf %32, %36 : vector<2x8x8x1xf32>
    %38 = vector.extract_strided_slice %23 {offsets = [0, 1, 0, 0], sizes = [2, 8, 8, 1], strides = [1, 1, 1, 1]} : vector<2x10x10x1xf32> to vector<2x8x8x1xf32>
    %c3 = arith.constant 3 : index
    %39 = memref.load %arg5[%c3] : memref<9xf32, #tpu.memory_space<smem>>
    %40 = vector.broadcast %39 : f32 to vector<2x8x8x1xf32>
    %41 = arith.mulf %38, %40 : vector<2x8x8x1xf32>
    %42 = arith.addf %37, %41 : vector<2x8x8x1xf32>
    %43 = vector.extract_strided_slice %23 {offsets = [0, 1, 1, 0], sizes = [2, 8, 8, 1], strides = [1, 1, 1, 1]} : vector<2x10x10x1xf32> to vector<2x8x8x1xf32>
    %c4 = arith.constant 4 : index
    %44 = memref.load %arg5[%c4] : memref<9xf32, #tpu.memory_space<smem>>
    %45 = vector.broadcast %44 : f32 to vector<2x8x8x1xf32>
    %46 = arith.mulf %43, %45 : vector<2x8x8x1xf32>
    %47 = arith.addf %42, %46 : vector<2x8x8x1xf32>
    %48 = vector.extract_strided_slice %23 {offsets = [0, 1, 2, 0], sizes = [2, 8, 8, 1], strides = [1, 1, 1, 1]} : vector<2x10x10x1xf32> to vector<2x8x8x1xf32>
    %c5 = arith.constant 5 : index
    %49 = memref.load %arg5[%c5] : memref<9xf32, #tpu.memory_space<smem>>
    %50 = vector.broadcast %49 : f32 to vector<2x8x8x1xf32>
    %51 = arith.mulf %48, %50 : vector<2x8x8x1xf32>
    %52 = arith.addf %47, %51 : vector<2x8x8x1xf32>
    %53 = vector.extract_strided_slice %23 {offsets = [0, 2, 0, 0], sizes = [2, 8, 8, 1], strides = [1, 1, 1, 1]} : vector<2x10x10x1xf32> to vector<2x8x8x1xf32>
    %c6 = arith.constant 6 : index
    %54 = memref.load %arg5[%c6] : memref<9xf32, #tpu.memory_space<smem>>
    %55 = vector.broadcast %54 : f32 to vector<2x8x8x1xf32>
    %56 = arith.mulf %53, %55 : vector<2x8x8x1xf32>
    %57 = arith.addf %52, %56 : vector<2x8x8x1xf32>
    %58 = vector.extract_strided_slice %23 {offsets = [0, 2, 1, 0], sizes = [2, 8, 8, 1], strides = [1, 1, 1, 1]} : vector<2x10x10x1xf32> to vector<2x8x8x1xf32>
    %c7 = arith.constant 7 : index
    %59 = memref.load %arg5[%c7] : memref<9xf32, #tpu.memory_space<smem>>
    %60 = vector.broadcast %59 : f32 to vector<2x8x8x1xf32>
    %61 = arith.mulf %58, %60 : vector<2x8x8x1xf32>
    %62 = arith.addf %57, %61 : vector<2x8x8x1xf32>
    %63 = vector.extract_strided_slice %23 {offsets = [0, 2, 2, 0], sizes = [2, 8, 8, 1], strides = [1, 1, 1, 1]} : vector<2x10x10x1xf32> to vector<2x8x8x1xf32>
    %c8 = arith.constant 8 : index
    %64 = memref.load %arg5[%c8] : memref<9xf32, #tpu.memory_space<smem>>
    %65 = vector.broadcast %64 : f32 to vector<2x8x8x1xf32>
    %66 = arith.mulf %63, %65 : vector<2x8x8x1xf32>
    %67 = arith.addf %62, %66 : vector<2x8x8x1xf32>
    %68 = vector.broadcast %19 : f32 to vector<2x8x8x1xf32>
    %69 = arith.addf %67, %68 : vector<2x8x8x1xf32>
    %c0_15 = arith.constant 0 : index
    %70 = memref.load %arg8[%c0_15] : memref<1xf32, #tpu.memory_space<smem>>
    %cst_16 = arith.constant 0.000000e+00 : f32
    %71 = vector.broadcast %cst_16 : f32 to vector<2x1x8x1xf32>
    %72 = tpu.concatenate %71, %69, %71 in 1 : vector<2x1x8x1xf32>, vector<2x8x8x1xf32>, vector<2x1x8x1xf32> -> vector<2x10x8x1xf32>
    %cst_17 = arith.constant 0.000000e+00 : f32
    %73 = vector.broadcast %cst_17 : f32 to vector<2x10x1x1xf32>
    %74 = tpu.concatenate %73, %72, %73 in 2 : vector<2x10x1x1xf32>, vector<2x10x8x1xf32>, vector<2x10x1x1xf32> -> vector<2x10x10x1xf32>
    %75 = vector.extract_strided_slice %74 {offsets = [0, 0, 0, 0], sizes = [2, 8, 8, 1], strides = [1, 1, 1, 1]} : vector<2x10x10x1xf32> to vector<2x8x8x1xf32>
    %c0_18 = arith.constant 0 : index
    %76 = memref.load %arg7[%c0_18] : memref<9xf32, #tpu.memory_space<smem>>
    %77 = vector.broadcast %76 : f32 to vector<2x8x8x1xf32>
    %78 = arith.mulf %75, %77 : vector<2x8x8x1xf32>
    %79 = vector.extract_strided_slice %74 {offsets = [0, 0, 1, 0], sizes = [2, 8, 8, 1], strides = [1, 1, 1, 1]} : vector<2x10x10x1xf32> to vector<2x8x8x1xf32>
    %c1_19 = arith.constant 1 : index
    %80 = memref.load %arg7[%c1_19] : memref<9xf32, #tpu.memory_space<smem>>
    %81 = vector.broadcast %80 : f32 to vector<2x8x8x1xf32>
    %82 = arith.mulf %79, %81 : vector<2x8x8x1xf32>
    %83 = arith.addf %78, %82 : vector<2x8x8x1xf32>
    %84 = vector.extract_strided_slice %74 {offsets = [0, 0, 2, 0], sizes = [2, 8, 8, 1], strides = [1, 1, 1, 1]} : vector<2x10x10x1xf32> to vector<2x8x8x1xf32>
    %c2_20 = arith.constant 2 : index
    %85 = memref.load %arg7[%c2_20] : memref<9xf32, #tpu.memory_space<smem>>
    %86 = vector.broadcast %85 : f32 to vector<2x8x8x1xf32>
    %87 = arith.mulf %84, %86 : vector<2x8x8x1xf32>
    %88 = arith.addf %83, %87 : vector<2x8x8x1xf32>
    %89 = vector.extract_strided_slice %74 {offsets = [0, 1, 0, 0], sizes = [2, 8, 8, 1], strides = [1, 1, 1, 1]} : vector<2x10x10x1xf32> to vector<2x8x8x1xf32>
    %c3_21 = arith.constant 3 : index
    %90 = memref.load %arg7[%c3_21] : memref<9xf32, #tpu.memory_space<smem>>
    %91 = vector.broadcast %90 : f32 to vector<2x8x8x1xf32>
    %92 = arith.mulf %89, %91 : vector<2x8x8x1xf32>
    %93 = arith.addf %88, %92 : vector<2x8x8x1xf32>
    %94 = vector.extract_strided_slice %74 {offsets = [0, 1, 1, 0], sizes = [2, 8, 8, 1], strides = [1, 1, 1, 1]} : vector<2x10x10x1xf32> to vector<2x8x8x1xf32>
    %c4_22 = arith.constant 4 : index
    %95 = memref.load %arg7[%c4_22] : memref<9xf32, #tpu.memory_space<smem>>
    %96 = vector.broadcast %95 : f32 to vector<2x8x8x1xf32>
    %97 = arith.mulf %94, %96 : vector<2x8x8x1xf32>
    %98 = arith.addf %93, %97 : vector<2x8x8x1xf32>
    %99 = vector.extract_strided_slice %74 {offsets = [0, 1, 2, 0], sizes = [2, 8, 8, 1], strides = [1, 1, 1, 1]} : vector<2x10x10x1xf32> to vector<2x8x8x1xf32>
    %c5_23 = arith.constant 5 : index
    %100 = memref.load %arg7[%c5_23] : memref<9xf32, #tpu.memory_space<smem>>
    %101 = vector.broadcast %100 : f32 to vector<2x8x8x1xf32>
    %102 = arith.mulf %99, %101 : vector<2x8x8x1xf32>
    %103 = arith.addf %98, %102 : vector<2x8x8x1xf32>
    %104 = vector.extract_strided_slice %74 {offsets = [0, 2, 0, 0], sizes = [2, 8, 8, 1], strides = [1, 1, 1, 1]} : vector<2x10x10x1xf32> to vector<2x8x8x1xf32>
    %c6_24 = arith.constant 6 : index
    %105 = memref.load %arg7[%c6_24] : memref<9xf32, #tpu.memory_space<smem>>
    %106 = vector.broadcast %105 : f32 to vector<2x8x8x1xf32>
    %107 = arith.mulf %104, %106 : vector<2x8x8x1xf32>
    %108 = arith.addf %103, %107 : vector<2x8x8x1xf32>
    %109 = vector.extract_strided_slice %74 {offsets = [0, 2, 1, 0], sizes = [2, 8, 8, 1], strides = [1, 1, 1, 1]} : vector<2x10x10x1xf32> to vector<2x8x8x1xf32>
    %c7_25 = arith.constant 7 : index
    %110 = memref.load %arg7[%c7_25] : memref<9xf32, #tpu.memory_space<smem>>
    %111 = vector.broadcast %110 : f32 to vector<2x8x8x1xf32>
    %112 = arith.mulf %109, %111 : vector<2x8x8x1xf32>
    %113 = arith.addf %108, %112 : vector<2x8x8x1xf32>
    %114 = vector.extract_strided_slice %74 {offsets = [0, 2, 2, 0], sizes = [2, 8, 8, 1], strides = [1, 1, 1, 1]} : vector<2x10x10x1xf32> to vector<2x8x8x1xf32>
    %c8_26 = arith.constant 8 : index
    %115 = memref.load %arg7[%c8_26] : memref<9xf32, #tpu.memory_space<smem>>
    %116 = vector.broadcast %115 : f32 to vector<2x8x8x1xf32>
    %117 = arith.mulf %114, %116 : vector<2x8x8x1xf32>
    %118 = arith.addf %113, %117 : vector<2x8x8x1xf32>
    %119 = vector.broadcast %70 : f32 to vector<2x8x8x1xf32>
    %120 = arith.addf %118, %119 : vector<2x8x8x1xf32>
    %c0_27 = arith.constant 0 : index
    %121 = memref.load %arg8[%c0_27] : memref<1xf32, #tpu.memory_space<smem>>
    %cst_28 = arith.constant 0.000000e+00 : f32
    %122 = vector.broadcast %cst_28 : f32 to vector<2x1x8x1xf32>
    %123 = tpu.concatenate %122, %120, %122 in 1 : vector<2x1x8x1xf32>, vector<2x8x8x1xf32>, vector<2x1x8x1xf32> -> vector<2x10x8x1xf32>
    %cst_29 = arith.constant 0.000000e+00 : f32
    %124 = vector.broadcast %cst_29 : f32 to vector<2x10x1x1xf32>
    %125 = tpu.concatenate %124, %123, %124 in 2 : vector<2x10x1x1xf32>, vector<2x10x8x1xf32>, vector<2x10x1x1xf32> -> vector<2x10x10x1xf32>
    %126 = vector.extract_strided_slice %125 {offsets = [0, 0, 0, 0], sizes = [2, 8, 8, 1], strides = [1, 1, 1, 1]} : vector<2x10x10x1xf32> to vector<2x8x8x1xf32>
    %c0_30 = arith.constant 0 : index
    %127 = memref.load %arg7[%c0_30] : memref<9xf32, #tpu.memory_space<smem>>
    %128 = vector.broadcast %127 : f32 to vector<2x8x8x1xf32>
    %129 = arith.mulf %126, %128 : vector<2x8x8x1xf32>
    %130 = vector.extract_strided_slice %125 {offsets = [0, 0, 1, 0], sizes = [2, 8, 8, 1], strides = [1, 1, 1, 1]} : vector<2x10x10x1xf32> to vector<2x8x8x1xf32>
    %c1_31 = arith.constant 1 : index
    %131 = memref.load %arg7[%c1_31] : memref<9xf32, #tpu.memory_space<smem>>
    %132 = vector.broadcast %131 : f32 to vector<2x8x8x1xf32>
    %133 = arith.mulf %130, %132 : vector<2x8x8x1xf32>
    %134 = arith.addf %129, %133 : vector<2x8x8x1xf32>
    %135 = vector.extract_strided_slice %125 {offsets = [0, 0, 2, 0], sizes = [2, 8, 8, 1], strides = [1, 1, 1, 1]} : vector<2x10x10x1xf32> to vector<2x8x8x1xf32>
    %c2_32 = arith.constant 2 : index
    %136 = memref.load %arg7[%c2_32] : memref<9xf32, #tpu.memory_space<smem>>
    %137 = vector.broadcast %136 : f32 to vector<2x8x8x1xf32>
    %138 = arith.mulf %135, %137 : vector<2x8x8x1xf32>
    %139 = arith.addf %134, %138 : vector<2x8x8x1xf32>
    %140 = vector.extract_strided_slice %125 {offsets = [0, 1, 0, 0], sizes = [2, 8, 8, 1], strides = [1, 1, 1, 1]} : vector<2x10x10x1xf32> to vector<2x8x8x1xf32>
    %c3_33 = arith.constant 3 : index
    %141 = memref.load %arg7[%c3_33] : memref<9xf32, #tpu.memory_space<smem>>
    %142 = vector.broadcast %141 : f32 to vector<2x8x8x1xf32>
    %143 = arith.mulf %140, %142 : vector<2x8x8x1xf32>
    %144 = arith.addf %139, %143 : vector<2x8x8x1xf32>
    %145 = vector.extract_strided_slice %125 {offsets = [0, 1, 1, 0], sizes = [2, 8, 8, 1], strides = [1, 1, 1, 1]} : vector<2x10x10x1xf32> to vector<2x8x8x1xf32>
    %c4_34 = arith.constant 4 : index
    %146 = memref.load %arg7[%c4_34] : memref<9xf32, #tpu.memory_space<smem>>
    %147 = vector.broadcast %146 : f32 to vector<2x8x8x1xf32>
    %148 = arith.mulf %145, %147 : vector<2x8x8x1xf32>
    %149 = arith.addf %144, %148 : vector<2x8x8x1xf32>
    %150 = vector.extract_strided_slice %125 {offsets = [0, 1, 2, 0], sizes = [2, 8, 8, 1], strides = [1, 1, 1, 1]} : vector<2x10x10x1xf32> to vector<2x8x8x1xf32>
    %c5_35 = arith.constant 5 : index
    %151 = memref.load %arg7[%c5_35] : memref<9xf32, #tpu.memory_space<smem>>
    %152 = vector.broadcast %151 : f32 to vector<2x8x8x1xf32>
    %153 = arith.mulf %150, %152 : vector<2x8x8x1xf32>
    %154 = arith.addf %149, %153 : vector<2x8x8x1xf32>
    %155 = vector.extract_strided_slice %125 {offsets = [0, 2, 0, 0], sizes = [2, 8, 8, 1], strides = [1, 1, 1, 1]} : vector<2x10x10x1xf32> to vector<2x8x8x1xf32>
    %c6_36 = arith.constant 6 : index
    %156 = memref.load %arg7[%c6_36] : memref<9xf32, #tpu.memory_space<smem>>
    %157 = vector.broadcast %156 : f32 to vector<2x8x8x1xf32>
    %158 = arith.mulf %155, %157 : vector<2x8x8x1xf32>
    %159 = arith.addf %154, %158 : vector<2x8x8x1xf32>
    %160 = vector.extract_strided_slice %125 {offsets = [0, 2, 1, 0], sizes = [2, 8, 8, 1], strides = [1, 1, 1, 1]} : vector<2x10x10x1xf32> to vector<2x8x8x1xf32>
    %c7_37 = arith.constant 7 : index
    %161 = memref.load %arg7[%c7_37] : memref<9xf32, #tpu.memory_space<smem>>
    %162 = vector.broadcast %161 : f32 to vector<2x8x8x1xf32>
    %163 = arith.mulf %160, %162 : vector<2x8x8x1xf32>
    %164 = arith.addf %159, %163 : vector<2x8x8x1xf32>
    %165 = vector.extract_strided_slice %125 {offsets = [0, 2, 2, 0], sizes = [2, 8, 8, 1], strides = [1, 1, 1, 1]} : vector<2x10x10x1xf32> to vector<2x8x8x1xf32>
    %c8_38 = arith.constant 8 : index
    %166 = memref.load %arg7[%c8_38] : memref<9xf32, #tpu.memory_space<smem>>
    %167 = vector.broadcast %166 : f32 to vector<2x8x8x1xf32>
    %168 = arith.mulf %165, %167 : vector<2x8x8x1xf32>
    %169 = arith.addf %164, %168 : vector<2x8x8x1xf32>
    %170 = vector.broadcast %121 : f32 to vector<2x8x8x1xf32>
    %171 = arith.addf %169, %170 : vector<2x8x8x1xf32>
    %c0_39 = arith.constant 0 : index
    %c0_40 = arith.constant 0 : index
    %172 = vector.load %arg9[%c0_39, %c0_40] : memref<3x64xf32, #tpu.memory_space<vmem>>, vector<3x64xf32>
    %173 = vector.extract_strided_slice %172 {offsets = [0, 0], sizes = [1, 64], strides = [1, 1]} : vector<3x64xf32> to vector<1x64xf32>
    %174 = vector.shape_cast %173 : vector<1x64xf32> to vector<64xf32>
    %175 = vector.shape_cast %174 : vector<64xf32> to vector<1x1x1x64xf32>
    %176 = vector.broadcast %69 : vector<2x8x8x1xf32> to vector<2x8x8x64xf32>
    %177 = vector.broadcast %175 : vector<1x1x1x64xf32> to vector<2x8x8x64xf32>
    %178 = arith.mulf %176, %177 : vector<2x8x8x64xf32>
    %179 = vector.extract_strided_slice %172 {offsets = [1, 0], sizes = [1, 64], strides = [1, 1]} : vector<3x64xf32> to vector<1x64xf32>
    %180 = vector.shape_cast %179 : vector<1x64xf32> to vector<64xf32>
    %181 = vector.shape_cast %180 : vector<64xf32> to vector<1x1x1x64xf32>
    %182 = vector.broadcast %120 : vector<2x8x8x1xf32> to vector<2x8x8x64xf32>
    %183 = vector.broadcast %181 : vector<1x1x1x64xf32> to vector<2x8x8x64xf32>
    %184 = arith.mulf %182, %183 : vector<2x8x8x64xf32>
    %185 = arith.addf %178, %184 : vector<2x8x8x64xf32>
    %186 = vector.extract_strided_slice %172 {offsets = [2, 0], sizes = [1, 64], strides = [1, 1]} : vector<3x64xf32> to vector<1x64xf32>
    %187 = vector.shape_cast %186 : vector<1x64xf32> to vector<64xf32>
    %188 = vector.shape_cast %187 : vector<64xf32> to vector<1x1x1x64xf32>
    %189 = vector.broadcast %171 : vector<2x8x8x1xf32> to vector<2x8x8x64xf32>
    %190 = vector.broadcast %188 : vector<1x1x1x64xf32> to vector<2x8x8x64xf32>
    %191 = arith.mulf %189, %190 : vector<2x8x8x64xf32>
    %192 = arith.addf %185, %191 : vector<2x8x8x64xf32>
    %c0_41 = arith.constant 0 : index
    %c0_42 = arith.constant 0 : index
    %193 = vector.load %arg10[%c0_41, %c0_42] : memref<1x64xf32, #tpu.memory_space<vmem>>, vector<1x64xf32>
    %194 = vector.shape_cast %193 : vector<1x64xf32> to vector<1x1x1x64xf32>
    %195 = vector.broadcast %194 : vector<1x1x1x64xf32> to vector<2x8x8x64xf32>
    %196 = arith.addf %192, %195 : vector<2x8x8x64xf32>
    %197 = vector.extract_strided_slice %196 {offsets = [0, 0, 0, 0], sizes = [2, 1, 8, 64], strides = [1, 1, 1, 1]} : vector<2x8x8x64xf32> to vector<2x1x8x64xf32>
    %198 = vector.extract_strided_slice %196 {offsets = [0, 0, 0, 0], sizes = [2, 7, 8, 64], strides = [1, 1, 1, 1]} : vector<2x8x8x64xf32> to vector<2x7x8x64xf32>
    %199 = tpu.concatenate %197, %198 in 1 : vector<2x1x8x64xf32>, vector<2x7x8x64xf32> -> vector<2x8x8x64xf32>
    %200 = vector.extract_strided_slice %196 {offsets = [0, 1, 0, 0], sizes = [2, 7, 8, 64], strides = [1, 1, 1, 1]} : vector<2x8x8x64xf32> to vector<2x7x8x64xf32>
    %201 = vector.extract_strided_slice %196 {offsets = [0, 7, 0, 0], sizes = [2, 1, 8, 64], strides = [1, 1, 1, 1]} : vector<2x8x8x64xf32> to vector<2x1x8x64xf32>
    %202 = tpu.concatenate %200, %201 in 1 : vector<2x7x8x64xf32>, vector<2x1x8x64xf32> -> vector<2x8x8x64xf32>
    %cst_43 = arith.constant 2.500000e-01 : f32
    %203 = vector.broadcast %cst_43 : f32 to vector<2x8x8x64xf32>
    %204 = arith.mulf %203, %199 : vector<2x8x8x64xf32>
    %cst_44 = arith.constant 7.500000e-01 : f32
    %205 = vector.broadcast %cst_44 : f32 to vector<2x8x8x64xf32>
    %206 = arith.mulf %205, %196 : vector<2x8x8x64xf32>
    %207 = arith.addf %204, %206 : vector<2x8x8x64xf32>
    %cst_45 = arith.constant 7.500000e-01 : f32
    %208 = vector.broadcast %cst_45 : f32 to vector<2x8x8x64xf32>
    %209 = arith.mulf %208, %196 : vector<2x8x8x64xf32>
    %cst_46 = arith.constant 2.500000e-01 : f32
    %210 = vector.broadcast %cst_46 : f32 to vector<2x8x8x64xf32>
    %211 = arith.mulf %210, %202 : vector<2x8x8x64xf32>
    %212 = arith.addf %209, %211 : vector<2x8x8x64xf32>
    %213 = vector.extract_strided_slice %207 {offsets = [0, 0, 0, 0], sizes = [2, 8, 1, 64], strides = [1, 1, 1, 1]} : vector<2x8x8x64xf32> to vector<2x8x1x64xf32>
    %214 = vector.extract_strided_slice %207 {offsets = [0, 0, 0, 0], sizes = [2, 8, 7, 64], strides = [1, 1, 1, 1]} : vector<2x8x8x64xf32> to vector<2x8x7x64xf32>
    %215 = tpu.concatenate %213, %214 in 2 : vector<2x8x1x64xf32>, vector<2x8x7x64xf32> -> vector<2x8x8x64xf32>
    %cst_47 = arith.constant 2.500000e-01 : f32
    %216 = vector.broadcast %cst_47 : f32 to vector<2x8x8x64xf32>
    %217 = arith.mulf %216, %215 : vector<2x8x8x64xf32>
    %cst_48 = arith.constant 7.500000e-01 : f32
    %218 = vector.broadcast %cst_48 : f32 to vector<2x8x8x64xf32>
    %219 = arith.mulf %218, %207 : vector<2x8x8x64xf32>
    %220 = arith.addf %217, %219 : vector<2x8x8x64xf32>
    %cst_49 = arith.constant 7.500000e-01 : f32
    %221 = vector.broadcast %cst_49 : f32 to vector<2x8x8x64xf32>
    %222 = arith.mulf %221, %207 : vector<2x8x8x64xf32>
    %223 = vector.extract_strided_slice %207 {offsets = [0, 0, 1, 0], sizes = [2, 8, 7, 64], strides = [1, 1, 1, 1]} : vector<2x8x8x64xf32> to vector<2x8x7x64xf32>
    %224 = vector.extract_strided_slice %207 {offsets = [0, 0, 7, 0], sizes = [2, 8, 1, 64], strides = [1, 1, 1, 1]} : vector<2x8x8x64xf32> to vector<2x8x1x64xf32>
    %225 = tpu.concatenate %223, %224 in 2 : vector<2x8x7x64xf32>, vector<2x8x1x64xf32> -> vector<2x8x8x64xf32>
    %cst_50 = arith.constant 2.500000e-01 : f32
    %226 = vector.broadcast %cst_50 : f32 to vector<2x8x8x64xf32>
    %227 = arith.mulf %226, %225 : vector<2x8x8x64xf32>
    %228 = arith.addf %222, %227 : vector<2x8x8x64xf32>
    %229 = tpu.concatenate %220, %228 in 3 : vector<2x8x8x64xf32>, vector<2x8x8x64xf32> -> vector<2x8x8x128xf32>
    %230 = vector.extract_strided_slice %212 {offsets = [0, 0, 0, 0], sizes = [2, 8, 1, 64], strides = [1, 1, 1, 1]} : vector<2x8x8x64xf32> to vector<2x8x1x64xf32>
    %231 = vector.extract_strided_slice %212 {offsets = [0, 0, 0, 0], sizes = [2, 8, 7, 64], strides = [1, 1, 1, 1]} : vector<2x8x8x64xf32> to vector<2x8x7x64xf32>
    %232 = tpu.concatenate %230, %231 in 2 : vector<2x8x1x64xf32>, vector<2x8x7x64xf32> -> vector<2x8x8x64xf32>
    %cst_51 = arith.constant 2.500000e-01 : f32
    %233 = vector.broadcast %cst_51 : f32 to vector<2x8x8x64xf32>
    %234 = arith.mulf %233, %232 : vector<2x8x8x64xf32>
    %cst_52 = arith.constant 7.500000e-01 : f32
    %235 = vector.broadcast %cst_52 : f32 to vector<2x8x8x64xf32>
    %236 = arith.mulf %235, %212 : vector<2x8x8x64xf32>
    %237 = arith.addf %234, %236 : vector<2x8x8x64xf32>
    %cst_53 = arith.constant 7.500000e-01 : f32
    %238 = vector.broadcast %cst_53 : f32 to vector<2x8x8x64xf32>
    %239 = arith.mulf %238, %212 : vector<2x8x8x64xf32>
    %240 = vector.extract_strided_slice %212 {offsets = [0, 0, 1, 0], sizes = [2, 8, 7, 64], strides = [1, 1, 1, 1]} : vector<2x8x8x64xf32> to vector<2x8x7x64xf32>
    %241 = vector.extract_strided_slice %212 {offsets = [0, 0, 7, 0], sizes = [2, 8, 1, 64], strides = [1, 1, 1, 1]} : vector<2x8x8x64xf32> to vector<2x8x1x64xf32>
    %242 = tpu.concatenate %240, %241 in 2 : vector<2x8x7x64xf32>, vector<2x8x1x64xf32> -> vector<2x8x8x64xf32>
    %cst_54 = arith.constant 2.500000e-01 : f32
    %243 = vector.broadcast %cst_54 : f32 to vector<2x8x8x64xf32>
    %244 = arith.mulf %243, %242 : vector<2x8x8x64xf32>
    %245 = arith.addf %239, %244 : vector<2x8x8x64xf32>
    %246 = tpu.concatenate %237, %245 in 3 : vector<2x8x8x64xf32>, vector<2x8x8x64xf32> -> vector<2x8x8x128xf32>
    %247 = vector.shape_cast %229 : vector<2x8x8x128xf32> to vector<2x8x1x8x128xf32>
    %248 = vector.shape_cast %246 : vector<2x8x8x128xf32> to vector<2x8x1x8x128xf32>
    %249 = tpu.concatenate %247, %248 in 2 : vector<2x8x1x8x128xf32>, vector<2x8x1x8x128xf32> -> vector<2x8x2x8x128xf32>
    %250 = vector.shape_cast %249 : vector<2x8x2x8x128xf32> to vector<2x16x8x128xf32>
    %251 = arith.negf %250 : vector<2x16x8x128xf32>
    %252 = math.exp %251 : vector<2x16x8x128xf32>
    %cst_55 = arith.constant 1.000000e+00 : f32
    %253 = vector.broadcast %cst_55 : f32 to vector<2x16x8x128xf32>
    %254 = arith.addf %253, %252 : vector<2x16x8x128xf32>
    %255 = arith.divf %253, %254 : vector<2x16x8x128xf32>
    %256 = arith.mulf %0, %255 : vector<2x16x8x128xf32>
    %c0_56 = arith.constant 0 : index
    %c0_57 = arith.constant 0 : index
    %c0_58 = arith.constant 0 : index
    %c0_59 = arith.constant 0 : index
    %257 = vector.load %arg11[%c0_56, %c0_57, %c0_58, %c0_59] : memref<2x16x8x128xf32, #tpu.memory_space<vmem>>, vector<2x16x8x128xf32>
    tpu.vector_store %arg11[%c0_56, %c0_57, %c0_58, %c0_59], %256 {strides = array<i32>} : memref<2x16x8x128xf32, #tpu.memory_space<vmem>>, vector<2x16x8x128xf32>,
    return
  }
  func.func @transform_0(%arg0: i32) -> (i32, i32, i32, i32) {
    %c0_i32 = arith.constant 0 : i32
    %c0_i32_0 = arith.constant 0 : i32
    %c0_i32_1 = arith.constant 0 : i32
    %c0_i32_2 = arith.constant 0 : i32
    return %arg0, %c0_i32, %c0_i32_0, %c0_i32_1 : i32, i32, i32, i32
  }
  func.func @transform_1(%arg0: i32) -> (i32, i32) {
    %c0_i32 = arith.constant 0 : i32
    %c0_i32_0 = arith.constant 0 : i32
    %c0_i32_1 = arith.constant 0 : i32
    return %c0_i32, %c0_i32_0 : i32, i32
  }
  func.func @transform_2(%arg0: i32) -> (i32, i32) {
    %c0_i32 = arith.constant 0 : i32
    %c0_i32_0 = arith.constant 0 : i32
    %c0_i32_1 = arith.constant 0 : i32
    return %c0_i32, %c0_i32_0 : i32, i32
  }
  func.func @transform_3(%arg0: i32) -> (i32, i32) {
    %c0_i32 = arith.constant 0 : i32
    %c0_i32_0 = arith.constant 0 : i32
    %c0_i32_1 = arith.constant 0 : i32
    return %c0_i32, %c0_i32_0 : i32, i32
  }
  func.func @transform_4(%arg0: i32) -> i32 {
    %c0_i32 = arith.constant 0 : i32
    %c0_i32_0 = arith.constant 0 : i32
    return %c0_i32 : i32
  }
  func.func @transform_5(%arg0: i32) -> i32 {
    %c0_i32 = arith.constant 0 : i32
    %c0_i32_0 = arith.constant 0 : i32
    return %c0_i32 : i32
  }
  func.func @transform_6(%arg0: i32) -> i32 {
    %c0_i32 = arith.constant 0 : i32
    %c0_i32_0 = arith.constant 0 : i32
    return %c0_i32 : i32
  }
  func.func @transform_7(%arg0: i32) -> i32 {
    %c0_i32 = arith.constant 0 : i32
    %c0_i32_0 = arith.constant 0 : i32
    return %c0_i32 : i32
  }
  func.func @transform_8(%arg0: i32) -> (i32, i32) {
    %c0_i32 = arith.constant 0 : i32
    %c0_i32_0 = arith.constant 0 : i32
    %c0_i32_1 = arith.constant 0 : i32
    return %c0_i32, %c0_i32_0 : i32, i32
  }
  func.func @transform_9(%arg0: i32) -> (i32, i32) {
    %c0_i32 = arith.constant 0 : i32
    %c0_i32_0 = arith.constant 0 : i32
    %c0_i32_1 = arith.constant 0 : i32
    return %c0_i32, %c0_i32_0 : i32, i32
  }
  func.func @transform_10(%arg0: i32) -> (i32, i32, i32, i32) {
    %c0_i32 = arith.constant 0 : i32
    %c0_i32_0 = arith.constant 0 : i32
    %c0_i32_1 = arith.constant 0 : i32
    %c0_i32_2 = arith.constant 0 : i32
    return %arg0, %c0_i32, %c0_i32_0, %c0_i32_1 : i32, i32, i32, i32
  }
}

</mosaic_0001>

<llo_original>
// kernel: lmsa_forward.1
$region0: #{lmsa_forward.1}
  #allocation0 [shape = 'u32[]', space=smem, size = 0x4, offset = 0x4, fixed_abs, tag = 'smem constant byte address 0x4 - core index']
  #allocation1 [shape = 'u32[144,128]{1,0:T(1,128)}', space=vmem, size = 0x12000, scoped, tag = 'internal scratch']
  #allocation2 [shape = 'f32[1]{0:T(128)S(6)}', space=smem, size = 0x200, scoped, tag = 'scoped memory for lmsa_forward.1']
  #allocation3 [shape = 'f32[1]{0:T(128)S(6)}', space=smem, size = 0x200, scoped, tag = 'scoped memory for lmsa_forward.1']
  %s0 = inlined_call_operand.vmem [shape: f32[2,16,8,128], index: 0, kind: input, shape index: {}]
  %s1 = inlined_call_operand.vmem [shape: f32[128,64], index: 1, kind: input, shape index: {}]
  %s2 = inlined_call_operand.vmem [shape: f32[128,64], index: 2, kind: input, shape index: {}]
  %s3 = inlined_call_operand.vmem [shape: f32[1,64], index: 3, kind: input, shape index: {}]
  %s4 = inlined_call_operand.vmem [shape: f32[9], index: 4, kind: input, shape index: {}]
  %s5 = inlined_call_operand.<no memory space> [shape: f32[1], index: 5, kind: input, shape index: {}]
  %s6 = inlined_call_operand.vmem [shape: f32[9], index: 6, kind: input, shape index: {}]
  %s7 = inlined_call_operand.<no memory space> [shape: f32[1], index: 7, kind: input, shape index: {}]
  %s8 = inlined_call_operand.vmem [shape: f32[3,64], index: 8, kind: input, shape index: {}]
  %s9 = inlined_call_operand.vmem [shape: f32[1,64], index: 9, kind: input, shape index: {}]
  %s10 = inlined_call_operand.vmem [shape: f32[2,16,8,128], index: 10, kind: output, shape index: {}]
  %s11 = sld [smem:[#allocation0]]
  $region58: #{lmsa_forward.1} parent=0
    _
  %s13 = ssub.s32 1, %s11
  %s14 = scalar_select 0, %s13, %s11
  %15 = sst [smem:[#allocation2]] %s5
  %16 = sst [smem:[#allocation3]] %s7
  $region1: #{lmsa_forward.1} parent=0
    #allocation4 [shape = 'u8[512]{0}', space=smem, size = 0x200, scoped, tag = 'input window, operand 4, single buffered']
    #allocation5 [shape = 's32[1]{0}', space=sflag, size = 0x4, scoped, tag = 'scoped memory for lmsa_forward.1']
    #allocation6 [shape = 'u8[512]{0}', space=smem, size = 0x200, scoped, tag = 'input window, operand 6, single buffered']
    #allocation7 [shape = 's32[1]{0}', space=sflag, size = 0x4, scoped, tag = 'scoped memory for lmsa_forward.1']
    %17 = vsyncpa [#allocation5], 0
    %18 = vsyncpa [#allocation7], 0
    // Predicated region
    $region2: #{lmsa_forward.1} parent=1 // pred_check
      _
    $region3: #{lmsa_forward.1} parent=1 // pred_check_branch
      %20 = sbr.rel (0) target = $region5
    $region4: #{lmsa_forward.1} parent=1 // pred_region
      _
    $region5: #{lmsa_forward.1} parent=1 // pred_fallthru
      _
    // Predicated region
    $region6: #{lmsa_forward.1} parent=1 // pred_check
      _
    $region7: #{lmsa_forward.1} parent=1 // pred_check_branch
      %22 = sbr.rel (0) target = $region9
    $region8: #{lmsa_forward.1} parent=1 // pred_region
      _
    $region9: #{lmsa_forward.1} parent=1 // pred_fallthru
      _
    // Predicated region
    $region10: #{lmsa_forward.1} parent=1 // pred_check
      _
    $region11: #{lmsa_forward.1} parent=1 // pred_check_branch
      %24 = sbr.rel (0) target = $region13
    $region12: #{lmsa_forward.1} parent=1 // pred_region
      _
    $region13: #{lmsa_forward.1} parent=1 // pred_fallthru
      _
    // Predicated region
    $region14: #{lmsa_forward.1} parent=1 // pred_check
      _
    $region15: #{lmsa_forward.1} parent=1 // pred_check_branch
      %26 = sbr.rel (0) target = $region17
    $region16: #{lmsa_forward.1} parent=1 // pred_region
      _
    $region17: #{lmsa_forward.1} parent=1 // pred_fallthru
      _
    // Predicated region
    $region18: #{lmsa_forward.1} parent=1 // pred_check
      _
    $region19: #{lmsa_forward.1} parent=1 // pred_check_branch
      %28 = sbr.rel (0) target = $region21
    $region20: #{lmsa_forward.1} parent=1 // pred_region
      %s30 = ssub.s32 16, 16
      %31 = vsyncadd [#allocation5], %s30
      %s33 = sshll.u32 %s4, 4
      %s34 = int_to_ptr.vmem [resolvable:$true] %s33
      %36 = dma.vmem_to_smem %s34, 16, [#allocation4], [#allocation5]
    $region21: #{lmsa_forward.1} parent=1 // pred_fallthru
      _
    // Predicated region
    $region22: #{lmsa_forward.1} parent=1 // pred_check
      _
    $region23: #{lmsa_forward.1} parent=1 // pred_check_branch
      %38 = sbr.rel (0) target = $region25
    $region24: #{lmsa_forward.1} parent=1 // pred_region
      _
    $region25: #{lmsa_forward.1} parent=1 // pred_fallthru
      _
    // Predicated region
    $region26: #{lmsa_forward.1} parent=1 // pred_check
      _
    $region27: #{lmsa_forward.1} parent=1 // pred_check_branch
      %40 = sbr.rel (0) target = $region29
    $region28: #{lmsa_forward.1} parent=1 // pred_region
      %s42 = ssub.s32 16, 16
      %43 = vsyncadd [#allocation7], %s42
      %s45 = sshll.u32 %s6, 4
      %s46 = int_to_ptr.vmem [resolvable:$true] %s45
      %48 = dma.vmem_to_smem %s46, 16, [#allocation6], [#allocation7]
    $region29: #{lmsa_forward.1} parent=1 // pred_fallthru
      _
    // Predicated region
    $region30: #{lmsa_forward.1} parent=1 // pred_check
      _
    $region31: #{lmsa_forward.1} parent=1 // pred_check_branch
      %50 = sbr.rel (0) target = $region33
    $region32: #{lmsa_forward.1} parent=1 // pred_region
      _
    $region33: #{lmsa_forward.1} parent=1 // pred_fallthru
      _
    // Predicated region
    $region34: #{lmsa_forward.1} parent=1 // pred_check
      _
    $region35: #{lmsa_forward.1} parent=1 // pred_check_branch
      %52 = sbr.rel (0) target = $region37
    $region36: #{lmsa_forward.1} parent=1 // pred_region
      _
    $region37: #{lmsa_forward.1} parent=1 // pred_fallthru
      _
    // Predicated region
    $region38: #{lmsa_forward.1} parent=1 // pred_check
      _
    $region39: #{lmsa_forward.1} parent=1 // pred_check_branch
      %54 = sbr.rel (0) target = $region41
    $region40: #{lmsa_forward.1} parent=1 // pred_region
      _
    $region41: #{lmsa_forward.1} parent=1 // pred_fallthru
      _
    // Predicated region
    $region42: #{lmsa_forward.1} parent=1 // pred_check
      _
    $region43: #{lmsa_forward.1} parent=1 // pred_check_branch
      %56 = sbr.rel (0) target = $region45
    $region44: #{lmsa_forward.1} parent=1 // pred_region
      %57 = dma.done [#allocation5], 16
    $region45: #{lmsa_forward.1} parent=1 // pred_fallthru
      _
    // Predicated region
    $region46: #{lmsa_forward.1} parent=1 // pred_check
      _
    $region47: #{lmsa_forward.1} parent=1 // pred_check_branch
      %59 = sbr.rel (0) target = $region49
    $region48: #{lmsa_forward.1} parent=1 // pred_region
      %60 = dma.done [#allocation7], 16
    $region49: #{lmsa_forward.1} parent=1 // pred_fallthru
      _
    %61 = sfence
    %v62 = vld [vmem:[%s0] sm:$0xff]
    %v63 = vld [vmem:[%s0 + $0x8] sm:$0xff]
    %v64 = vld [vmem:[%s0 + $0x10] sm:$0xff]
    %v65 = vld [vmem:[%s0 + $0x18] sm:$0xff]
    %v66 = vld [vmem:[%s0 + $0x20] sm:$0xff]
    %v67 = vld [vmem:[%s0 + $0x28] sm:$0xff]
    %v68 = vld [vmem:[%s0 + $0x30] sm:$0xff]
    %v69 = vld [vmem:[%s0 + $0x38] sm:$0xff]
    %v70 = vld [vmem:[%s0 + $0x40] sm:$0xff]
    %v71 = vld [vmem:[%s0 + $0x48] sm:$0xff]
    %v72 = vld [vmem:[%s0 + $0x50] sm:$0xff]
    %v73 = vld [vmem:[%s0 + $0x58] sm:$0xff]
    %v74 = vld [vmem:[%s0 + $0x60] sm:$0xff]
    %v75 = vld [vmem:[%s0 + $0x68] sm:$0xff]
    %v76 = vld [vmem:[%s0 + $0x70] sm:$0xff]
    %v77 = vld [vmem:[%s0 + $0x78] sm:$0xff]
    %v78 = vld [vmem:[%s0 + $0x80] sm:$0xff]
    %v79 = vld [vmem:[%s0 + $0x88] sm:$0xff]
    %v80 = vld [vmem:[%s0 + $0x90] sm:$0xff]
    %v81 = vld [vmem:[%s0 + $0x98] sm:$0xff]
    %v82 = vld [vmem:[%s0 + $0xa0] sm:$0xff]
    %v83 = vld [vmem:[%s0 + $0xa8] sm:$0xff]
    %v84 = vld [vmem:[%s0 + $0xb0] sm:$0xff]
    %v85 = vld [vmem:[%s0 + $0xb8] sm:$0xff]
    %v86 = vld [vmem:[%s0 + $0xc0] sm:$0xff]
    %v87 = vld [vmem:[%s0 + $0xc8] sm:$0xff]
    %v88 = vld [vmem:[%s0 + $0xd0] sm:$0xff]
    %v89 = vld [vmem:[%s0 + $0xd8] sm:$0xff]
    %v90 = vld [vmem:[%s0 + $0xe0] sm:$0xff]
    %v91 = vld [vmem:[%s0 + $0xe8] sm:$0xff]
    %v92 = vld [vmem:[%s0 + $0xf0] sm:$0xff]
    %v93 = vld [vmem:[%s0 + $0xf8] sm:$0xff]
    %v94 = vld [vmem:[%s1] sm:$0xff]
    %v95 = vld [vmem:[%s1 + $0x8] sm:$0xff]
    %v96 = vld [vmem:[%s1 + $0x10] sm:$0xff]
    %v97 = vld [vmem:[%s1 + $0x18] sm:$0xff]
    %v98 = vld [vmem:[%s1 + $0x20] sm:$0xff]
    %v99 = vld [vmem:[%s1 + $0x28] sm:$0xff]
    %v100 = vld [vmem:[%s1 + $0x30] sm:$0xff]
    %v101 = vld [vmem:[%s1 + $0x38] sm:$0xff]
    %v102 = vld [vmem:[%s1 + $0x40] sm:$0xff]
    %v103 = vld [vmem:[%s1 + $0x48] sm:$0xff]
    %v104 = vld [vmem:[%s1 + $0x50] sm:$0xff]
    %v105 = vld [vmem:[%s1 + $0x58] sm:$0xff]
    %v106 = vld [vmem:[%s1 + $0x60] sm:$0xff]
    %v107 = vld [vmem:[%s1 + $0x68] sm:$0xff]
    %v108 = vld [vmem:[%s1 + $0x70] sm:$0xff]
    %v109 = vld [vmem:[%s1 + $0x78] sm:$0xff]
    %v110 = vld [vmem:[%s2] sm:$0xff]
    %v111 = vld [vmem:[%s2 + $0x8] sm:$0xff]
    %v112 = vld [vmem:[%s2 + $0x10] sm:$0xff]
    %v113 = vld [vmem:[%s2 + $0x18] sm:$0xff]
    %v114 = vld [vmem:[%s2 + $0x20] sm:$0xff]
    %v115 = vld [vmem:[%s2 + $0x28] sm:$0xff]
    %v116 = vld [vmem:[%s2 + $0x30] sm:$0xff]
    %v117 = vld [vmem:[%s2 + $0x38] sm:$0xff]
    %v118 = vld [vmem:[%s2 + $0x40] sm:$0xff]
    %v119 = vld [vmem:[%s2 + $0x48] sm:$0xff]
    %v120 = vld [vmem:[%s2 + $0x50] sm:$0xff]
    %v121 = vld [vmem:[%s2 + $0x58] sm:$0xff]
    %v122 = vld [vmem:[%s2 + $0x60] sm:$0xff]
    %v123 = vld [vmem:[%s2 + $0x68] sm:$0xff]
    %v124 = vld [vmem:[%s2 + $0x70] sm:$0xff]
    %v125 = vld [vmem:[%s2 + $0x78] sm:$0xff]
    %126 = vmatprep.subr.mxu0 0.0
    %v127 = vand.u32 %v125, 4294901760
    %128 = vmatpush1.msra.mxu0 %v127
    %129 = vmatprep.subr.mxu0 0.0
    %v130 = vand.u32 %v124, 4294901760
    %131 = vmatpush1.msra.mxu0 %v130
    %132 = vmatprep.subr.mxu0 0.0
    %v133 = vand.u32 %v123, 4294901760
    %134 = vmatpush1.msra.mxu0 %v133
    %135 = vmatprep.subr.mxu0 0.0
    %v136 = vand.u32 %v122, 4294901760
    %137 = vmatpush1.msra.mxu0 %v136
    %138 = vmatprep.subr.mxu0 0.0
    %v139 = vand.u32 %v121, 4294901760
    %140 = vmatpush1.msra.mxu0 %v139
    %141 = vmatprep.subr.mxu0 0.0
    %v142 = vand.u32 %v120, 4294901760
    %143 = vmatpush1.msra.mxu0 %v142
    %144 = vmatprep.subr.mxu0 0.0
    %v145 = vand.u32 %v119, 4294901760
    %146 = vmatpush1.msra.mxu0 %v145
    %147 = vmatprep.subr.mxu0 0.0
    %v148 = vand.u32 %v118, 4294901760
    %149 = vmatpush1.msra.mxu0 %v148
    %150 = vmatprep.subr.mxu0 0.0
    %v151 = vand.u32 %v117, 4294901760
    %152 = vmatpush1.msra.mxu0 %v151
    %153 = vmatprep.subr.mxu0 0.0
    %v154 = vand.u32 %v116, 4294901760
    %155 = vmatpush1.msra.mxu0 %v154
    %156 = vmatprep.subr.mxu0 0.0
    %v157 = vand.u32 %v115, 4294901760
    %158 = vmatpush1.msra.mxu0 %v157
    %159 = vmatprep.subr.mxu0 0.0
    %v160 = vand.u32 %v114, 4294901760
    %161 = vmatpush1.msra.mxu0 %v160
    %162 = vmatprep.subr.mxu0 0.0
    %v163 = vand.u32 %v113, 4294901760
    %164 = vmatpush1.msra.mxu0 %v163
    %165 = vmatprep.subr.mxu0 0.0
    %v166 = vand.u32 %v112, 4294901760
    %167 = vmatpush1.msra.mxu0 %v166
    %168 = vmatprep.subr.mxu0 0.0
    %v169 = vand.u32 %v111, 4294901760
    %170 = vmatpush1.msra.mxu0 %v169
    %171 = vmatprep.subr.mxu0 0.0
    %v172 = vand.u32 %v110, 4294901760
    %173 = vmatpush1.msra.mxu0 %v172
    %174 = vmatprep.subr.mxu0 0.0
    %175 = vmatpush2.msra.mxu0 0.0
    %176 = vmatprep.subr.mxu0 0.0
    %177 = vmatpush2.msra.mxu0 0.0
    %178 = vmatprep.subr.mxu0 0.0
    %179 = vmatpush2.msra.mxu0 0.0
    %180 = vmatprep.subr.mxu0 0.0
    %181 = vmatpush2.msra.mxu0 0.0
    %182 = vmatprep.subr.mxu0 0.0
    %183 = vmatpush2.msra.mxu0 0.0
    %184 = vmatprep.subr.mxu0 0.0
    %185 = vmatpush2.msra.mxu0 0.0
    %186 = vmatprep.subr.mxu0 0.0
    %187 = vmatpush2.msra.mxu0 0.0
    %188 = vmatprep.subr.mxu0 0.0
    %189 = vmatpush2.msra.mxu0 0.0
    %190 = vmatprep.subr.mxu0 0.0
    %191 = vmatpush2.msra.mxu0 0.0
    %192 = vmatprep.subr.mxu0 0.0
    %193 = vmatpush2.msra.mxu0 0.0
    %194 = vmatprep.subr.mxu0 0.0
    %195 = vmatpush2.msra.mxu0 0.0
    %196 = vmatprep.subr.mxu0 0.0
    %197 = vmatpush2.msra.mxu0 0.0
    %198 = vmatprep.subr.mxu0 0.0
    %199 = vmatpush2.msra.mxu0 0.0
    %200 = vmatprep.subr.mxu0 0.0
    %201 = vmatpush2.msra.mxu0 0.0
    %202 = vmatprep.subr.mxu0 0.0
    %203 = vmatpush2.msra.mxu0 0.0
    %204 = vmatprep.subr.mxu0 0.0
    %205 = vmatpush2.msra.mxu0 0.0
    %206 = vmatprep.mubr.f32.mxu0 0.0
    %v207 = vand.u32 %v63, 4294901760
    %v208 = vsub.f32 %v63, %v207
    %v209 = vand.u32 %v208, 4294901760
    %v210 = vsub.f32 %v208, %v209
    %v211 = vand.u32 %v210, 4294901760
    %212 = vmatmul.mubr.f32.gmra.mxu0 %v211
    %v213 = vpop.f32.mrf.mxu0
    %v214 = vadd.f32 0.0, %v213
    %v215 = vpop.f32.mrf.mxu0
    %216 = vmatprep.mubr.f32.mxu0 0.0
    %v217 = vand.u32 %v65, 4294901760
    %v218 = vsub.f32 %v65, %v217
    %v219 = vand.u32 %v218, 4294901760
    %v220 = vsub.f32 %v218, %v219
    %v221 = vand.u32 %v220, 4294901760
    %222 = vmatmul.mubr.f32.gmra.mxu0 %v221
    %v223 = vpop.f32.mrf.mxu0
    %v224 = vadd.f32 0.0, %v223
    %v225 = vpop.f32.mrf.mxu0
    %226 = vmatprep.mubr.f32.mxu0 0.0
    %v227 = vand.u32 %v67, 4294901760
    %v228 = vsub.f32 %v67, %v227
    %v229 = vand.u32 %v228, 4294901760
    %v230 = vsub.f32 %v228, %v229
    %v231 = vand.u32 %v230, 4294901760
    %232 = vmatmul.mubr.f32.gmra.mxu0 %v231
    %v233 = vpop.f32.mrf.mxu0
    %v234 = vadd.f32 0.0, %v233
    %v235 = vpop.f32.mrf.mxu0
    %236 = vmatprep.mubr.f32.mxu0 0.0
    %v237 = vand.u32 %v69, 4294901760
    %v238 = vsub.f32 %v69, %v237
    %v239 = vand.u32 %v238, 4294901760
    %v240 = vsub.f32 %v238, %v239
    %v241 = vand.u32 %v240, 4294901760
    %242 = vmatmul.mubr.f32.gmra.mxu0 %v241
    %v243 = vpop.f32.mrf.mxu0
    %v244 = vadd.f32 0.0, %v243
    %v245 = vpop.f32.mrf.mxu0
    %246 = vmatprep.mubr.f32.mxu0 0.0
    %v247 = vand.u32 %v71, 4294901760
    %v248 = vsub.f32 %v71, %v247
    %v249 = vand.u32 %v248, 4294901760
    %v250 = vsub.f32 %v248, %v249
    %v251 = vand.u32 %v250, 4294901760
    %252 = vmatmul.mubr.f32.gmra.mxu0 %v251
    %v253 = vpop.f32.mrf.mxu0
    %v254 = vadd.f32 0.0, %v253
    %v255 = vpop.f32.mrf.mxu0
    %256 = vmatprep.mubr.f32.mxu0 0.0
    %v257 = vand.u32 %v73, 4294901760
    %v258 = vsub.f32 %v73, %v257
    %v259 = vand.u32 %v258, 4294901760
    %v260 = vsub.f32 %v258, %v259
    %v261 = vand.u32 %v260, 4294901760
    %262 = vmatmul.mubr.f32.gmra.mxu0 %v261
    %v263 = vpop.f32.mrf.mxu0
    %v264 = vadd.f32 0.0, %v263
    %v265 = vpop.f32.mrf.mxu0
    %266 = vmatprep.mubr.f32.mxu0 0.0
    %v267 = vand.u32 %v75, 4294901760
    %v268 = vsub.f32 %v75, %v267
    %v269 = vand.u32 %v268, 4294901760
    %v270 = vsub.f32 %v268, %v269
    %v271 = vand.u32 %v270, 4294901760
    %272 = vmatmul.mubr.f32.gmra.mxu0 %v271
    %v273 = vpop.f32.mrf.mxu0
    %v274 = vadd.f32 0.0, %v273
    %v275 = vpop.f32.mrf.mxu0
    %276 = vmatprep.mubr.f32.mxu0 0.0
    %v277 = vand.u32 %v77, 4294901760
    %v278 = vsub.f32 %v77, %v277
    %v279 = vand.u32 %v278, 4294901760
    %v280 = vsub.f32 %v278, %v279
    %v281 = vand.u32 %v280, 4294901760
    %282 = vmatmul.mubr.f32.gmra.mxu0 %v281
    %v283 = vpop.f32.mrf.mxu0
    %v284 = vadd.f32 0.0, %v283
    %v285 = vpop.f32.mrf.mxu0
    %286 = vmatprep.mubr.f32.mxu0 0.0
    %v287 = vand.u32 %v79, 4294901760
    %v288 = vsub.f32 %v79, %v287
    %v289 = vand.u32 %v288, 4294901760
    %v290 = vsub.f32 %v288, %v289
    %v291 = vand.u32 %v290, 4294901760
    %292 = vmatmul.mubr.f32.gmra.mxu0 %v291
    %v293 = vpop.f32.mrf.mxu0
    %v294 = vadd.f32 0.0, %v293
    %v295 = vpop.f32.mrf.mxu0
    %296 = vmatprep.mubr.f32.mxu0 0.0
    %v297 = vand.u32 %v81, 4294901760
    %v298 = vsub.f32 %v81, %v297
    %v299 = vand.u32 %v298, 4294901760
    %v300 = vsub.f32 %v298, %v299
    %v301 = vand.u32 %v300, 4294901760
    %302 = vmatmul.mubr.f32.gmra.mxu0 %v301
    %v303 = vpop.f32.mrf.mxu0
    %v304 = vadd.f32 0.0, %v303
    %v305 = vpop.f32.mrf.mxu0
    %306 = vmatprep.mubr.f32.mxu0 0.0
    %v307 = vand.u32 %v83, 4294901760
    %v308 = vsub.f32 %v83, %v307
    %v309 = vand.u32 %v308, 4294901760
    %v310 = vsub.f32 %v308, %v309
    %v311 = vand.u32 %v310, 4294901760
    %312 = vmatmul.mubr.f32.gmra.mxu0 %v311
    %v313 = vpop.f32.mrf.mxu0
    %v314 = vadd.f32 0.0, %v313
    %v315 = vpop.f32.mrf.mxu0
    %316 = vmatprep.mubr.f32.mxu0 0.0
    %v317 = vand.u32 %v85, 4294901760
    %v318 = vsub.f32 %v85, %v317
    %v319 = vand.u32 %v318, 4294901760
    %v320 = vsub.f32 %v318, %v319
    %v321 = vand.u32 %v320, 4294901760
    %322 = vmatmul.mubr.f32.gmra.mxu0 %v321
    %v323 = vpop.f32.mrf.mxu0
    %v324 = vadd.f32 0.0, %v323
    %v325 = vpop.f32.mrf.mxu0
    %326 = vmatprep.mubr.f32.mxu0 0.0
    %v327 = vand.u32 %v87, 4294901760
    %v328 = vsub.f32 %v87, %v327
    %v329 = vand.u32 %v328, 4294901760
    %v330 = vsub.f32 %v328, %v329
    %v331 = vand.u32 %v330, 4294901760
    %332 = vmatmul.mubr.f32.gmra.mxu0 %v331
    %v333 = vpop.f32.mrf.mxu0
    %v334 = vadd.f32 0.0, %v333
    %v335 = vpop.f32.mrf.mxu0
    %336 = vmatprep.mubr.f32.mxu0 0.0
    %v337 = vand.u32 %v89, 4294901760
    %v338 = vsub.f32 %v89, %v337
    %v339 = vand.u32 %v338, 4294901760
    %v340 = vsub.f32 %v338, %v339
    %v341 = vand.u32 %v340, 4294901760
    %342 = vmatmul.mubr.f32.gmra.mxu0 %v341
    %v343 = vpop.f32.mrf.mxu0
    %v344 = vadd.f32 0.0, %v343
    %v345 = vpop.f32.mrf.mxu0
    %346 = vmatprep.mubr.f32.mxu0 0.0
    %v347 = vand.u32 %v91, 4294901760
    %v348 = vsub.f32 %v91, %v347
    %v349 = vand.u32 %v348, 4294901760
    %v350 = vsub.f32 %v348, %v349
    %v351 = vand.u32 %v350, 4294901760
    %352 = vmatmul.mubr.f32.gmra.mxu0 %v351
    %v353 = vpop.f32.mrf.mxu0
    %v354 = vadd.f32 0.0, %v353
    %v355 = vpop.f32.mrf.mxu0
    %356 = vmatprep.mubr.f32.mxu0 0.0
    %v357 = vand.u32 %v93, 4294901760
    %v358 = vsub.f32 %v93, %v357
    %v359 = vand.u32 %v358, 4294901760
    %v360 = vsub.f32 %v358, %v359
    %v361 = vand.u32 %v360, 4294901760
    %362 = vmatmul.mubr.f32.gmra.mxu0 %v361
    %v363 = vpop.f32.mrf.mxu0
    %v364 = vadd.f32 0.0, %v363
    %v365 = vpop.f32.mrf.mxu0
    %366 = vdwg.mxu0
    %367 = vmatprep.subr.mxu0 0.0
    %v368 = vand.u32 %v125, 4294901760
    %v369 = vsub.f32 %v125, %v368
    %v370 = vand.u32 %v369, 4294901760
    %v371 = vsub.f32 %v369, %v370
    %v372 = vand.u32 %v371, 4294901760
    %373 = vmatpush1.msra.mxu0 %v372
    %374 = vmatprep.subr.mxu0 0.0
    %v375 = vand.u32 %v124, 4294901760
    %v376 = vsub.f32 %v124, %v375
    %v377 = vand.u32 %v376, 4294901760
    %v378 = vsub.f32 %v376, %v377
    %v379 = vand.u32 %v378, 4294901760
    %380 = vmatpush1.msra.mxu0 %v379
    %381 = vmatprep.subr.mxu0 0.0
    %v382 = vand.u32 %v123, 4294901760
    %v383 = vsub.f32 %v123, %v382
    %v384 = vand.u32 %v383, 4294901760
    %v385 = vsub.f32 %v383, %v384
    %v386 = vand.u32 %v385, 4294901760
    %387 = vmatpush1.msra.mxu0 %v386
    %388 = vmatprep.subr.mxu0 0.0
    %v389 = vand.u32 %v122, 4294901760
    %v390 = vsub.f32 %v122, %v389
    %v391 = vand.u32 %v390, 4294901760
    %v392 = vsub.f32 %v390, %v391
    %v393 = vand.u32 %v392, 4294901760
    %394 = vmatpush1.msra.mxu0 %v393
    %395 = vmatprep.subr.mxu0 0.0
    %v396 = vand.u32 %v121, 4294901760
    %v397 = vsub.f32 %v121, %v396
    %v398 = vand.u32 %v397, 4294901760
    %v399 = vsub.f32 %v397, %v398
    %v400 = vand.u32 %v399, 4294901760
    %401 = vmatpush1.msra.mxu0 %v400
    %402 = vmatprep.subr.mxu0 0.0
    %v403 = vand.u32 %v120, 4294901760
    %v404 = vsub.f32 %v120, %v403
    %v405 = vand.u32 %v404, 4294901760
    %v406 = vsub.f32 %v404, %v405
    %v407 = vand.u32 %v406, 4294901760
    %408 = vmatpush1.msra.mxu0 %v407
    %409 = vmatprep.subr.mxu0 0.0
    %v410 = vand.u32 %v119, 4294901760
    %v411 = vsub.f32 %v119, %v410
    %v412 = vand.u32 %v411, 4294901760
    %v413 = vsub.f32 %v411, %v412
    %v414 = vand.u32 %v413, 4294901760
    %415 = vmatpush1.msra.mxu0 %v414
    %416 = vmatprep.subr.mxu0 0.0
    %v417 = vand.u32 %v118, 4294901760
    %v418 = vsub.f32 %v118, %v417
    %v419 = vand.u32 %v418, 4294901760
    %v420 = vsub.f32 %v418, %v419
    %v421 = vand.u32 %v420, 4294901760
    %422 = vmatpush1.msra.mxu0 %v421
    %423 = vmatprep.subr.mxu0 0.0
    %v424 = vand.u32 %v117, 4294901760
    %v425 = vsub.f32 %v117, %v424
    %v426 = vand.u32 %v425, 4294901760
    %v427 = vsub.f32 %v425, %v426
    %v428 = vand.u32 %v427, 4294901760
    %429 = vmatpush1.msra.mxu0 %v428
    %430 = vmatprep.subr.mxu0 0.0
    %v431 = vand.u32 %v116, 4294901760
    %v432 = vsub.f32 %v116, %v431
    %v433 = vand.u32 %v432, 4294901760
    %v434 = vsub.f32 %v432, %v433
    %v435 = vand.u32 %v434, 4294901760
    %436 = vmatpush1.msra.mxu0 %v435
    %437 = vmatprep.subr.mxu0 0.0
    %v438 = vand.u32 %v115, 4294901760
    %v439 = vsub.f32 %v115, %v438
    %v440 = vand.u32 %v439, 4294901760
    %v441 = vsub.f32 %v439, %v440
    %v442 = vand.u32 %v441, 4294901760
    %443 = vmatpush1.msra.mxu0 %v442
    %444 = vmatprep.subr.mxu0 0.0
    %v445 = vand.u32 %v114, 4294901760
    %v446 = vsub.f32 %v114, %v445
    %v447 = vand.u32 %v446, 4294901760
    %v448 = vsub.f32 %v446, %v447
    %v449 = vand.u32 %v448, 4294901760
    %450 = vmatpush1.msra.mxu0 %v449
    %451 = vmatprep.subr.mxu0 0.0
    %v452 = vand.u32 %v113, 4294901760
    %v453 = vsub.f32 %v113, %v452
    %v454 = vand.u32 %v453, 4294901760
    %v455 = vsub.f32 %v453, %v454
    %v456 = vand.u32 %v455, 4294901760
    %457 = vmatpush1.msra.mxu0 %v456
    %458 = vmatprep.subr.mxu0 0.0
    %v459 = vand.u32 %v112, 4294901760
    %v460 = vsub.f32 %v112, %v459
    %v461 = vand.u32 %v460, 4294901760
    %v462 = vsub.f32 %v460, %v461
    %v463 = vand.u32 %v462, 4294901760
    %464 = vmatpush1.msra.mxu0 %v463
    %465 = vmatprep.subr.mxu0 0.0
    %v466 = vand.u32 %v111, 4294901760
    %v467 = vsub.f32 %v111, %v466
    %v468 = vand.u32 %v467, 4294901760
    %v469 = vsub.f32 %v467, %v468
    %v470 = vand.u32 %v469, 4294901760
    %471 = vmatpush1.msra.mxu0 %v470
    %472 = vmatprep.subr.mxu0 0.0
    %v473 = vand.u32 %v110, 4294901760
    %v474 = vsub.f32 %v110, %v473
    %v475 = vand.u32 %v474, 4294901760
    %v476 = vsub.f32 %v474, %v475
    %v477 = vand.u32 %v476, 4294901760
    %478 = vmatpush1.msra.mxu0 %v477
    %479 = vmatprep.subr.mxu0 0.0
    %480 = vmatpush2.msra.mxu0 0.0
    %481 = vmatprep.subr.mxu0 0.0
    %482 = vmatpush2.msra.mxu0 0.0
    %483 = vmatprep.subr.mxu0 0.0
    %484 = vmatpush2.msra.mxu0 0.0
    %485 = vmatprep.subr.mxu0 0.0
    %486 = vmatpush2.msra.mxu0 0.0
    %487 = vmatprep.subr.mxu0 0.0
    %488 = vmatpush2.msra.mxu0 0.0
    %489 = vmatprep.subr.mxu0 0.0
    %490 = vmatpush2.msra.mxu0 0.0
    %491 = vmatprep.subr.mxu0 0.0
    %492 = vmatpush2.msra.mxu0 0.0
    %493 = vmatprep.subr.mxu0 0.0
    %494 = vmatpush2.msra.mxu0 0.0
    %495 = vmatprep.subr.mxu0 0.0
    %496 = vmatpush2.msra.mxu0 0.0
    %497 = vmatprep.subr.mxu0 0.0
    %498 = vmatpush2.msra.mxu0 0.0
    %499 = vmatprep.subr.mxu0 0.0
    %500 = vmatpush2.msra.mxu0 0.0
    %501 = vmatprep.subr.mxu0 0.0
    %502 = vmatpush2.msra.mxu0 0.0
    %503 = vmatprep.subr.mxu0 0.0
    %504 = vmatpush2.msra.mxu0 0.0
    %505 = vmatprep.subr.mxu0 0.0
    %506 = vmatpush2.msra.mxu0 0.0
    %507 = vmatprep.subr.mxu0 0.0
    %508 = vmatpush2.msra.mxu0 0.0
    %509 = vmatprep.subr.mxu0 0.0
    %510 = vmatpush2.msra.mxu0 0.0
    %511 = vmatprep.mubr.f32.mxu0 0.0
    %v512 = vand.u32 %v63, 4294901760
    %513 = vmatmul.mubr.f32.gmra.mxu0 %v512
    %v514 = vpop.f32.mrf.mxu0
    %v515 = vadd.f32 %v214, %v514
    %v516 = vpop.f32.mrf.mxu0
    %517 = vmatprep.mubr.f32.mxu0 0.0
    %v518 = vand.u32 %v65, 4294901760
    %519 = vmatmul.mubr.f32.gmra.mxu0 %v518
    %v520 = vpop.f32.mrf.mxu0
    %v521 = vadd.f32 %v224, %v520
    %v522 = vpop.f32.mrf.mxu0
    %523 = vmatprep.mubr.f32.mxu0 0.0
    %v524 = vand.u32 %v67, 4294901760
    %525 = vmatmul.mubr.f32.gmra.mxu0 %v524
    %v526 = vpop.f32.mrf.mxu0
    %v527 = vadd.f32 %v234, %v526
    %v528 = vpop.f32.mrf.mxu0
    %529 = vmatprep.mubr.f32.mxu0 0.0
    %v530 = vand.u32 %v69, 4294901760
    %531 = vmatmul.mubr.f32.gmra.mxu0 %v530
    %v532 = vpop.f32.mrf.mxu0
    %v533 = vadd.f32 %v244, %v532
    %v534 = vpop.f32.mrf.mxu0
    %535 = vmatprep.mubr.f32.mxu0 0.0
    %v536 = vand.u32 %v71, 4294901760
    %537 = vmatmul.mubr.f32.gmra.mxu0 %v536
    %v538 = vpop.f32.mrf.mxu0
    %v539 = vadd.f32 %v254, %v538
    %v540 = vpop.f32.mrf.mxu0
    %541 = vmatprep.mubr.f32.mxu0 0.0
    %v542 = vand.u32 %v73, 4294901760
    %543 = vmatmul.mubr.f32.gmra.mxu0 %v542
    %v544 = vpop.f32.mrf.mxu0
    %v545 = vadd.f32 %v264, %v544
    %v546 = vpop.f32.mrf.mxu0
    %547 = vmatprep.mubr.f32.mxu0 0.0
    %v548 = vand.u32 %v75, 4294901760
    %549 = vmatmul.mubr.f32.gmra.mxu0 %v548
    %v550 = vpop.f32.mrf.mxu0
    %v551 = vadd.f32 %v274, %v550
    %v552 = vpop.f32.mrf.mxu0
    %553 = vmatprep.mubr.f32.mxu0 0.0
    %v554 = vand.u32 %v77, 4294901760
    %555 = vmatmul.mubr.f32.gmra.mxu0 %v554
    %v556 = vpop.f32.mrf.mxu0
    %v557 = vadd.f32 %v284, %v556
    %v558 = vpop.f32.mrf.mxu0
    %559 = vmatprep.mubr.f32.mxu0 0.0
    %v560 = vand.u32 %v79, 4294901760
    %561 = vmatmul.mubr.f32.gmra.mxu0 %v560
    %v562 = vpop.f32.mrf.mxu0
    %v563 = vadd.f32 %v294, %v562
    %v564 = vpop.f32.mrf.mxu0
    %565 = vmatprep.mubr.f32.mxu0 0.0
    %v566 = vand.u32 %v81, 4294901760
    %567 = vmatmul.mubr.f32.gmra.mxu0 %v566
    %v568 = vpop.f32.mrf.mxu0
    %v569 = vadd.f32 %v304, %v568
    %v570 = vpop.f32.mrf.mxu0
    %571 = vmatprep.mubr.f32.mxu0 0.0
    %v572 = vand.u32 %v83, 4294901760
    %573 = vmatmul.mubr.f32.gmra.mxu0 %v572
    %v574 = vpop.f32.mrf.mxu0
    %v575 = vadd.f32 %v314, %v574
    %v576 = vpop.f32.mrf.mxu0
    %577 = vmatprep.mubr.f32.mxu0 0.0
    %v578 = vand.u32 %v85, 4294901760
    %579 = vmatmul.mubr.f32.gmra.mxu0 %v578
    %v580 = vpop.f32.mrf.mxu0
    %v581 = vadd.f32 %v324, %v580
    %v582 = vpop.f32.mrf.mxu0
    %583 = vmatprep.mubr.f32.mxu0 0.0
    %v584 = vand.u32 %v87, 4294901760
    %585 = vmatmul.mubr.f32.gmra.mxu0 %v584
    %v586 = vpop.f32.mrf.mxu0
    %v587 = vadd.f32 %v334, %v586
    %v588 = vpop.f32.mrf.mxu0
    %589 = vmatprep.mubr.f32.mxu0 0.0
    %v590 = vand.u32 %v89, 4294901760
    %591 = vmatmul.mubr.f32.gmra.mxu0 %v590
    %v592 = vpop.f32.mrf.mxu0
    %v593 = vadd.f32 %v344, %v592
    %v594 = vpop.f32.mrf.mxu0
    %595 = vmatprep.mubr.f32.mxu0 0.0
    %v596 = vand.u32 %v91, 4294901760
    %597 = vmatmul.mubr.f32.gmra.mxu0 %v596
    %v598 = vpop.f32.mrf.mxu0
    %v599 = vadd.f32 %v354, %v598
    %v600 = vpop.f32.mrf.mxu0
    %601 = vmatprep.mubr.f32.mxu0 0.0
    %v602 = vand.u32 %v93, 4294901760
    %603 = vmatmul.mubr.f32.gmra.mxu0 %v602
    %v604 = vpop.f32.mrf.mxu0
    %v605 = vadd.f32 %v364, %v604
    %v606 = vpop.f32.mrf.mxu0
    %607 = vdwg.mxu0
    %608 = vmatprep.subr.mxu0 0.0
    %v609 = vand.u32 %v125, 4294901760
    %v610 = vsub.f32 %v125, %v609
    %611 = vmatpush1.msra.mxu0 %v610
    %612 = vmatprep.subr.mxu0 0.0
    %v613 = vand.u32 %v124, 4294901760
    %v614 = vsub.f32 %v124, %v613
    %615 = vmatpush1.msra.mxu0 %v614
    %616 = vmatprep.subr.mxu0 0.0
    %v617 = vand.u32 %v123, 4294901760
    %v618 = vsub.f32 %v123, %v617
    %619 = vmatpush1.msra.mxu0 %v618
    %620 = vmatprep.subr.mxu0 0.0
    %v621 = vand.u32 %v122, 4294901760
    %v622 = vsub.f32 %v122, %v621
    %623 = vmatpush1.msra.mxu0 %v622
    %624 = vmatprep.subr.mxu0 0.0
    %v625 = vand.u32 %v121, 4294901760
    %v626 = vsub.f32 %v121, %v625
    %627 = vmatpush1.msra.mxu0 %v626
    %628 = vmatprep.subr.mxu0 0.0
    %v629 = vand.u32 %v120, 4294901760
    %v630 = vsub.f32 %v120, %v629
    %631 = vmatpush1.msra.mxu0 %v630
    %632 = vmatprep.subr.mxu0 0.0
    %v633 = vand.u32 %v119, 4294901760
    %v634 = vsub.f32 %v119, %v633
    %635 = vmatpush1.msra.mxu0 %v634
    %636 = vmatprep.subr.mxu0 0.0
    %v637 = vand.u32 %v118, 4294901760
    %v638 = vsub.f32 %v118, %v637
    %639 = vmatpush1.msra.mxu0 %v638
    %640 = vmatprep.subr.mxu0 0.0
    %v641 = vand.u32 %v117, 4294901760
    %v642 = vsub.f32 %v117, %v641
    %643 = vmatpush1.msra.mxu0 %v642
    %644 = vmatprep.subr.mxu0 0.0
    %v645 = vand.u32 %v116, 4294901760
    %v646 = vsub.f32 %v116, %v645
    %647 = vmatpush1.msra.mxu0 %v646
    %648 = vmatprep.subr.mxu0 0.0
    %v649 = vand.u32 %v115, 4294901760
    %v650 = vsub.f32 %v115, %v649
    %651 = vmatpush1.msra.mxu0 %v650
    %652 = vmatprep.subr.mxu0 0.0
    %v653 = vand.u32 %v114, 4294901760
    %v654 = vsub.f32 %v114, %v653
    %655 = vmatpush1.msra.mxu0 %v654
    %656 = vmatprep.subr.mxu0 0.0
    %v657 = vand.u32 %v113, 4294901760
    %v658 = vsub.f32 %v113, %v657
    %659 = vmatpush1.msra.mxu0 %v658
    %660 = vmatprep.subr.mxu0 0.0
    %v661 = vand.u32 %v112, 4294901760
    %v662 = vsub.f32 %v112, %v661
    %663 = vmatpush1.msra.mxu0 %v662
    %664 = vmatprep.subr.mxu0 0.0
    %v665 = vand.u32 %v111, 4294901760
    %v666 = vsub.f32 %v111, %v665
    %667 = vmatpush1.msra.mxu0 %v666
    %668 = vmatprep.subr.mxu0 0.0
    %v669 = vand.u32 %v110, 4294901760
    %v670 = vsub.f32 %v110, %v669
    %671 = vmatpush1.msra.mxu0 %v670
    %672 = vmatprep.subr.mxu0 0.0
    %673 = vmatpush2.msra.mxu0 0.0
    %674 = vmatprep.subr.mxu0 0.0
    %675 = vmatpush2.msra.mxu0 0.0
    %676 = vmatprep.subr.mxu0 0.0
    %677 = vmatpush2.msra.mxu0 0.0
    %678 = vmatprep.subr.mxu0 0.0
    %679 = vmatpush2.msra.mxu0 0.0
    %680 = vmatprep.subr.mxu0 0.0
    %681 = vmatpush2.msra.mxu0 0.0
    %682 = vmatprep.subr.mxu0 0.0
    %683 = vmatpush2.msra.mxu0 0.0
    %684 = vmatprep.subr.mxu0 0.0
    %685 = vmatpush2.msra.mxu0 0.0
    %686 = vmatprep.subr.mxu0 0.0
    %687 = vmatpush2.msra.mxu0 0.0
    %688 = vmatprep.subr.mxu0 0.0
    %689 = vmatpush2.msra.mxu0 0.0
    %690 = vmatprep.subr.mxu0 0.0
    %691 = vmatpush2.msra.mxu0 0.0
    %692 = vmatprep.subr.mxu0 0.0
    %693 = vmatpush2.msra.mxu0 0.0
    %694 = vmatprep.subr.mxu0 0.0
    %695 = vmatpush2.msra.mxu0 0.0
    %696 = vmatprep.subr.mxu0 0.0
    %697 = vmatpush2.msra.mxu0 0.0
    %698 = vmatprep.subr.mxu0 0.0
    %699 = vmatpush2.msra.mxu0 0.0
    %700 = vmatprep.subr.mxu0 0.0
    %701 = vmatpush2.msra.mxu0 0.0
    %702 = vmatprep.subr.mxu0 0.0
    %703 = vmatpush2.msra.mxu0 0.0
    %704 = vmatprep.mubr.f32.mxu0 0.0
    %v705 = vand.u32 %v63, 4294901760
    %v706 = vsub.f32 %v63, %v705
    %707 = vmatmul.mubr.f32.gmra.mxu0 %v706
    %v708 = vpop.f32.mrf.mxu0
    %v709 = vadd.f32 %v515, %v708
    %v710 = vpop.f32.mrf.mxu0
    %711 = vmatprep.mubr.f32.mxu0 0.0
    %v712 = vand.u32 %v65, 4294901760
    %v713 = vsub.f32 %v65, %v712
    %714 = vmatmul.mubr.f32.gmra.mxu0 %v713
    %v715 = vpop.f32.mrf.mxu0
    %v716 = vadd.f32 %v521, %v715
    %v717 = vpop.f32.mrf.mxu0
    %718 = vmatprep.mubr.f32.mxu0 0.0
    %v719 = vand.u32 %v67, 4294901760
    %v720 = vsub.f32 %v67, %v719
    %721 = vmatmul.mubr.f32.gmra.mxu0 %v720
    %v722 = vpop.f32.mrf.mxu0
    %v723 = vadd.f32 %v527, %v722
    %v724 = vpop.f32.mrf.mxu0
    %725 = vmatprep.mubr.f32.mxu0 0.0
    %v726 = vand.u32 %v69, 4294901760
    %v727 = vsub.f32 %v69, %v726
    %728 = vmatmul.mubr.f32.gmra.mxu0 %v727
    %v729 = vpop.f32.mrf.mxu0
    %v730 = vadd.f32 %v533, %v729
    %v731 = vpop.f32.mrf.mxu0
    %732 = vmatprep.mubr.f32.mxu0 0.0
    %v733 = vand.u32 %v71, 4294901760
    %v734 = vsub.f32 %v71, %v733
    %735 = vmatmul.mubr.f32.gmra.mxu0 %v734
    %v736 = vpop.f32.mrf.mxu0
    %v737 = vadd.f32 %v539, %v736
    %v738 = vpop.f32.mrf.mxu0
    %739 = vmatprep.mubr.f32.mxu0 0.0
    %v740 = vand.u32 %v73, 4294901760
    %v741 = vsub.f32 %v73, %v740
    %742 = vmatmul.mubr.f32.gmra.mxu0 %v741
    %v743 = vpop.f32.mrf.mxu0
    %v744 = vadd.f32 %v545, %v743
    %v745 = vpop.f32.mrf.mxu0
    %746 = vmatprep.mubr.f32.mxu0 0.0
    %v747 = vand.u32 %v75, 4294901760
    %v748 = vsub.f32 %v75, %v747
    %749 = vmatmul.mubr.f32.gmra.mxu0 %v748
    %v750 = vpop.f32.mrf.mxu0
    %v751 = vadd.f32 %v551, %v750
    %v752 = vpop.f32.mrf.mxu0
    %753 = vmatprep.mubr.f32.mxu0 0.0
    %v754 = vand.u32 %v77, 4294901760
    %v755 = vsub.f32 %v77, %v754
    %756 = vmatmul.mubr.f32.gmra.mxu0 %v755
    %v757 = vpop.f32.mrf.mxu0
    %v758 = vadd.f32 %v557, %v757
    %v759 = vpop.f32.mrf.mxu0
    %760 = vmatprep.mubr.f32.mxu0 0.0
    %v761 = vand.u32 %v79, 4294901760
    %v762 = vsub.f32 %v79, %v761
    %763 = vmatmul.mubr.f32.gmra.mxu0 %v762
    %v764 = vpop.f32.mrf.mxu0
    %v765 = vadd.f32 %v563, %v764
    %v766 = vpop.f32.mrf.mxu0
    %767 = vmatprep.mubr.f32.mxu0 0.0
    %v768 = vand.u32 %v81, 4294901760
    %v769 = vsub.f32 %v81, %v768
    %770 = vmatmul.mubr.f32.gmra.mxu0 %v769
    %v771 = vpop.f32.mrf.mxu0
    %v772 = vadd.f32 %v569, %v771
    %v773 = vpop.f32.mrf.mxu0
    %774 = vmatprep.mubr.f32.mxu0 0.0
    %v775 = vand.u32 %v83, 4294901760
    %v776 = vsub.f32 %v83, %v775
    %777 = vmatmul.mubr.f32.gmra.mxu0 %v776
    %v778 = vpop.f32.mrf.mxu0
    %v779 = vadd.f32 %v575, %v778
    %v780 = vpop.f32.mrf.mxu0
    %781 = vmatprep.mubr.f32.mxu0 0.0
    %v782 = vand.u32 %v85, 4294901760
    %v783 = vsub.f32 %v85, %v782
    %784 = vmatmul.mubr.f32.gmra.mxu0 %v783
    %v785 = vpop.f32.mrf.mxu0
    %v786 = vadd.f32 %v581, %v785
    %v787 = vpop.f32.mrf.mxu0
    %788 = vmatprep.mubr.f32.mxu0 0.0
    %v789 = vand.u32 %v87, 4294901760
    %v790 = vsub.f32 %v87, %v789
    %791 = vmatmul.mubr.f32.gmra.mxu0 %v790
    %v792 = vpop.f32.mrf.mxu0
    %v793 = vadd.f32 %v587, %v792
    %v794 = vpop.f32.mrf.mxu0
    %795 = vmatprep.mubr.f32.mxu0 0.0
    %v796 = vand.u32 %v89, 4294901760
    %v797 = vsub.f32 %v89, %v796
    %798 = vmatmul.mubr.f32.gmra.mxu0 %v797
    %v799 = vpop.f32.mrf.mxu0
    %v800 = vadd.f32 %v593, %v799
    %v801 = vpop.f32.mrf.mxu0
    %802 = vmatprep.mubr.f32.mxu0 0.0
    %v803 = vand.u32 %v91, 4294901760
    %v804 = vsub.f32 %v91, %v803
    %805 = vmatmul.mubr.f32.gmra.mxu0 %v804
    %v806 = vpop.f32.mrf.mxu0
    %v807 = vadd.f32 %v599, %v806
    %v808 = vpop.f32.mrf.mxu0
    %809 = vmatprep.mubr.f32.mxu0 0.0
    %v810 = vand.u32 %v93, 4294901760
    %v811 = vsub.f32 %v93, %v810
    %812 = vmatmul.mubr.f32.gmra.mxu0 %v811
    %v813 = vpop.f32.mrf.mxu0
    %v814 = vadd.f32 %v605, %v813
    %v815 = vpop.f32.mrf.mxu0
    %816 = vdwg.mxu0
    %817 = vmatprep.subr.mxu0 0.0
    %v818 = vand.u32 %v125, 4294901760
    %819 = vmatpush1.msra.mxu0 %v818
    %820 = vmatprep.subr.mxu0 0.0
    %v821 = vand.u32 %v124, 4294901760
    %822 = vmatpush1.msra.mxu0 %v821
    %823 = vmatprep.subr.mxu0 0.0
    %v824 = vand.u32 %v123, 4294901760
    %825 = vmatpush1.msra.mxu0 %v824
    %826 = vmatprep.subr.mxu0 0.0
    %v827 = vand.u32 %v122, 4294901760
    %828 = vmatpush1.msra.mxu0 %v827
    %829 = vmatprep.subr.mxu0 0.0
    %v830 = vand.u32 %v121, 4294901760
    %831 = vmatpush1.msra.mxu0 %v830
    %832 = vmatprep.subr.mxu0 0.0
    %v833 = vand.u32 %v120, 4294901760
    %834 = vmatpush1.msra.mxu0 %v833
    %835 = vmatprep.subr.mxu0 0.0
    %v836 = vand.u32 %v119, 4294901760
    %837 = vmatpush1.msra.mxu0 %v836
    %838 = vmatprep.subr.mxu0 0.0
    %v839 = vand.u32 %v118, 4294901760
    %840 = vmatpush1.msra.mxu0 %v839
    %841 = vmatprep.subr.mxu0 0.0
    %v842 = vand.u32 %v117, 4294901760
    %843 = vmatpush1.msra.mxu0 %v842
    %844 = vmatprep.subr.mxu0 0.0
    %v845 = vand.u32 %v116, 4294901760
    %846 = vmatpush1.msra.mxu0 %v845
    %847 = vmatprep.subr.mxu0 0.0
    %v848 = vand.u32 %v115, 4294901760
    %849 = vmatpush1.msra.mxu0 %v848
    %850 = vmatprep.subr.mxu0 0.0
    %v851 = vand.u32 %v114, 4294901760
    %852 = vmatpush1.msra.mxu0 %v851
    %853 = vmatprep.subr.mxu0 0.0
    %v854 = vand.u32 %v113, 4294901760
    %855 = vmatpush1.msra.mxu0 %v854
    %856 = vmatprep.subr.mxu0 0.0
    %v857 = vand.u32 %v112, 4294901760
    %858 = vmatpush1.msra.mxu0 %v857
    %859 = vmatprep.subr.mxu0 0.0
    %v860 = vand.u32 %v111, 4294901760
    %861 = vmatpush1.msra.mxu0 %v860
    %862 = vmatprep.subr.mxu0 0.0
    %v863 = vand.u32 %v110, 4294901760
    %864 = vmatpush1.msra.mxu0 %v863
    %865 = vmatprep.subr.mxu0 0.0
    %866 = vmatpush2.msra.mxu0 0.0
    %867 = vmatprep.subr.mxu0 0.0
    %868 = vmatpush2.msra.mxu0 0.0
    %869 = vmatprep.subr.mxu0 0.0
    %870 = vmatpush2.msra.mxu0 0.0
    %871 = vmatprep.subr.mxu0 0.0
    %872 = vmatpush2.msra.mxu0 0.0
    %873 = vmatprep.subr.mxu0 0.0
    %874 = vmatpush2.msra.mxu0 0.0
    %875 = vmatprep.subr.mxu0 0.0
    %876 = vmatpush2.msra.mxu0 0.0
    %877 = vmatprep.subr.mxu0 0.0
    %878 = vmatpush2.msra.mxu0 0.0
    %879 = vmatprep.subr.mxu0 0.0
    %880 = vmatpush2.msra.mxu0 0.0
    %881 = vmatprep.subr.mxu0 0.0
    %882 = vmatpush2.msra.mxu0 0.0
    %883 = vmatprep.subr.mxu0 0.0
    %884 = vmatpush2.msra.mxu0 0.0
    %885 = vmatprep.subr.mxu0 0.0
    %886 = vmatpush2.msra.mxu0 0.0
    %887 = vmatprep.subr.mxu0 0.0
    %888 = vmatpush2.msra.mxu0 0.0
    %889 = vmatprep.subr.mxu0 0.0
    %890 = vmatpush2.msra.mxu0 0.0
    %891 = vmatprep.subr.mxu0 0.0
    %892 = vmatpush2.msra.mxu0 0.0
    %893 = vmatprep.subr.mxu0 0.0
    %894 = vmatpush2.msra.mxu0 0.0
    %895 = vmatprep.subr.mxu0 0.0
    %896 = vmatpush2.msra.mxu0 0.0
    %897 = vmatprep.mubr.f32.mxu0 0.0
    %v898 = vand.u32 %v63, 4294901760
    %v899 = vsub.f32 %v63, %v898
    %v900 = vand.u32 %v899, 4294901760
    %901 = vmatmul.mubr.f32.gmra.mxu0 %v900
    %v902 = vpop.f32.mrf.mxu0
    %v903 = vadd.f32 %v709, %v902
    %v904 = vpop.f32.mrf.mxu0
    %905 = vmatprep.mubr.f32.mxu0 0.0
    %v906 = vand.u32 %v65, 4294901760
    %v907 = vsub.f32 %v65, %v906
    %v908 = vand.u32 %v907, 4294901760
    %909 = vmatmul.mubr.f32.gmra.mxu0 %v908
    %v910 = vpop.f32.mrf.mxu0
    %v911 = vadd.f32 %v716, %v910
    %v912 = vpop.f32.mrf.mxu0
    %913 = vmatprep.mubr.f32.mxu0 0.0
    %v914 = vand.u32 %v67, 4294901760
    %v915 = vsub.f32 %v67, %v914
    %v916 = vand.u32 %v915, 4294901760
    %917 = vmatmul.mubr.f32.gmra.mxu0 %v916
    %v918 = vpop.f32.mrf.mxu0
    %v919 = vadd.f32 %v723, %v918
    %v920 = vpop.f32.mrf.mxu0
    %921 = vmatprep.mubr.f32.mxu0 0.0
    %v922 = vand.u32 %v69, 4294901760
    %v923 = vsub.f32 %v69, %v922
    %v924 = vand.u32 %v923, 4294901760
    %925 = vmatmul.mubr.f32.gmra.mxu0 %v924
    %v926 = vpop.f32.mrf.mxu0
    %v927 = vadd.f32 %v730, %v926
    %v928 = vpop.f32.mrf.mxu0
    %929 = vmatprep.mubr.f32.mxu0 0.0
    %v930 = vand.u32 %v71, 4294901760
    %v931 = vsub.f32 %v71, %v930
    %v932 = vand.u32 %v931, 4294901760
    %933 = vmatmul.mubr.f32.gmra.mxu0 %v932
    %v934 = vpop.f32.mrf.mxu0
    %v935 = vadd.f32 %v737, %v934
    %v936 = vpop.f32.mrf.mxu0
    %937 = vmatprep.mubr.f32.mxu0 0.0
    %v938 = vand.u32 %v73, 4294901760
    %v939 = vsub.f32 %v73, %v938
    %v940 = vand.u32 %v939, 4294901760
    %941 = vmatmul.mubr.f32.gmra.mxu0 %v940
    %v942 = vpop.f32.mrf.mxu0
    %v943 = vadd.f32 %v744, %v942
    %v944 = vpop.f32.mrf.mxu0
    %945 = vmatprep.mubr.f32.mxu0 0.0
    %v946 = vand.u32 %v75, 4294901760
    %v947 = vsub.f32 %v75, %v946
    %v948 = vand.u32 %v947, 4294901760
    %949 = vmatmul.mubr.f32.gmra.mxu0 %v948
    %v950 = vpop.f32.mrf.mxu0
    %v951 = vadd.f32 %v751, %v950
    %v952 = vpop.f32.mrf.mxu0
    %953 = vmatprep.mubr.f32.mxu0 0.0
    %v954 = vand.u32 %v77, 4294901760
    %v955 = vsub.f32 %v77, %v954
    %v956 = vand.u32 %v955, 4294901760
    %957 = vmatmul.mubr.f32.gmra.mxu0 %v956
    %v958 = vpop.f32.mrf.mxu0
    %v959 = vadd.f32 %v758, %v958
    %v960 = vpop.f32.mrf.mxu0
    %961 = vmatprep.mubr.f32.mxu0 0.0
    %v962 = vand.u32 %v79, 4294901760
    %v963 = vsub.f32 %v79, %v962
    %v964 = vand.u32 %v963, 4294901760
    %965 = vmatmul.mubr.f32.gmra.mxu0 %v964
    %v966 = vpop.f32.mrf.mxu0
    %v967 = vadd.f32 %v765, %v966
    %v968 = vpop.f32.mrf.mxu0
    %969 = vmatprep.mubr.f32.mxu0 0.0
    %v970 = vand.u32 %v81, 4294901760
    %v971 = vsub.f32 %v81, %v970
    %v972 = vand.u32 %v971, 4294901760
    %973 = vmatmul.mubr.f32.gmra.mxu0 %v972
    %v974 = vpop.f32.mrf.mxu0
    %v975 = vadd.f32 %v772, %v974
    %v976 = vpop.f32.mrf.mxu0
    %977 = vmatprep.mubr.f32.mxu0 0.0
    %v978 = vand.u32 %v83, 4294901760
    %v979 = vsub.f32 %v83, %v978
    %v980 = vand.u32 %v979, 4294901760
    %981 = vmatmul.mubr.f32.gmra.mxu0 %v980
    %v982 = vpop.f32.mrf.mxu0
    %v983 = vadd.f32 %v779, %v982
    %v984 = vpop.f32.mrf.mxu0
    %985 = vmatprep.mubr.f32.mxu0 0.0
    %v986 = vand.u32 %v85, 4294901760
    %v987 = vsub.f32 %v85, %v986
    %v988 = vand.u32 %v987, 4294901760
    %989 = vmatmul.mubr.f32.gmra.mxu0 %v988
    %v990 = vpop.f32.mrf.mxu0
    %v991 = vadd.f32 %v786, %v990
    %v992 = vpop.f32.mrf.mxu0
    %993 = vmatprep.mubr.f32.mxu0 0.0
    %v994 = vand.u32 %v87, 4294901760
    %v995 = vsub.f32 %v87, %v994
    %v996 = vand.u32 %v995, 4294901760
    %997 = vmatmul.mubr.f32.gmra.mxu0 %v996
    %v998 = vpop.f32.mrf.mxu0
    %v999 = vadd.f32 %v793, %v998
    %v1000 = vpop.f32.mrf.mxu0
    %1001 = vmatprep.mubr.f32.mxu0 0.0
    %v1002 = vand.u32 %v89, 4294901760
    %v1003 = vsub.f32 %v89, %v1002
    %v1004 = vand.u32 %v1003, 4294901760
    %1005 = vmatmul.mubr.f32.gmra.mxu0 %v1004
    %v1006 = vpop.f32.mrf.mxu0
    %v1007 = vadd.f32 %v800, %v1006
    %v1008 = vpop.f32.mrf.mxu0
    %1009 = vmatprep.mubr.f32.mxu0 0.0
    %v1010 = vand.u32 %v91, 4294901760
    %v1011 = vsub.f32 %v91, %v1010
    %v1012 = vand.u32 %v1011, 4294901760
    %1013 = vmatmul.mubr.f32.gmra.mxu0 %v1012
    %v1014 = vpop.f32.mrf.mxu0
    %v1015 = vadd.f32 %v807, %v1014
    %v1016 = vpop.f32.mrf.mxu0
    %1017 = vmatprep.mubr.f32.mxu0 0.0
    %v1018 = vand.u32 %v93, 4294901760
    %v1019 = vsub.f32 %v93, %v1018
    %v1020 = vand.u32 %v1019, 4294901760
    %1021 = vmatmul.mubr.f32.gmra.mxu0 %v1020
    %v1022 = vpop.f32.mrf.mxu0
    %v1023 = vadd.f32 %v814, %v1022
    %v1024 = vpop.f32.mrf.mxu0
    %1025 = vdwg.mxu0
    %1026 = vmatprep.subr.mxu0 0.0
    %v1027 = vand.u32 %v125, 4294901760
    %v1028 = vsub.f32 %v125, %v1027
    %v1029 = vand.u32 %v1028, 4294901760
    %1030 = vmatpush1.msra.mxu0 %v1029
    %1031 = vmatprep.subr.mxu0 0.0
    %v1032 = vand.u32 %v124, 4294901760
    %v1033 = vsub.f32 %v124, %v1032
    %v1034 = vand.u32 %v1033, 4294901760
    %1035 = vmatpush1.msra.mxu0 %v1034
    %1036 = vmatprep.subr.mxu0 0.0
    %v1037 = vand.u32 %v123, 4294901760
    %v1038 = vsub.f32 %v123, %v1037
    %v1039 = vand.u32 %v1038, 4294901760
    %1040 = vmatpush1.msra.mxu0 %v1039
    %1041 = vmatprep.subr.mxu0 0.0
    %v1042 = vand.u32 %v122, 4294901760
    %v1043 = vsub.f32 %v122, %v1042
    %v1044 = vand.u32 %v1043, 4294901760
    %1045 = vmatpush1.msra.mxu0 %v1044
    %1046 = vmatprep.subr.mxu0 0.0
    %v1047 = vand.u32 %v121, 4294901760
    %v1048 = vsub.f32 %v121, %v1047
    %v1049 = vand.u32 %v1048, 4294901760
    %1050 = vmatpush1.msra.mxu0 %v1049
    %1051 = vmatprep.subr.mxu0 0.0
    %v1052 = vand.u32 %v120, 4294901760
    %v1053 = vsub.f32 %v120, %v1052
    %v1054 = vand.u32 %v1053, 4294901760
    %1055 = vmatpush1.msra.mxu0 %v1054
    %1056 = vmatprep.subr.mxu0 0.0
    %v1057 = vand.u32 %v119, 4294901760
    %v1058 = vsub.f32 %v119, %v1057
    %v1059 = vand.u32 %v1058, 4294901760
    %1060 = vmatpush1.msra.mxu0 %v1059
    %1061 = vmatprep.subr.mxu0 0.0
    %v1062 = vand.u32 %v118, 4294901760
    %v1063 = vsub.f32 %v118, %v1062
    %v1064 = vand.u32 %v1063, 4294901760
    %1065 = vmatpush1.msra.mxu0 %v1064
    %1066 = vmatprep.subr.mxu0 0.0
    %v1067 = vand.u32 %v117, 4294901760
    %v1068 = vsub.f32 %v117, %v1067
    %v1069 = vand.u32 %v1068, 4294901760
    %1070 = vmatpush1.msra.mxu0 %v1069
    %1071 = vmatprep.subr.mxu0 0.0
    %v1072 = vand.u32 %v116, 4294901760
    %v1073 = vsub.f32 %v116, %v1072
    %v1074 = vand.u32 %v1073, 4294901760
    %1075 = vmatpush1.msra.mxu0 %v1074
    %1076 = vmatprep.subr.mxu0 0.0
    %v1077 = vand.u32 %v115, 4294901760
    %v1078 = vsub.f32 %v115, %v1077
    %v1079 = vand.u32 %v1078, 4294901760
    %1080 = vmatpush1.msra.mxu0 %v1079
    %1081 = vmatprep.subr.mxu0 0.0
    %v1082 = vand.u32 %v114, 4294901760
    %v1083 = vsub.f32 %v114, %v1082
    %v1084 = vand.u32 %v1083, 4294901760
    %1085 = vmatpush1.msra.mxu0 %v1084
    %1086 = vmatprep.subr.mxu0 0.0
    %v1087 = vand.u32 %v113, 4294901760
    %v1088 = vsub.f32 %v113, %v1087
    %v1089 = vand.u32 %v1088, 4294901760
    %1090 = vmatpush1.msra.mxu0 %v1089
    %1091 = vmatprep.subr.mxu0 0.0
    %v1092 = vand.u32 %v112, 4294901760
    %v1093 = vsub.f32 %v112, %v1092
    %v1094 = vand.u32 %v1093, 4294901760
    %1095 = vmatpush1.msra.mxu0 %v1094
    %1096 = vmatprep.subr.mxu0 0.0
    %v1097 = vand.u32 %v111, 4294901760
    %v1098 = vsub.f32 %v111, %v1097
    %v1099 = vand.u32 %v1098, 4294901760
    %1100 = vmatpush1.msra.mxu0 %v1099
    %1101 = vmatprep.subr.mxu0 0.0
    %v1102 = vand.u32 %v110, 4294901760
    %v1103 = vsub.f32 %v110, %v1102
    %v1104 = vand.u32 %v1103, 4294901760
    %1105 = vmatpush1.msra.mxu0 %v1104
    %1106 = vmatprep.subr.mxu0 0.0
    %1107 = vmatpush2.msra.mxu0 0.0
    %1108 = vmatprep.subr.mxu0 0.0
    %1109 = vmatpush2.msra.mxu0 0.0
    %1110 = vmatprep.subr.mxu0 0.0
    %1111 = vmatpush2.msra.mxu0 0.0
    %1112 = vmatprep.subr.mxu0 0.0
    %1113 = vmatpush2.msra.mxu0 0.0
    %1114 = vmatprep.subr.mxu0 0.0
    %1115 = vmatpush2.msra.mxu0 0.0
    %1116 = vmatprep.subr.mxu0 0.0
    %1117 = vmatpush2.msra.mxu0 0.0
    %1118 = vmatprep.subr.mxu0 0.0
    %1119 = vmatpush2.msra.mxu0 0.0
    %1120 = vmatprep.subr.mxu0 0.0
    %1121 = vmatpush2.msra.mxu0 0.0
    %1122 = vmatprep.subr.mxu0 0.0
    %1123 = vmatpush2.msra.mxu0 0.0
    %1124 = vmatprep.subr.mxu0 0.0
    %1125 = vmatpush2.msra.mxu0 0.0
    %1126 = vmatprep.subr.mxu0 0.0
    %1127 = vmatpush2.msra.mxu0 0.0
    %1128 = vmatprep.subr.mxu0 0.0
    %1129 = vmatpush2.msra.mxu0 0.0
    %1130 = vmatprep.subr.mxu0 0.0
    %1131 = vmatpush2.msra.mxu0 0.0
    %1132 = vmatprep.subr.mxu0 0.0
    %1133 = vmatpush2.msra.mxu0 0.0
    %1134 = vmatprep.subr.mxu0 0.0
    %1135 = vmatpush2.msra.mxu0 0.0
    %1136 = vmatprep.subr.mxu0 0.0
    %1137 = vmatpush2.msra.mxu0 0.0
    %1138 = vmatprep.mubr.f32.mxu0 0.0
    %v1139 = vand.u32 %v63, 4294901760
    %1140 = vmatmul.mubr.f32.gmra.mxu0 %v1139
    %v1141 = vpop.f32.mrf.mxu0
    %v1142 = vadd.f32 %v903, %v1141
    %v1143 = vpop.f32.mrf.mxu0
    %1144 = vmatprep.mubr.f32.mxu0 0.0
    %v1145 = vand.u32 %v65, 4294901760
    %1146 = vmatmul.mubr.f32.gmra.mxu0 %v1145
    %v1147 = vpop.f32.mrf.mxu0
    %v1148 = vadd.f32 %v911, %v1147
    %v1149 = vpop.f32.mrf.mxu0
    %1150 = vmatprep.mubr.f32.mxu0 0.0
    %v1151 = vand.u32 %v67, 4294901760
    %1152 = vmatmul.mubr.f32.gmra.mxu0 %v1151
    %v1153 = vpop.f32.mrf.mxu0
    %v1154 = vadd.f32 %v919, %v1153
    %v1155 = vpop.f32.mrf.mxu0
    %1156 = vmatprep.mubr.f32.mxu0 0.0
    %v1157 = vand.u32 %v69, 4294901760
    %1158 = vmatmul.mubr.f32.gmra.mxu0 %v1157
    %v1159 = vpop.f32.mrf.mxu0
    %v1160 = vadd.f32 %v927, %v1159
    %v1161 = vpop.f32.mrf.mxu0
    %1162 = vmatprep.mubr.f32.mxu0 0.0
    %v1163 = vand.u32 %v71, 4294901760
    %1164 = vmatmul.mubr.f32.gmra.mxu0 %v1163
    %v1165 = vpop.f32.mrf.mxu0
    %v1166 = vadd.f32 %v935, %v1165
    %v1167 = vpop.f32.mrf.mxu0
    %1168 = vmatprep.mubr.f32.mxu0 0.0
    %v1169 = vand.u32 %v73, 4294901760
    %1170 = vmatmul.mubr.f32.gmra.mxu0 %v1169
    %v1171 = vpop.f32.mrf.mxu0
    %v1172 = vadd.f32 %v943, %v1171
    %v1173 = vpop.f32.mrf.mxu0
    %1174 = vmatprep.mubr.f32.mxu0 0.0
    %v1175 = vand.u32 %v75, 4294901760
    %1176 = vmatmul.mubr.f32.gmra.mxu0 %v1175
    %v1177 = vpop.f32.mrf.mxu0
    %v1178 = vadd.f32 %v951, %v1177
    %v1179 = vpop.f32.mrf.mxu0
    %1180 = vmatprep.mubr.f32.mxu0 0.0
    %v1181 = vand.u32 %v77, 4294901760
    %1182 = vmatmul.mubr.f32.gmra.mxu0 %v1181
    %v1183 = vpop.f32.mrf.mxu0
    %v1184 = vadd.f32 %v959, %v1183
    %v1185 = vpop.f32.mrf.mxu0
    %1186 = vmatprep.mubr.f32.mxu0 0.0
    %v1187 = vand.u32 %v79, 4294901760
    %1188 = vmatmul.mubr.f32.gmra.mxu0 %v1187
    %v1189 = vpop.f32.mrf.mxu0
    %v1190 = vadd.f32 %v967, %v1189
    %v1191 = vpop.f32.mrf.mxu0
    %1192 = vmatprep.mubr.f32.mxu0 0.0
    %v1193 = vand.u32 %v81, 4294901760
    %1194 = vmatmul.mubr.f32.gmra.mxu0 %v1193
    %v1195 = vpop.f32.mrf.mxu0
    %v1196 = vadd.f32 %v975, %v1195
    %v1197 = vpop.f32.mrf.mxu0
    %1198 = vmatprep.mubr.f32.mxu0 0.0
    %v1199 = vand.u32 %v83, 4294901760
    %1200 = vmatmul.mubr.f32.gmra.mxu0 %v1199
    %v1201 = vpop.f32.mrf.mxu0
    %v1202 = vadd.f32 %v983, %v1201
    %v1203 = vpop.f32.mrf.mxu0
    %1204 = vmatprep.mubr.f32.mxu0 0.0
    %v1205 = vand.u32 %v85, 4294901760
    %1206 = vmatmul.mubr.f32.gmra.mxu0 %v1205
    %v1207 = vpop.f32.mrf.mxu0
    %v1208 = vadd.f32 %v991, %v1207
    %v1209 = vpop.f32.mrf.mxu0
    %1210 = vmatprep.mubr.f32.mxu0 0.0
    %v1211 = vand.u32 %v87, 4294901760
    %1212 = vmatmul.mubr.f32.gmra.mxu0 %v1211
    %v1213 = vpop.f32.mrf.mxu0
    %v1214 = vadd.f32 %v999, %v1213
    %v1215 = vpop.f32.mrf.mxu0
    %1216 = vmatprep.mubr.f32.mxu0 0.0
    %v1217 = vand.u32 %v89, 4294901760
    %1218 = vmatmul.mubr.f32.gmra.mxu0 %v1217
    %v1219 = vpop.f32.mrf.mxu0
    %v1220 = vadd.f32 %v1007, %v1219
    %v1221 = vpop.f32.mrf.mxu0
    %1222 = vmatprep.mubr.f32.mxu0 0.0
    %v1223 = vand.u32 %v91, 4294901760
    %1224 = vmatmul.mubr.f32.gmra.mxu0 %v1223
    %v1225 = vpop.f32.mrf.mxu0
    %v1226 = vadd.f32 %v1015, %v1225
    %v1227 = vpop.f32.mrf.mxu0
    %1228 = vmatprep.mubr.f32.mxu0 0.0
    %v1229 = vand.u32 %v93, 4294901760
    %1230 = vmatmul.mubr.f32.gmra.mxu0 %v1229
    %v1231 = vpop.f32.mrf.mxu0
    %v1232 = vadd.f32 %v1023, %v1231
    %v1233 = vpop.f32.mrf.mxu0
    %1234 = vdwg.mxu0
    %1235 = vmatprep.subr.mxu0 0.0
    %v1236 = vand.u32 %v125, 4294901760
    %1237 = vmatpush1.msra.mxu0 %v1236
    %1238 = vmatprep.subr.mxu0 0.0
    %v1239 = vand.u32 %v124, 4294901760
    %1240 = vmatpush1.msra.mxu0 %v1239
    %1241 = vmatprep.subr.mxu0 0.0
    %v1242 = vand.u32 %v123, 4294901760
    %1243 = vmatpush1.msra.mxu0 %v1242
    %1244 = vmatprep.subr.mxu0 0.0
    %v1245 = vand.u32 %v122, 4294901760
    %1246 = vmatpush1.msra.mxu0 %v1245
    %1247 = vmatprep.subr.mxu0 0.0
    %v1248 = vand.u32 %v121, 4294901760
    %1249 = vmatpush1.msra.mxu0 %v1248
    %1250 = vmatprep.subr.mxu0 0.0
    %v1251 = vand.u32 %v120, 4294901760
    %1252 = vmatpush1.msra.mxu0 %v1251
    %1253 = vmatprep.subr.mxu0 0.0
    %v1254 = vand.u32 %v119, 4294901760
    %1255 = vmatpush1.msra.mxu0 %v1254
    %1256 = vmatprep.subr.mxu0 0.0
    %v1257 = vand.u32 %v118, 4294901760
    %1258 = vmatpush1.msra.mxu0 %v1257
    %1259 = vmatprep.subr.mxu0 0.0
    %v1260 = vand.u32 %v117, 4294901760
    %1261 = vmatpush1.msra.mxu0 %v1260
    %1262 = vmatprep.subr.mxu0 0.0
    %v1263 = vand.u32 %v116, 4294901760
    %1264 = vmatpush1.msra.mxu0 %v1263
    %1265 = vmatprep.subr.mxu0 0.0
    %v1266 = vand.u32 %v115, 4294901760
    %1267 = vmatpush1.msra.mxu0 %v1266
    %1268 = vmatprep.subr.mxu0 0.0
    %v1269 = vand.u32 %v114, 4294901760
    %1270 = vmatpush1.msra.mxu0 %v1269
    %1271 = vmatprep.subr.mxu0 0.0
    %v1272 = vand.u32 %v113, 4294901760
    %1273 = vmatpush1.msra.mxu0 %v1272
    %1274 = vmatprep.subr.mxu0 0.0
    %v1275 = vand.u32 %v112, 4294901760
    %1276 = vmatpush1.msra.mxu0 %v1275
    %1277 = vmatprep.subr.mxu0 0.0
    %v1278 = vand.u32 %v111, 4294901760
    %1279 = vmatpush1.msra.mxu0 %v1278
    %1280 = vmatprep.subr.mxu0 0.0
    %v1281 = vand.u32 %v110, 4294901760
    %1282 = vmatpush1.msra.mxu0 %v1281
    %1283 = vmatprep.subr.mxu0 0.0
    %1284 = vmatpush2.msra.mxu0 0.0
    %1285 = vmatprep.subr.mxu0 0.0
    %1286 = vmatpush2.msra.mxu0 0.0
    %1287 = vmatprep.subr.mxu0 0.0
    %1288 = vmatpush2.msra.mxu0 0.0
    %1289 = vmatprep.subr.mxu0 0.0
    %1290 = vmatpush2.msra.mxu0 0.0
    %1291 = vmatprep.subr.mxu0 0.0
    %1292 = vmatpush2.msra.mxu0 0.0
    %1293 = vmatprep.subr.mxu0 0.0
    %1294 = vmatpush2.msra.mxu0 0.0
    %1295 = vmatprep.subr.mxu0 0.0
    %1296 = vmatpush2.msra.mxu0 0.0
    %1297 = vmatprep.subr.mxu0 0.0
    %1298 = vmatpush2.msra.mxu0 0.0
    %1299 = vmatprep.subr.mxu0 0.0
    %1300 = vmatpush2.msra.mxu0 0.0
    %1301 = vmatprep.subr.mxu0 0.0
    %1302 = vmatpush2.msra.mxu0 0.0
    %1303 = vmatprep.subr.mxu0 0.0
    %1304 = vmatpush2.msra.mxu0 0.0
    %1305 = vmatprep.subr.mxu0 0.0
    %1306 = vmatpush2.msra.mxu0 0.0
    %1307 = vmatprep.subr.mxu0 0.0
    %1308 = vmatpush2.msra.mxu0 0.0
    %1309 = vmatprep.subr.mxu0 0.0
    %1310 = vmatpush2.msra.mxu0 0.0
    %1311 = vmatprep.subr.mxu0 0.0
    %1312 = vmatpush2.msra.mxu0 0.0
    %1313 = vmatprep.subr.mxu0 0.0
    %1314 = vmatpush2.msra.mxu0 0.0
    %1315 = vmatprep.mubr.f32.mxu0 0.0
    %v1316 = vand.u32 %v63, 4294901760
    %1317 = vmatmul.mubr.f32.gmra.mxu0 %v1316
    %v1318 = vpop.f32.mrf.mxu0
    %v1319 = vadd.f32 %v1142, %v1318
    %v1320 = vpop.f32.mrf.mxu0
    %1321 = vmatprep.mubr.f32.mxu0 0.0
    %v1322 = vand.u32 %v65, 4294901760
    %1323 = vmatmul.mubr.f32.gmra.mxu0 %v1322
    %v1324 = vpop.f32.mrf.mxu0
    %v1325 = vadd.f32 %v1148, %v1324
    %v1326 = vpop.f32.mrf.mxu0
    %1327 = vmatprep.mubr.f32.mxu0 0.0
    %v1328 = vand.u32 %v67, 4294901760
    %1329 = vmatmul.mubr.f32.gmra.mxu0 %v1328
    %v1330 = vpop.f32.mrf.mxu0
    %v1331 = vadd.f32 %v1154, %v1330
    %v1332 = vpop.f32.mrf.mxu0
    %1333 = vmatprep.mubr.f32.mxu0 0.0
    %v1334 = vand.u32 %v69, 4294901760
    %1335 = vmatmul.mubr.f32.gmra.mxu0 %v1334
    %v1336 = vpop.f32.mrf.mxu0
    %v1337 = vadd.f32 %v1160, %v1336
    %v1338 = vpop.f32.mrf.mxu0
    %1339 = vmatprep.mubr.f32.mxu0 0.0
    %v1340 = vand.u32 %v71, 4294901760
    %1341 = vmatmul.mubr.f32.gmra.mxu0 %v1340
    %v1342 = vpop.f32.mrf.mxu0
    %v1343 = vadd.f32 %v1166, %v1342
    %v1344 = vpop.f32.mrf.mxu0
    %1345 = vmatprep.mubr.f32.mxu0 0.0
    %v1346 = vand.u32 %v73, 4294901760
    %1347 = vmatmul.mubr.f32.gmra.mxu0 %v1346
    %v1348 = vpop.f32.mrf.mxu0
    %v1349 = vadd.f32 %v1172, %v1348
    %v1350 = vpop.f32.mrf.mxu0
    %1351 = vmatprep.mubr.f32.mxu0 0.0
    %v1352 = vand.u32 %v75, 4294901760
    %1353 = vmatmul.mubr.f32.gmra.mxu0 %v1352
    %v1354 = vpop.f32.mrf.mxu0
    %v1355 = vadd.f32 %v1178, %v1354
    %v1356 = vpop.f32.mrf.mxu0
    %1357 = vmatprep.mubr.f32.mxu0 0.0
    %v1358 = vand.u32 %v77, 4294901760
    %1359 = vmatmul.mubr.f32.gmra.mxu0 %v1358
    %v1360 = vpop.f32.mrf.mxu0
    %v1361 = vadd.f32 %v1184, %v1360
    %v1362 = vpop.f32.mrf.mxu0
    %1363 = vmatprep.mubr.f32.mxu0 0.0
    %v1364 = vand.u32 %v79, 4294901760
    %1365 = vmatmul.mubr.f32.gmra.mxu0 %v1364
    %v1366 = vpop.f32.mrf.mxu0
    %v1367 = vadd.f32 %v1190, %v1366
    %v1368 = vpop.f32.mrf.mxu0
    %1369 = vmatprep.mubr.f32.mxu0 0.0
    %v1370 = vand.u32 %v81, 4294901760
    %1371 = vmatmul.mubr.f32.gmra.mxu0 %v1370
    %v1372 = vpop.f32.mrf.mxu0
    %v1373 = vadd.f32 %v1196, %v1372
    %v1374 = vpop.f32.mrf.mxu0
    %1375 = vmatprep.mubr.f32.mxu0 0.0
    %v1376 = vand.u32 %v83, 4294901760
    %1377 = vmatmul.mubr.f32.gmra.mxu0 %v1376
    %v1378 = vpop.f32.mrf.mxu0
    %v1379 = vadd.f32 %v1202, %v1378
    %v1380 = vpop.f32.mrf.mxu0
    %1381 = vmatprep.mubr.f32.mxu0 0.0
    %v1382 = vand.u32 %v85, 4294901760
    %1383 = vmatmul.mubr.f32.gmra.mxu0 %v1382
    %v1384 = vpop.f32.mrf.mxu0
    %v1385 = vadd.f32 %v1208, %v1384
    %v1386 = vpop.f32.mrf.mxu0
    %1387 = vmatprep.mubr.f32.mxu0 0.0
    %v1388 = vand.u32 %v87, 4294901760
    %1389 = vmatmul.mubr.f32.gmra.mxu0 %v1388
    %v1390 = vpop.f32.mrf.mxu0
    %v1391 = vadd.f32 %v1214, %v1390
    %v1392 = vpop.f32.mrf.mxu0
    %1393 = vmatprep.mubr.f32.mxu0 0.0
    %v1394 = vand.u32 %v89, 4294901760
    %1395 = vmatmul.mubr.f32.gmra.mxu0 %v1394
    %v1396 = vpop.f32.mrf.mxu0
    %v1397 = vadd.f32 %v1220, %v1396
    %v1398 = vpop.f32.mrf.mxu0
    %1399 = vmatprep.mubr.f32.mxu0 0.0
    %v1400 = vand.u32 %v91, 4294901760
    %1401 = vmatmul.mubr.f32.gmra.mxu0 %v1400
    %v1402 = vpop.f32.mrf.mxu0
    %v1403 = vadd.f32 %v1226, %v1402
    %v1404 = vpop.f32.mrf.mxu0
    %1405 = vmatprep.mubr.f32.mxu0 0.0
    %v1406 = vand.u32 %v93, 4294901760
    %1407 = vmatmul.mubr.f32.gmra.mxu0 %v1406
    %v1408 = vpop.f32.mrf.mxu0
    %v1409 = vadd.f32 %v1232, %v1408
    %v1410 = vpop.f32.mrf.mxu0
    %1411 = vdwg.mxu0
    %1412 = vmatprep.subr.mxu0 0.0
    %v1413 = vand.u32 %v109, 4294901760
    %1414 = vmatpush1.msra.mxu0 %v1413
    %1415 = vmatprep.subr.mxu0 0.0
    %v1416 = vand.u32 %v108, 4294901760
    %1417 = vmatpush1.msra.mxu0 %v1416
    %1418 = vmatprep.subr.mxu0 0.0
    %v1419 = vand.u32 %v107, 4294901760
    %1420 = vmatpush1.msra.mxu0 %v1419
    %1421 = vmatprep.subr.mxu0 0.0
    %v1422 = vand.u32 %v106, 4294901760
    %1423 = vmatpush1.msra.mxu0 %v1422
    %1424 = vmatprep.subr.mxu0 0.0
    %v1425 = vand.u32 %v105, 4294901760
    %1426 = vmatpush1.msra.mxu0 %v1425
    %1427 = vmatprep.subr.mxu0 0.0
    %v1428 = vand.u32 %v104, 4294901760
    %1429 = vmatpush1.msra.mxu0 %v1428
    %1430 = vmatprep.subr.mxu0 0.0
    %v1431 = vand.u32 %v103, 4294901760
    %1432 = vmatpush1.msra.mxu0 %v1431
    %1433 = vmatprep.subr.mxu0 0.0
    %v1434 = vand.u32 %v102, 4294901760
    %1435 = vmatpush1.msra.mxu0 %v1434
    %1436 = vmatprep.subr.mxu0 0.0
    %v1437 = vand.u32 %v101, 4294901760
    %1438 = vmatpush1.msra.mxu0 %v1437
    %1439 = vmatprep.subr.mxu0 0.0
    %v1440 = vand.u32 %v100, 4294901760
    %1441 = vmatpush1.msra.mxu0 %v1440
    %1442 = vmatprep.subr.mxu0 0.0
    %v1443 = vand.u32 %v99, 4294901760
    %1444 = vmatpush1.msra.mxu0 %v1443
    %1445 = vmatprep.subr.mxu0 0.0
    %v1446 = vand.u32 %v98, 4294901760
    %1447 = vmatpush1.msra.mxu0 %v1446
    %1448 = vmatprep.subr.mxu0 0.0
    %v1449 = vand.u32 %v97, 4294901760
    %1450 = vmatpush1.msra.mxu0 %v1449
    %1451 = vmatprep.subr.mxu0 0.0
    %v1452 = vand.u32 %v96, 4294901760
    %1453 = vmatpush1.msra.mxu0 %v1452
    %1454 = vmatprep.subr.mxu0 0.0
    %v1455 = vand.u32 %v95, 4294901760
    %1456 = vmatpush1.msra.mxu0 %v1455
    %1457 = vmatprep.subr.mxu0 0.0
    %v1458 = vand.u32 %v94, 4294901760
    %1459 = vmatpush1.msra.mxu0 %v1458
    %1460 = vmatprep.subr.mxu0 0.0
    %1461 = vmatpush2.msra.mxu0 0.0
    %1462 = vmatprep.subr.mxu0 0.0
    %1463 = vmatpush2.msra.mxu0 0.0
    %1464 = vmatprep.subr.mxu0 0.0
    %1465 = vmatpush2.msra.mxu0 0.0
    %1466 = vmatprep.subr.mxu0 0.0
    %1467 = vmatpush2.msra.mxu0 0.0
    %1468 = vmatprep.subr.mxu0 0.0
    %1469 = vmatpush2.msra.mxu0 0.0
    %1470 = vmatprep.subr.mxu0 0.0
    %1471 = vmatpush2.msra.mxu0 0.0
    %1472 = vmatprep.subr.mxu0 0.0
    %1473 = vmatpush2.msra.mxu0 0.0
    %1474 = vmatprep.subr.mxu0 0.0
    %1475 = vmatpush2.msra.mxu0 0.0
    %1476 = vmatprep.subr.mxu0 0.0
    %1477 = vmatpush2.msra.mxu0 0.0
    %1478 = vmatprep.subr.mxu0 0.0
    %1479 = vmatpush2.msra.mxu0 0.0
    %1480 = vmatprep.subr.mxu0 0.0
    %1481 = vmatpush2.msra.mxu0 0.0
    %1482 = vmatprep.subr.mxu0 0.0
    %1483 = vmatpush2.msra.mxu0 0.0
    %1484 = vmatprep.subr.mxu0 0.0
    %1485 = vmatpush2.msra.mxu0 0.0
    %1486 = vmatprep.subr.mxu0 0.0
    %1487 = vmatpush2.msra.mxu0 0.0
    %1488 = vmatprep.subr.mxu0 0.0
    %1489 = vmatpush2.msra.mxu0 0.0
    %1490 = vmatprep.subr.mxu0 0.0
    %1491 = vmatpush2.msra.mxu0 0.0
    %1492 = vmatprep.mubr.f32.mxu0 0.0
    %v1493 = vand.u32 %v62, 4294901760
    %v1494 = vsub.f32 %v62, %v1493
    %v1495 = vand.u32 %v1494, 4294901760
    %v1496 = vsub.f32 %v1494, %v1495
    %v1497 = vand.u32 %v1496, 4294901760
    %1498 = vmatmul.mubr.f32.gmra.mxu0 %v1497
    %v1499 = vpop.f32.mrf.mxu0
    %v1500 = vadd.f32 %v1319, %v1499
    %v1501 = vpop.f32.mrf.mxu0
    %1502 = vmatprep.mubr.f32.mxu0 0.0
    %v1503 = vand.u32 %v64, 4294901760
    %v1504 = vsub.f32 %v64, %v1503
    %v1505 = vand.u32 %v1504, 4294901760
    %v1506 = vsub.f32 %v1504, %v1505
    %v1507 = vand.u32 %v1506, 4294901760
    %1508 = vmatmul.mubr.f32.gmra.mxu0 %v1507
    %v1509 = vpop.f32.mrf.mxu0
    %v1510 = vadd.f32 %v1325, %v1509
    %v1511 = vpop.f32.mrf.mxu0
    %1512 = vmatprep.mubr.f32.mxu0 0.0
    %v1513 = vand.u32 %v66, 4294901760
    %v1514 = vsub.f32 %v66, %v1513
    %v1515 = vand.u32 %v1514, 4294901760
    %v1516 = vsub.f32 %v1514, %v1515
    %v1517 = vand.u32 %v1516, 4294901760
    %1518 = vmatmul.mubr.f32.gmra.mxu0 %v1517
    %v1519 = vpop.f32.mrf.mxu0
    %v1520 = vadd.f32 %v1331, %v1519
    %v1521 = vpop.f32.mrf.mxu0
    %1522 = vmatprep.mubr.f32.mxu0 0.0
    %v1523 = vand.u32 %v68, 4294901760
    %v1524 = vsub.f32 %v68, %v1523
    %v1525 = vand.u32 %v1524, 4294901760
    %v1526 = vsub.f32 %v1524, %v1525
    %v1527 = vand.u32 %v1526, 4294901760
    %1528 = vmatmul.mubr.f32.gmra.mxu0 %v1527
    %v1529 = vpop.f32.mrf.mxu0
    %v1530 = vadd.f32 %v1337, %v1529
    %v1531 = vpop.f32.mrf.mxu0
    %1532 = vmatprep.mubr.f32.mxu0 0.0
    %v1533 = vand.u32 %v70, 4294901760
    %v1534 = vsub.f32 %v70, %v1533
    %v1535 = vand.u32 %v1534, 4294901760
    %v1536 = vsub.f32 %v1534, %v1535
    %v1537 = vand.u32 %v1536, 4294901760
    %1538 = vmatmul.mubr.f32.gmra.mxu0 %v1537
    %v1539 = vpop.f32.mrf.mxu0
    %v1540 = vadd.f32 %v1343, %v1539
    %v1541 = vpop.f32.mrf.mxu0
    %1542 = vmatprep.mubr.f32.mxu0 0.0
    %v1543 = vand.u32 %v72, 4294901760
    %v1544 = vsub.f32 %v72, %v1543
    %v1545 = vand.u32 %v1544, 4294901760
    %v1546 = vsub.f32 %v1544, %v1545
    %v1547 = vand.u32 %v1546, 4294901760
    %1548 = vmatmul.mubr.f32.gmra.mxu0 %v1547
    %v1549 = vpop.f32.mrf.mxu0
    %v1550 = vadd.f32 %v1349, %v1549
    %v1551 = vpop.f32.mrf.mxu0
    %1552 = vmatprep.mubr.f32.mxu0 0.0
    %v1553 = vand.u32 %v74, 4294901760
    %v1554 = vsub.f32 %v74, %v1553
    %v1555 = vand.u32 %v1554, 4294901760
    %v1556 = vsub.f32 %v1554, %v1555
    %v1557 = vand.u32 %v1556, 4294901760
    %1558 = vmatmul.mubr.f32.gmra.mxu0 %v1557
    %v1559 = vpop.f32.mrf.mxu0
    %v1560 = vadd.f32 %v1355, %v1559
    %v1561 = vpop.f32.mrf.mxu0
    %1562 = vmatprep.mubr.f32.mxu0 0.0
    %v1563 = vand.u32 %v76, 4294901760
    %v1564 = vsub.f32 %v76, %v1563
    %v1565 = vand.u32 %v1564, 4294901760
    %v1566 = vsub.f32 %v1564, %v1565
    %v1567 = vand.u32 %v1566, 4294901760
    %1568 = vmatmul.mubr.f32.gmra.mxu0 %v1567
    %v1569 = vpop.f32.mrf.mxu0
    %v1570 = vadd.f32 %v1361, %v1569
    %v1571 = vpop.f32.mrf.mxu0
    %1572 = vmatprep.mubr.f32.mxu0 0.0
    %v1573 = vand.u32 %v78, 4294901760
    %v1574 = vsub.f32 %v78, %v1573
    %v1575 = vand.u32 %v1574, 4294901760
    %v1576 = vsub.f32 %v1574, %v1575
    %v1577 = vand.u32 %v1576, 4294901760
    %1578 = vmatmul.mubr.f32.gmra.mxu0 %v1577
    %v1579 = vpop.f32.mrf.mxu0
    %v1580 = vadd.f32 %v1367, %v1579
    %v1581 = vpop.f32.mrf.mxu0
    %1582 = vmatprep.mubr.f32.mxu0 0.0
    %v1583 = vand.u32 %v80, 4294901760
    %v1584 = vsub.f32 %v80, %v1583
    %v1585 = vand.u32 %v1584, 4294901760
    %v1586 = vsub.f32 %v1584, %v1585
    %v1587 = vand.u32 %v1586, 4294901760
    %1588 = vmatmul.mubr.f32.gmra.mxu0 %v1587
    %v1589 = vpop.f32.mrf.mxu0
    %v1590 = vadd.f32 %v1373, %v1589
    %v1591 = vpop.f32.mrf.mxu0
    %1592 = vmatprep.mubr.f32.mxu0 0.0
    %v1593 = vand.u32 %v82, 4294901760
    %v1594 = vsub.f32 %v82, %v1593
    %v1595 = vand.u32 %v1594, 4294901760
    %v1596 = vsub.f32 %v1594, %v1595
    %v1597 = vand.u32 %v1596, 4294901760
    %1598 = vmatmul.mubr.f32.gmra.mxu0 %v1597
    %v1599 = vpop.f32.mrf.mxu0
    %v1600 = vadd.f32 %v1379, %v1599
    %v1601 = vpop.f32.mrf.mxu0
    %1602 = vmatprep.mubr.f32.mxu0 0.0
    %v1603 = vand.u32 %v84, 4294901760
    %v1604 = vsub.f32 %v84, %v1603
    %v1605 = vand.u32 %v1604, 4294901760
    %v1606 = vsub.f32 %v1604, %v1605
    %v1607 = vand.u32 %v1606, 4294901760
    %1608 = vmatmul.mubr.f32.gmra.mxu0 %v1607
    %v1609 = vpop.f32.mrf.mxu0
    %v1610 = vadd.f32 %v1385, %v1609
    %v1611 = vpop.f32.mrf.mxu0
    %1612 = vmatprep.mubr.f32.mxu0 0.0
    %v1613 = vand.u32 %v86, 4294901760
    %v1614 = vsub.f32 %v86, %v1613
    %v1615 = vand.u32 %v1614, 4294901760
    %v1616 = vsub.f32 %v1614, %v1615
    %v1617 = vand.u32 %v1616, 4294901760
    %1618 = vmatmul.mubr.f32.gmra.mxu0 %v1617
    %v1619 = vpop.f32.mrf.mxu0
    %v1620 = vadd.f32 %v1391, %v1619
    %v1621 = vpop.f32.mrf.mxu0
    %1622 = vmatprep.mubr.f32.mxu0 0.0
    %v1623 = vand.u32 %v88, 4294901760
    %v1624 = vsub.f32 %v88, %v1623
    %v1625 = vand.u32 %v1624, 4294901760
    %v1626 = vsub.f32 %v1624, %v1625
    %v1627 = vand.u32 %v1626, 4294901760
    %1628 = vmatmul.mubr.f32.gmra.mxu0 %v1627
    %v1629 = vpop.f32.mrf.mxu0
    %v1630 = vadd.f32 %v1397, %v1629
    %v1631 = vpop.f32.mrf.mxu0
    %1632 = vmatprep.mubr.f32.mxu0 0.0
    %v1633 = vand.u32 %v90, 4294901760
    %v1634 = vsub.f32 %v90, %v1633
    %v1635 = vand.u32 %v1634, 4294901760
    %v1636 = vsub.f32 %v1634, %v1635
    %v1637 = vand.u32 %v1636, 4294901760
    %1638 = vmatmul.mubr.f32.gmra.mxu0 %v1637
    %v1639 = vpop.f32.mrf.mxu0
    %v1640 = vadd.f32 %v1403, %v1639
    %v1641 = vpop.f32.mrf.mxu0
    %1642 = vmatprep.mubr.f32.mxu0 0.0
    %v1643 = vand.u32 %v92, 4294901760
    %v1644 = vsub.f32 %v92, %v1643
    %v1645 = vand.u32 %v1644, 4294901760
    %v1646 = vsub.f32 %v1644, %v1645
    %v1647 = vand.u32 %v1646, 4294901760
    %1648 = vmatmul.mubr.f32.gmra.mxu0 %v1647
    %v1649 = vpop.f32.mrf.mxu0
    %v1650 = vadd.f32 %v1409, %v1649
    %v1651 = vpop.f32.mrf.mxu0
    %1652 = vdwg.mxu0
    %1653 = vmatprep.subr.mxu0 0.0
    %v1654 = vand.u32 %v109, 4294901760
    %v1655 = vsub.f32 %v109, %v1654
    %v1656 = vand.u32 %v1655, 4294901760
    %v1657 = vsub.f32 %v1655, %v1656
    %v1658 = vand.u32 %v1657, 4294901760
    %1659 = vmatpush1.msra.mxu0 %v1658
    %1660 = vmatprep.subr.mxu0 0.0
    %v1661 = vand.u32 %v108, 4294901760
    %v1662 = vsub.f32 %v108, %v1661
    %v1663 = vand.u32 %v1662, 4294901760
    %v1664 = vsub.f32 %v1662, %v1663
    %v1665 = vand.u32 %v1664, 4294901760
    %1666 = vmatpush1.msra.mxu0 %v1665
    %1667 = vmatprep.subr.mxu0 0.0
    %v1668 = vand.u32 %v107, 4294901760
    %v1669 = vsub.f32 %v107, %v1668
    %v1670 = vand.u32 %v1669, 4294901760
    %v1671 = vsub.f32 %v1669, %v1670
    %v1672 = vand.u32 %v1671, 4294901760
    %1673 = vmatpush1.msra.mxu0 %v1672
    %1674 = vmatprep.subr.mxu0 0.0
    %v1675 = vand.u32 %v106, 4294901760
    %v1676 = vsub.f32 %v106, %v1675
    %v1677 = vand.u32 %v1676, 4294901760
    %v1678 = vsub.f32 %v1676, %v1677
    %v1679 = vand.u32 %v1678, 4294901760
    %1680 = vmatpush1.msra.mxu0 %v1679
    %1681 = vmatprep.subr.mxu0 0.0
    %v1682 = vand.u32 %v105, 4294901760
    %v1683 = vsub.f32 %v105, %v1682
    %v1684 = vand.u32 %v1683, 4294901760
    %v1685 = vsub.f32 %v1683, %v1684
    %v1686 = vand.u32 %v1685, 4294901760
    %1687 = vmatpush1.msra.mxu0 %v1686
    %1688 = vmatprep.subr.mxu0 0.0
    %v1689 = vand.u32 %v104, 4294901760
    %v1690 = vsub.f32 %v104, %v1689
    %v1691 = vand.u32 %v1690, 4294901760
    %v1692 = vsub.f32 %v1690, %v1691
    %v1693 = vand.u32 %v1692, 4294901760
    %1694 = vmatpush1.msra.mxu0 %v1693
    %1695 = vmatprep.subr.mxu0 0.0
    %v1696 = vand.u32 %v103, 4294901760
    %v1697 = vsub.f32 %v103, %v1696
    %v1698 = vand.u32 %v1697, 4294901760
    %v1699 = vsub.f32 %v1697, %v1698
    %v1700 = vand.u32 %v1699, 4294901760
    %1701 = vmatpush1.msra.mxu0 %v1700
    %1702 = vmatprep.subr.mxu0 0.0
    %v1703 = vand.u32 %v102, 4294901760
    %v1704 = vsub.f32 %v102, %v1703
    %v1705 = vand.u32 %v1704, 4294901760
    %v1706 = vsub.f32 %v1704, %v1705
    %v1707 = vand.u32 %v1706, 4294901760
    %1708 = vmatpush1.msra.mxu0 %v1707
    %1709 = vmatprep.subr.mxu0 0.0
    %v1710 = vand.u32 %v101, 4294901760
    %v1711 = vsub.f32 %v101, %v1710
    %v1712 = vand.u32 %v1711, 4294901760
    %v1713 = vsub.f32 %v1711, %v1712
    %v1714 = vand.u32 %v1713, 4294901760
    %1715 = vmatpush1.msra.mxu0 %v1714
    %1716 = vmatprep.subr.mxu0 0.0
    %v1717 = vand.u32 %v100, 4294901760
    %v1718 = vsub.f32 %v100, %v1717
    %v1719 = vand.u32 %v1718, 4294901760
    %v1720 = vsub.f32 %v1718, %v1719
    %v1721 = vand.u32 %v1720, 4294901760
    %1722 = vmatpush1.msra.mxu0 %v1721
    %1723 = vmatprep.subr.mxu0 0.0
    %v1724 = vand.u32 %v99, 4294901760
    %v1725 = vsub.f32 %v99, %v1724
    %v1726 = vand.u32 %v1725, 4294901760
    %v1727 = vsub.f32 %v1725, %v1726
    %v1728 = vand.u32 %v1727, 4294901760
    %1729 = vmatpush1.msra.mxu0 %v1728
    %1730 = vmatprep.subr.mxu0 0.0
    %v1731 = vand.u32 %v98, 4294901760
    %v1732 = vsub.f32 %v98, %v1731
    %v1733 = vand.u32 %v1732, 4294901760
    %v1734 = vsub.f32 %v1732, %v1733
    %v1735 = vand.u32 %v1734, 4294901760
    %1736 = vmatpush1.msra.mxu0 %v1735
    %1737 = vmatprep.subr.mxu0 0.0
    %v1738 = vand.u32 %v97, 4294901760
    %v1739 = vsub.f32 %v97, %v1738
    %v1740 = vand.u32 %v1739, 4294901760
    %v1741 = vsub.f32 %v1739, %v1740
    %v1742 = vand.u32 %v1741, 4294901760
    %1743 = vmatpush1.msra.mxu0 %v1742
    %1744 = vmatprep.subr.mxu0 0.0
    %v1745 = vand.u32 %v96, 4294901760
    %v1746 = vsub.f32 %v96, %v1745
    %v1747 = vand.u32 %v1746, 4294901760
    %v1748 = vsub.f32 %v1746, %v1747
    %v1749 = vand.u32 %v1748, 4294901760
    %1750 = vmatpush1.msra.mxu0 %v1749
    %1751 = vmatprep.subr.mxu0 0.0
    %v1752 = vand.u32 %v95, 4294901760
    %v1753 = vsub.f32 %v95, %v1752
    %v1754 = vand.u32 %v1753, 4294901760
    %v1755 = vsub.f32 %v1753, %v1754
    %v1756 = vand.u32 %v1755, 4294901760
    %1757 = vmatpush1.msra.mxu0 %v1756
    %1758 = vmatprep.subr.mxu0 0.0
    %v1759 = vand.u32 %v94, 4294901760
    %v1760 = vsub.f32 %v94, %v1759
    %v1761 = vand.u32 %v1760, 4294901760
    %v1762 = vsub.f32 %v1760, %v1761
    %v1763 = vand.u32 %v1762, 4294901760
    %1764 = vmatpush1.msra.mxu0 %v1763
    %1765 = vmatprep.subr.mxu0 0.0
    %1766 = vmatpush2.msra.mxu0 0.0
    %1767 = vmatprep.subr.mxu0 0.0
    %1768 = vmatpush2.msra.mxu0 0.0
    %1769 = vmatprep.subr.mxu0 0.0
    %1770 = vmatpush2.msra.mxu0 0.0
    %1771 = vmatprep.subr.mxu0 0.0
    %1772 = vmatpush2.msra.mxu0 0.0
    %1773 = vmatprep.subr.mxu0 0.0
    %1774 = vmatpush2.msra.mxu0 0.0
    %1775 = vmatprep.subr.mxu0 0.0
    %1776 = vmatpush2.msra.mxu0 0.0
    %1777 = vmatprep.subr.mxu0 0.0
    %1778 = vmatpush2.msra.mxu0 0.0
    %1779 = vmatprep.subr.mxu0 0.0
    %1780 = vmatpush2.msra.mxu0 0.0
    %1781 = vmatprep.subr.mxu0 0.0
    %1782 = vmatpush2.msra.mxu0 0.0
    %1783 = vmatprep.subr.mxu0 0.0
    %1784 = vmatpush2.msra.mxu0 0.0
    %1785 = vmatprep.subr.mxu0 0.0
    %1786 = vmatpush2.msra.mxu0 0.0
    %1787 = vmatprep.subr.mxu0 0.0
    %1788 = vmatpush2.msra.mxu0 0.0
    %1789 = vmatprep.subr.mxu0 0.0
    %1790 = vmatpush2.msra.mxu0 0.0
    %1791 = vmatprep.subr.mxu0 0.0
    %1792 = vmatpush2.msra.mxu0 0.0
    %1793 = vmatprep.subr.mxu0 0.0
    %1794 = vmatpush2.msra.mxu0 0.0
    %1795 = vmatprep.subr.mxu0 0.0
    %1796 = vmatpush2.msra.mxu0 0.0
    %1797 = vmatprep.mubr.f32.mxu0 0.0
    %v1798 = vand.u32 %v62, 4294901760
    %1799 = vmatmul.mubr.f32.gmra.mxu0 %v1798
    %v1800 = vpop.f32.mrf.mxu0
    %v1801 = vadd.f32 %v1500, %v1800
    %v1802 = vpop.f32.mrf.mxu0
    %1803 = vmatprep.mubr.f32.mxu0 0.0
    %v1804 = vand.u32 %v64, 4294901760
    %1805 = vmatmul.mubr.f32.gmra.mxu0 %v1804
    %v1806 = vpop.f32.mrf.mxu0
    %v1807 = vadd.f32 %v1510, %v1806
    %v1808 = vpop.f32.mrf.mxu0
    %1809 = vmatprep.mubr.f32.mxu0 0.0
    %v1810 = vand.u32 %v66, 4294901760
    %1811 = vmatmul.mubr.f32.gmra.mxu0 %v1810
    %v1812 = vpop.f32.mrf.mxu0
    %v1813 = vadd.f32 %v1520, %v1812
    %v1814 = vpop.f32.mrf.mxu0
    %1815 = vmatprep.mubr.f32.mxu0 0.0
    %v1816 = vand.u32 %v68, 4294901760
    %1817 = vmatmul.mubr.f32.gmra.mxu0 %v1816
    %v1818 = vpop.f32.mrf.mxu0
    %v1819 = vadd.f32 %v1530, %v1818
    %v1820 = vpop.f32.mrf.mxu0
    %1821 = vmatprep.mubr.f32.mxu0 0.0
    %v1822 = vand.u32 %v70, 4294901760
    %1823 = vmatmul.mubr.f32.gmra.mxu0 %v1822
    %v1824 = vpop.f32.mrf.mxu0
    %v1825 = vadd.f32 %v1540, %v1824
    %v1826 = vpop.f32.mrf.mxu0
    %1827 = vmatprep.mubr.f32.mxu0 0.0
    %v1828 = vand.u32 %v72, 4294901760
    %1829 = vmatmul.mubr.f32.gmra.mxu0 %v1828
    %v1830 = vpop.f32.mrf.mxu0
    %v1831 = vadd.f32 %v1550, %v1830
    %v1832 = vpop.f32.mrf.mxu0
    %1833 = vmatprep.mubr.f32.mxu0 0.0
    %v1834 = vand.u32 %v74, 4294901760
    %1835 = vmatmul.mubr.f32.gmra.mxu0 %v1834
    %v1836 = vpop.f32.mrf.mxu0
    %v1837 = vadd.f32 %v1560, %v1836
    %v1838 = vpop.f32.mrf.mxu0
    %1839 = vmatprep.mubr.f32.mxu0 0.0
    %v1840 = vand.u32 %v76, 4294901760
    %1841 = vmatmul.mubr.f32.gmra.mxu0 %v1840
    %v1842 = vpop.f32.mrf.mxu0
    %v1843 = vadd.f32 %v1570, %v1842
    %v1844 = vpop.f32.mrf.mxu0
    %1845 = vmatprep.mubr.f32.mxu0 0.0
    %v1846 = vand.u32 %v78, 4294901760
    %1847 = vmatmul.mubr.f32.gmra.mxu0 %v1846
    %v1848 = vpop.f32.mrf.mxu0
    %v1849 = vadd.f32 %v1580, %v1848
    %v1850 = vpop.f32.mrf.mxu0
    %1851 = vmatprep.mubr.f32.mxu0 0.0
    %v1852 = vand.u32 %v80, 4294901760
    %1853 = vmatmul.mubr.f32.gmra.mxu0 %v1852
    %v1854 = vpop.f32.mrf.mxu0
    %v1855 = vadd.f32 %v1590, %v1854
    %v1856 = vpop.f32.mrf.mxu0
    %1857 = vmatprep.mubr.f32.mxu0 0.0
    %v1858 = vand.u32 %v82, 4294901760
    %1859 = vmatmul.mubr.f32.gmra.mxu0 %v1858
    %v1860 = vpop.f32.mrf.mxu0
    %v1861 = vadd.f32 %v1600, %v1860
    %v1862 = vpop.f32.mrf.mxu0
    %1863 = vmatprep.mubr.f32.mxu0 0.0
    %v1864 = vand.u32 %v84, 4294901760
    %1865 = vmatmul.mubr.f32.gmra.mxu0 %v1864
    %v1866 = vpop.f32.mrf.mxu0
    %v1867 = vadd.f32 %v1610, %v1866
    %v1868 = vpop.f32.mrf.mxu0
    %1869 = vmatprep.mubr.f32.mxu0 0.0
    %v1870 = vand.u32 %v86, 4294901760
    %1871 = vmatmul.mubr.f32.gmra.mxu0 %v1870
    %v1872 = vpop.f32.mrf.mxu0
    %v1873 = vadd.f32 %v1620, %v1872
    %v1874 = vpop.f32.mrf.mxu0
    %1875 = vmatprep.mubr.f32.mxu0 0.0
    %v1876 = vand.u32 %v88, 4294901760
    %1877 = vmatmul.mubr.f32.gmra.mxu0 %v1876
    %v1878 = vpop.f32.mrf.mxu0
    %v1879 = vadd.f32 %v1630, %v1878
    %v1880 = vpop.f32.mrf.mxu0
    %1881 = vmatprep.mubr.f32.mxu0 0.0
    %v1882 = vand.u32 %v90, 4294901760
    %1883 = vmatmul.mubr.f32.gmra.mxu0 %v1882
    %v1884 = vpop.f32.mrf.mxu0
    %v1885 = vadd.f32 %v1640, %v1884
    %v1886 = vpop.f32.mrf.mxu0
    %1887 = vmatprep.mubr.f32.mxu0 0.0
    %v1888 = vand.u32 %v92, 4294901760
    %1889 = vmatmul.mubr.f32.gmra.mxu0 %v1888
    %v1890 = vpop.f32.mrf.mxu0
    %v1891 = vadd.f32 %v1650, %v1890
    %v1892 = vpop.f32.mrf.mxu0
    %1893 = vdwg.mxu0
    %1894 = vmatprep.subr.mxu0 0.0
    %v1895 = vand.u32 %v109, 4294901760
    %v1896 = vsub.f32 %v109, %v1895
    %1897 = vmatpush1.msra.mxu0 %v1896
    %1898 = vmatprep.subr.mxu0 0.0
    %v1899 = vand.u32 %v108, 4294901760
    %v1900 = vsub.f32 %v108, %v1899
    %1901 = vmatpush1.msra.mxu0 %v1900
    %1902 = vmatprep.subr.mxu0 0.0
    %v1903 = vand.u32 %v107, 4294901760
    %v1904 = vsub.f32 %v107, %v1903
    %1905 = vmatpush1.msra.mxu0 %v1904
    %1906 = vmatprep.subr.mxu0 0.0
    %v1907 = vand.u32 %v106, 4294901760
    %v1908 = vsub.f32 %v106, %v1907
    %1909 = vmatpush1.msra.mxu0 %v1908
    %1910 = vmatprep.subr.mxu0 0.0
    %v1911 = vand.u32 %v105, 4294901760
    %v1912 = vsub.f32 %v105, %v1911
    %1913 = vmatpush1.msra.mxu0 %v1912
    %1914 = vmatprep.subr.mxu0 0.0
    %v1915 = vand.u32 %v104, 4294901760
    %v1916 = vsub.f32 %v104, %v1915
    %1917 = vmatpush1.msra.mxu0 %v1916
    %1918 = vmatprep.subr.mxu0 0.0
    %v1919 = vand.u32 %v103, 4294901760
    %v1920 = vsub.f32 %v103, %v1919
    %1921 = vmatpush1.msra.mxu0 %v1920
    %1922 = vmatprep.subr.mxu0 0.0
    %v1923 = vand.u32 %v102, 4294901760
    %v1924 = vsub.f32 %v102, %v1923
    %1925 = vmatpush1.msra.mxu0 %v1924
    %1926 = vmatprep.subr.mxu0 0.0
    %v1927 = vand.u32 %v101, 4294901760
    %v1928 = vsub.f32 %v101, %v1927
    %1929 = vmatpush1.msra.mxu0 %v1928
    %1930 = vmatprep.subr.mxu0 0.0
    %v1931 = vand.u32 %v100, 4294901760
    %v1932 = vsub.f32 %v100, %v1931
    %1933 = vmatpush1.msra.mxu0 %v1932
    %1934 = vmatprep.subr.mxu0 0.0
    %v1935 = vand.u32 %v99, 4294901760
    %v1936 = vsub.f32 %v99, %v1935
    %1937 = vmatpush1.msra.mxu0 %v1936
    %1938 = vmatprep.subr.mxu0 0.0
    %v1939 = vand.u32 %v98, 4294901760
    %v1940 = vsub.f32 %v98, %v1939
    %1941 = vmatpush1.msra.mxu0 %v1940
    %1942 = vmatprep.subr.mxu0 0.0
    %v1943 = vand.u32 %v97, 4294901760
    %v1944 = vsub.f32 %v97, %v1943
    %1945 = vmatpush1.msra.mxu0 %v1944
    %1946 = vmatprep.subr.mxu0 0.0
    %v1947 = vand.u32 %v96, 4294901760
    %v1948 = vsub.f32 %v96, %v1947
    %1949 = vmatpush1.msra.mxu0 %v1948
    %1950 = vmatprep.subr.mxu0 0.0
    %v1951 = vand.u32 %v95, 4294901760
    %v1952 = vsub.f32 %v95, %v1951
    %1953 = vmatpush1.msra.mxu0 %v1952
    %1954 = vmatprep.subr.mxu0 0.0
    %v1955 = vand.u32 %v94, 4294901760
    %v1956 = vsub.f32 %v94, %v1955
    %1957 = vmatpush1.msra.mxu0 %v1956
    %1958 = vmatprep.subr.mxu0 0.0
    %1959 = vmatpush2.msra.mxu0 0.0
    %1960 = vmatprep.subr.mxu0 0.0
    %1961 = vmatpush2.msra.mxu0 0.0
    %1962 = vmatprep.subr.mxu0 0.0
    %1963 = vmatpush2.msra.mxu0 0.0
    %1964 = vmatprep.subr.mxu0 0.0
    %1965 = vmatpush2.msra.mxu0 0.0
    %1966 = vmatprep.subr.mxu0 0.0
    %1967 = vmatpush2.msra.mxu0 0.0
    %1968 = vmatprep.subr.mxu0 0.0
    %1969 = vmatpush2.msra.mxu0 0.0
    %1970 = vmatprep.subr.mxu0 0.0
    %1971 = vmatpush2.msra.mxu0 0.0
    %1972 = vmatprep.subr.mxu0 0.0
    %1973 = vmatpush2.msra.mxu0 0.0
    %1974 = vmatprep.subr.mxu0 0.0
    %1975 = vmatpush2.msra.mxu0 0.0
    %1976 = vmatprep.subr.mxu0 0.0
    %1977 = vmatpush2.msra.mxu0 0.0
    %1978 = vmatprep.subr.mxu0 0.0
    %1979 = vmatpush2.msra.mxu0 0.0
    %1980 = vmatprep.subr.mxu0 0.0
    %1981 = vmatpush2.msra.mxu0 0.0
    %1982 = vmatprep.subr.mxu0 0.0
    %1983 = vmatpush2.msra.mxu0 0.0
    %1984 = vmatprep.subr.mxu0 0.0
    %1985 = vmatpush2.msra.mxu0 0.0
    %1986 = vmatprep.subr.mxu0 0.0
    %1987 = vmatpush2.msra.mxu0 0.0
    %1988 = vmatprep.subr.mxu0 0.0
    %1989 = vmatpush2.msra.mxu0 0.0
    %1990 = vmatprep.mubr.f32.mxu0 0.0
    %v1991 = vand.u32 %v62, 4294901760
    %v1992 = vsub.f32 %v62, %v1991
    %1993 = vmatmul.mubr.f32.gmra.mxu0 %v1992
    %v1994 = vpop.f32.mrf.mxu0
    %v1995 = vadd.f32 %v1801, %v1994
    %v1996 = vpop.f32.mrf.mxu0
    %1997 = vmatprep.mubr.f32.mxu0 0.0
    %v1998 = vand.u32 %v64, 4294901760
    %v1999 = vsub.f32 %v64, %v1998
    %2000 = vmatmul.mubr.f32.gmra.mxu0 %v1999
    %v2001 = vpop.f32.mrf.mxu0
    %v2002 = vadd.f32 %v1807, %v2001
    %v2003 = vpop.f32.mrf.mxu0
    %2004 = vmatprep.mubr.f32.mxu0 0.0
    %v2005 = vand.u32 %v66, 4294901760
    %v2006 = vsub.f32 %v66, %v2005
    %2007 = vmatmul.mubr.f32.gmra.mxu0 %v2006
    %v2008 = vpop.f32.mrf.mxu0
    %v2009 = vadd.f32 %v1813, %v2008
    %v2010 = vpop.f32.mrf.mxu0
    %2011 = vmatprep.mubr.f32.mxu0 0.0
    %v2012 = vand.u32 %v68, 4294901760
    %v2013 = vsub.f32 %v68, %v2012
    %2014 = vmatmul.mubr.f32.gmra.mxu0 %v2013
    %v2015 = vpop.f32.mrf.mxu0
    %v2016 = vadd.f32 %v1819, %v2015
    %v2017 = vpop.f32.mrf.mxu0
    %2018 = vmatprep.mubr.f32.mxu0 0.0
    %v2019 = vand.u32 %v70, 4294901760
    %v2020 = vsub.f32 %v70, %v2019
    %2021 = vmatmul.mubr.f32.gmra.mxu0 %v2020
    %v2022 = vpop.f32.mrf.mxu0
    %v2023 = vadd.f32 %v1825, %v2022
    %v2024 = vpop.f32.mrf.mxu0
    %2025 = vmatprep.mubr.f32.mxu0 0.0
    %v2026 = vand.u32 %v72, 4294901760
    %v2027 = vsub.f32 %v72, %v2026
    %2028 = vmatmul.mubr.f32.gmra.mxu0 %v2027
    %v2029 = vpop.f32.mrf.mxu0
    %v2030 = vadd.f32 %v1831, %v2029
    %v2031 = vpop.f32.mrf.mxu0
    %2032 = vmatprep.mubr.f32.mxu0 0.0
    %v2033 = vand.u32 %v74, 4294901760
    %v2034 = vsub.f32 %v74, %v2033
    %2035 = vmatmul.mubr.f32.gmra.mxu0 %v2034
    %v2036 = vpop.f32.mrf.mxu0
    %v2037 = vadd.f32 %v1837, %v2036
    %v2038 = vpop.f32.mrf.mxu0
    %2039 = vmatprep.mubr.f32.mxu0 0.0
    %v2040 = vand.u32 %v76, 4294901760
    %v2041 = vsub.f32 %v76, %v2040
    %2042 = vmatmul.mubr.f32.gmra.mxu0 %v2041
    %v2043 = vpop.f32.mrf.mxu0
    %v2044 = vadd.f32 %v1843, %v2043
    %v2045 = vpop.f32.mrf.mxu0
    %2046 = vmatprep.mubr.f32.mxu0 0.0
    %v2047 = vand.u32 %v78, 4294901760
    %v2048 = vsub.f32 %v78, %v2047
    %2049 = vmatmul.mubr.f32.gmra.mxu0 %v2048
    %v2050 = vpop.f32.mrf.mxu0
    %v2051 = vadd.f32 %v1849, %v2050
    %v2052 = vpop.f32.mrf.mxu0
    %2053 = vmatprep.mubr.f32.mxu0 0.0
    %v2054 = vand.u32 %v80, 4294901760
    %v2055 = vsub.f32 %v80, %v2054
    %2056 = vmatmul.mubr.f32.gmra.mxu0 %v2055
    %v2057 = vpop.f32.mrf.mxu0
    %v2058 = vadd.f32 %v1855, %v2057
    %v2059 = vpop.f32.mrf.mxu0
    %2060 = vmatprep.mubr.f32.mxu0 0.0
    %v2061 = vand.u32 %v82, 4294901760
    %v2062 = vsub.f32 %v82, %v2061
    %2063 = vmatmul.mubr.f32.gmra.mxu0 %v2062
    %v2064 = vpop.f32.mrf.mxu0
    %v2065 = vadd.f32 %v1861, %v2064
    %v2066 = vpop.f32.mrf.mxu0
    %2067 = vmatprep.mubr.f32.mxu0 0.0
    %v2068 = vand.u32 %v84, 4294901760
    %v2069 = vsub.f32 %v84, %v2068
    %2070 = vmatmul.mubr.f32.gmra.mxu0 %v2069
    %v2071 = vpop.f32.mrf.mxu0
    %v2072 = vadd.f32 %v1867, %v2071
    %v2073 = vpop.f32.mrf.mxu0
    %2074 = vmatprep.mubr.f32.mxu0 0.0
    %v2075 = vand.u32 %v86, 4294901760
    %v2076 = vsub.f32 %v86, %v2075
    %2077 = vmatmul.mubr.f32.gmra.mxu0 %v2076
    %v2078 = vpop.f32.mrf.mxu0
    %v2079 = vadd.f32 %v1873, %v2078
    %v2080 = vpop.f32.mrf.mxu0
    %2081 = vmatprep.mubr.f32.mxu0 0.0
    %v2082 = vand.u32 %v88, 4294901760
    %v2083 = vsub.f32 %v88, %v2082
    %2084 = vmatmul.mubr.f32.gmra.mxu0 %v2083
    %v2085 = vpop.f32.mrf.mxu0
    %v2086 = vadd.f32 %v1879, %v2085
    %v2087 = vpop.f32.mrf.mxu0
    %2088 = vmatprep.mubr.f32.mxu0 0.0
    %v2089 = vand.u32 %v90, 4294901760
    %v2090 = vsub.f32 %v90, %v2089
    %2091 = vmatmul.mubr.f32.gmra.mxu0 %v2090
    %v2092 = vpop.f32.mrf.mxu0
    %v2093 = vadd.f32 %v1885, %v2092
    %v2094 = vpop.f32.mrf.mxu0
    %2095 = vmatprep.mubr.f32.mxu0 0.0
    %v2096 = vand.u32 %v92, 4294901760
    %v2097 = vsub.f32 %v92, %v2096
    %2098 = vmatmul.mubr.f32.gmra.mxu0 %v2097
    %v2099 = vpop.f32.mrf.mxu0
    %v2100 = vadd.f32 %v1891, %v2099
    %v2101 = vpop.f32.mrf.mxu0
    %2102 = vdwg.mxu0
    %2103 = vmatprep.subr.mxu0 0.0
    %v2104 = vand.u32 %v109, 4294901760
    %2105 = vmatpush1.msra.mxu0 %v2104
    %2106 = vmatprep.subr.mxu0 0.0
    %v2107 = vand.u32 %v108, 4294901760
    %2108 = vmatpush1.msra.mxu0 %v2107
    %2109 = vmatprep.subr.mxu0 0.0
    %v2110 = vand.u32 %v107, 4294901760
    %2111 = vmatpush1.msra.mxu0 %v2110
    %2112 = vmatprep.subr.mxu0 0.0
    %v2113 = vand.u32 %v106, 4294901760
    %2114 = vmatpush1.msra.mxu0 %v2113
    %2115 = vmatprep.subr.mxu0 0.0
    %v2116 = vand.u32 %v105, 4294901760
    %2117 = vmatpush1.msra.mxu0 %v2116
    %2118 = vmatprep.subr.mxu0 0.0
    %v2119 = vand.u32 %v104, 4294901760
    %2120 = vmatpush1.msra.mxu0 %v2119
    %2121 = vmatprep.subr.mxu0 0.0
    %v2122 = vand.u32 %v103, 4294901760
    %2123 = vmatpush1.msra.mxu0 %v2122
    %2124 = vmatprep.subr.mxu0 0.0
    %v2125 = vand.u32 %v102, 4294901760
    %2126 = vmatpush1.msra.mxu0 %v2125
    %2127 = vmatprep.subr.mxu0 0.0
    %v2128 = vand.u32 %v101, 4294901760
    %2129 = vmatpush1.msra.mxu0 %v2128
    %2130 = vmatprep.subr.mxu0 0.0
    %v2131 = vand.u32 %v100, 4294901760
    %2132 = vmatpush1.msra.mxu0 %v2131
    %2133 = vmatprep.subr.mxu0 0.0
    %v2134 = vand.u32 %v99, 4294901760
    %2135 = vmatpush1.msra.mxu0 %v2134
    %2136 = vmatprep.subr.mxu0 0.0
    %v2137 = vand.u32 %v98, 4294901760
    %2138 = vmatpush1.msra.mxu0 %v2137
    %2139 = vmatprep.subr.mxu0 0.0
    %v2140 = vand.u32 %v97, 4294901760
    %2141 = vmatpush1.msra.mxu0 %v2140
    %2142 = vmatprep.subr.mxu0 0.0
    %v2143 = vand.u32 %v96, 4294901760
    %2144 = vmatpush1.msra.mxu0 %v2143
    %2145 = vmatprep.subr.mxu0 0.0
    %v2146 = vand.u32 %v95, 4294901760
    %2147 = vmatpush1.msra.mxu0 %v2146
    %2148 = vmatprep.subr.mxu0 0.0
    %v2149 = vand.u32 %v94, 4294901760
    %2150 = vmatpush1.msra.mxu0 %v2149
    %2151 = vmatprep.subr.mxu0 0.0
    %2152 = vmatpush2.msra.mxu0 0.0
    %2153 = vmatprep.subr.mxu0 0.0
    %2154 = vmatpush2.msra.mxu0 0.0
    %2155 = vmatprep.subr.mxu0 0.0
    %2156 = vmatpush2.msra.mxu0 0.0
    %2157 = vmatprep.subr.mxu0 0.0
    %2158 = vmatpush2.msra.mxu0 0.0
    %2159 = vmatprep.subr.mxu0 0.0
    %2160 = vmatpush2.msra.mxu0 0.0
    %2161 = vmatprep.subr.mxu0 0.0
    %2162 = vmatpush2.msra.mxu0 0.0
    %2163 = vmatprep.subr.mxu0 0.0
    %2164 = vmatpush2.msra.mxu0 0.0
    %2165 = vmatprep.subr.mxu0 0.0
    %2166 = vmatpush2.msra.mxu0 0.0
    %2167 = vmatprep.subr.mxu0 0.0
    %2168 = vmatpush2.msra.mxu0 0.0
    %2169 = vmatprep.subr.mxu0 0.0
    %2170 = vmatpush2.msra.mxu0 0.0
    %2171 = vmatprep.subr.mxu0 0.0
    %2172 = vmatpush2.msra.mxu0 0.0
    %2173 = vmatprep.subr.mxu0 0.0
    %2174 = vmatpush2.msra.mxu0 0.0
    %2175 = vmatprep.subr.mxu0 0.0
    %2176 = vmatpush2.msra.mxu0 0.0
    %2177 = vmatprep.subr.mxu0 0.0
    %2178 = vmatpush2.msra.mxu0 0.0
    %2179 = vmatprep.subr.mxu0 0.0
    %2180 = vmatpush2.msra.mxu0 0.0
    %2181 = vmatprep.subr.mxu0 0.0
    %2182 = vmatpush2.msra.mxu0 0.0
    %2183 = vmatprep.mubr.f32.mxu0 0.0
    %v2184 = vand.u32 %v62, 4294901760
    %v2185 = vsub.f32 %v62, %v2184
    %v2186 = vand.u32 %v2185, 4294901760
    %2187 = vmatmul.mubr.f32.gmra.mxu0 %v2186
    %v2188 = vpop.f32.mrf.mxu0
    %v2189 = vadd.f32 %v1995, %v2188
    %v2190 = vpop.f32.mrf.mxu0
    %2191 = vmatprep.mubr.f32.mxu0 0.0
    %v2192 = vand.u32 %v64, 4294901760
    %v2193 = vsub.f32 %v64, %v2192
    %v2194 = vand.u32 %v2193, 4294901760
    %2195 = vmatmul.mubr.f32.gmra.mxu0 %v2194
    %v2196 = vpop.f32.mrf.mxu0
    %v2197 = vadd.f32 %v2002, %v2196
    %v2198 = vpop.f32.mrf.mxu0
    %2199 = vmatprep.mubr.f32.mxu0 0.0
    %v2200 = vand.u32 %v66, 4294901760
    %v2201 = vsub.f32 %v66, %v2200
    %v2202 = vand.u32 %v2201, 4294901760
    %2203 = vmatmul.mubr.f32.gmra.mxu0 %v2202
    %v2204 = vpop.f32.mrf.mxu0
    %v2205 = vadd.f32 %v2009, %v2204
    %v2206 = vpop.f32.mrf.mxu0
    %2207 = vmatprep.mubr.f32.mxu0 0.0
    %v2208 = vand.u32 %v68, 4294901760
    %v2209 = vsub.f32 %v68, %v2208
    %v2210 = vand.u32 %v2209, 4294901760
    %2211 = vmatmul.mubr.f32.gmra.mxu0 %v2210
    %v2212 = vpop.f32.mrf.mxu0
    %v2213 = vadd.f32 %v2016, %v2212
    %v2214 = vpop.f32.mrf.mxu0
    %2215 = vmatprep.mubr.f32.mxu0 0.0
    %v2216 = vand.u32 %v70, 4294901760
    %v2217 = vsub.f32 %v70, %v2216
    %v2218 = vand.u32 %v2217, 4294901760
    %2219 = vmatmul.mubr.f32.gmra.mxu0 %v2218
    %v2220 = vpop.f32.mrf.mxu0
    %v2221 = vadd.f32 %v2023, %v2220
    %v2222 = vpop.f32.mrf.mxu0
    %2223 = vmatprep.mubr.f32.mxu0 0.0
    %v2224 = vand.u32 %v72, 4294901760
    %v2225 = vsub.f32 %v72, %v2224
    %v2226 = vand.u32 %v2225, 4294901760
    %2227 = vmatmul.mubr.f32.gmra.mxu0 %v2226
    %v2228 = vpop.f32.mrf.mxu0
    %v2229 = vadd.f32 %v2030, %v2228
    %v2230 = vpop.f32.mrf.mxu0
    %2231 = vmatprep.mubr.f32.mxu0 0.0
    %v2232 = vand.u32 %v74, 4294901760
    %v2233 = vsub.f32 %v74, %v2232
    %v2234 = vand.u32 %v2233, 4294901760
    %2235 = vmatmul.mubr.f32.gmra.mxu0 %v2234
    %v2236 = vpop.f32.mrf.mxu0
    %v2237 = vadd.f32 %v2037, %v2236
    %v2238 = vpop.f32.mrf.mxu0
    %2239 = vmatprep.mubr.f32.mxu0 0.0
    %v2240 = vand.u32 %v76, 4294901760
    %v2241 = vsub.f32 %v76, %v2240
    %v2242 = vand.u32 %v2241, 4294901760
    %2243 = vmatmul.mubr.f32.gmra.mxu0 %v2242
    %v2244 = vpop.f32.mrf.mxu0
    %v2245 = vadd.f32 %v2044, %v2244
    %v2246 = vpop.f32.mrf.mxu0
    %2247 = vmatprep.mubr.f32.mxu0 0.0
    %v2248 = vand.u32 %v78, 4294901760
    %v2249 = vsub.f32 %v78, %v2248
    %v2250 = vand.u32 %v2249, 4294901760
    %2251 = vmatmul.mubr.f32.gmra.mxu0 %v2250
    %v2252 = vpop.f32.mrf.mxu0
    %v2253 = vadd.f32 %v2051, %v2252
    %v2254 = vpop.f32.mrf.mxu0
    %2255 = vmatprep.mubr.f32.mxu0 0.0
    %v2256 = vand.u32 %v80, 4294901760
    %v2257 = vsub.f32 %v80, %v2256
    %v2258 = vand.u32 %v2257, 4294901760
    %2259 = vmatmul.mubr.f32.gmra.mxu0 %v2258
    %v2260 = vpop.f32.mrf.mxu0
    %v2261 = vadd.f32 %v2058, %v2260
    %v2262 = vpop.f32.mrf.mxu0
    %2263 = vmatprep.mubr.f32.mxu0 0.0
    %v2264 = vand.u32 %v82, 4294901760
    %v2265 = vsub.f32 %v82, %v2264
    %v2266 = vand.u32 %v2265, 4294901760
    %2267 = vmatmul.mubr.f32.gmra.mxu0 %v2266
    %v2268 = vpop.f32.mrf.mxu0
    %v2269 = vadd.f32 %v2065, %v2268
    %v2270 = vpop.f32.mrf.mxu0
    %2271 = vmatprep.mubr.f32.mxu0 0.0
    %v2272 = vand.u32 %v84, 4294901760
    %v2273 = vsub.f32 %v84, %v2272
    %v2274 = vand.u32 %v2273, 4294901760
    %2275 = vmatmul.mubr.f32.gmra.mxu0 %v2274
    %v2276 = vpop.f32.mrf.mxu0
    %v2277 = vadd.f32 %v2072, %v2276
    %v2278 = vpop.f32.mrf.mxu0
    %2279 = vmatprep.mubr.f32.mxu0 0.0
    %v2280 = vand.u32 %v86, 4294901760
    %v2281 = vsub.f32 %v86, %v2280
    %v2282 = vand.u32 %v2281, 4294901760
    %2283 = vmatmul.mubr.f32.gmra.mxu0 %v2282
    %v2284 = vpop.f32.mrf.mxu0
    %v2285 = vadd.f32 %v2079, %v2284
    %v2286 = vpop.f32.mrf.mxu0
    %2287 = vmatprep.mubr.f32.mxu0 0.0
    %v2288 = vand.u32 %v88, 4294901760
    %v2289 = vsub.f32 %v88, %v2288
    %v2290 = vand.u32 %v2289, 4294901760
    %2291 = vmatmul.mubr.f32.gmra.mxu0 %v2290
    %v2292 = vpop.f32.mrf.mxu0
    %v2293 = vadd.f32 %v2086, %v2292
    %v2294 = vpop.f32.mrf.mxu0
    %2295 = vmatprep.mubr.f32.mxu0 0.0
    %v2296 = vand.u32 %v90, 4294901760
    %v2297 = vsub.f32 %v90, %v2296
    %v2298 = vand.u32 %v2297, 4294901760
    %2299 = vmatmul.mubr.f32.gmra.mxu0 %v2298
    %v2300 = vpop.f32.mrf.mxu0
    %v2301 = vadd.f32 %v2093, %v2300
    %v2302 = vpop.f32.mrf.mxu0
    %2303 = vmatprep.mubr.f32.mxu0 0.0
    %v2304 = vand.u32 %v92, 4294901760
    %v2305 = vsub.f32 %v92, %v2304
    %v2306 = vand.u32 %v2305, 4294901760
    %2307 = vmatmul.mubr.f32.gmra.mxu0 %v2306
    %v2308 = vpop.f32.mrf.mxu0
    %v2309 = vadd.f32 %v2100, %v2308
    %v2310 = vpop.f32.mrf.mxu0
    %2311 = vdwg.mxu0
    %2312 = vmatprep.subr.mxu0 0.0
    %v2313 = vand.u32 %v109, 4294901760
    %v2314 = vsub.f32 %v109, %v2313
    %v2315 = vand.u32 %v2314, 4294901760
    %2316 = vmatpush1.msra.mxu0 %v2315
    %2317 = vmatprep.subr.mxu0 0.0
    %v2318 = vand.u32 %v108, 4294901760
    %v2319 = vsub.f32 %v108, %v2318
    %v2320 = vand.u32 %v2319, 4294901760
    %2321 = vmatpush1.msra.mxu0 %v2320
    %2322 = vmatprep.subr.mxu0 0.0
    %v2323 = vand.u32 %v107, 4294901760
    %v2324 = vsub.f32 %v107, %v2323
    %v2325 = vand.u32 %v2324, 4294901760
    %2326 = vmatpush1.msra.mxu0 %v2325
    %2327 = vmatprep.subr.mxu0 0.0
    %v2328 = vand.u32 %v106, 4294901760
    %v2329 = vsub.f32 %v106, %v2328
    %v2330 = vand.u32 %v2329, 4294901760
    %2331 = vmatpush1.msra.mxu0 %v2330
    %2332 = vmatprep.subr.mxu0 0.0
    %v2333 = vand.u32 %v105, 4294901760
    %v2334 = vsub.f32 %v105, %v2333
    %v2335 = vand.u32 %v2334, 4294901760
    %2336 = vmatpush1.msra.mxu0 %v2335
    %2337 = vmatprep.subr.mxu0 0.0
    %v2338 = vand.u32 %v104, 4294901760
    %v2339 = vsub.f32 %v104, %v2338
    %v2340 = vand.u32 %v2339, 4294901760
    %2341 = vmatpush1.msra.mxu0 %v2340
    %2342 = vmatprep.subr.mxu0 0.0
    %v2343 = vand.u32 %v103, 4294901760
    %v2344 = vsub.f32 %v103, %v2343
    %v2345 = vand.u32 %v2344, 4294901760
    %2346 = vmatpush1.msra.mxu0 %v2345
    %2347 = vmatprep.subr.mxu0 0.0
    %v2348 = vand.u32 %v102, 4294901760
    %v2349 = vsub.f32 %v102, %v2348
    %v2350 = vand.u32 %v2349, 4294901760
    %2351 = vmatpush1.msra.mxu0 %v2350
    %2352 = vmatprep.subr.mxu0 0.0
    %v2353 = vand.u32 %v101, 4294901760
    %v2354 = vsub.f32 %v101, %v2353
    %v2355 = vand.u32 %v2354, 4294901760
    %2356 = vmatpush1.msra.mxu0 %v2355
    %2357 = vmatprep.subr.mxu0 0.0
    %v2358 = vand.u32 %v100, 4294901760
    %v2359 = vsub.f32 %v100, %v2358
    %v2360 = vand.u32 %v2359, 4294901760
    %2361 = vmatpush1.msra.mxu0 %v2360
    %2362 = vmatprep.subr.mxu0 0.0
    %v2363 = vand.u32 %v99, 4294901760
    %v2364 = vsub.f32 %v99, %v2363
    %v2365 = vand.u32 %v2364, 4294901760
    %2366 = vmatpush1.msra.mxu0 %v2365
    %2367 = vmatprep.subr.mxu0 0.0
    %v2368 = vand.u32 %v98, 4294901760
    %v2369 = vsub.f32 %v98, %v2368
    %v2370 = vand.u32 %v2369, 4294901760
    %2371 = vmatpush1.msra.mxu0 %v2370
    %2372 = vmatprep.subr.mxu0 0.0
    %v2373 = vand.u32 %v97, 4294901760
    %v2374 = vsub.f32 %v97, %v2373
    %v2375 = vand.u32 %v2374, 4294901760
    %2376 = vmatpush1.msra.mxu0 %v2375
    %2377 = vmatprep.subr.mxu0 0.0
    %v2378 = vand.u32 %v96, 4294901760
    %v2379 = vsub.f32 %v96, %v2378
    %v2380 = vand.u32 %v2379, 4294901760
    %2381 = vmatpush1.msra.mxu0 %v2380
    %2382 = vmatprep.subr.mxu0 0.0
    %v2383 = vand.u32 %v95, 4294901760
    %v2384 = vsub.f32 %v95, %v2383
    %v2385 = vand.u32 %v2384, 4294901760
    %2386 = vmatpush1.msra.mxu0 %v2385
    %2387 = vmatprep.subr.mxu0 0.0
    %v2388 = vand.u32 %v94, 4294901760
    %v2389 = vsub.f32 %v94, %v2388
    %v2390 = vand.u32 %v2389, 4294901760
    %2391 = vmatpush1.msra.mxu0 %v2390
    %2392 = vmatprep.subr.mxu0 0.0
    %2393 = vmatpush2.msra.mxu0 0.0
    %2394 = vmatprep.subr.mxu0 0.0
    %2395 = vmatpush2.msra.mxu0 0.0
    %2396 = vmatprep.subr.mxu0 0.0
    %2397 = vmatpush2.msra.mxu0 0.0
    %2398 = vmatprep.subr.mxu0 0.0
    %2399 = vmatpush2.msra.mxu0 0.0
    %2400 = vmatprep.subr.mxu0 0.0
    %2401 = vmatpush2.msra.mxu0 0.0
    %2402 = vmatprep.subr.mxu0 0.0
    %2403 = vmatpush2.msra.mxu0 0.0
    %2404 = vmatprep.subr.mxu0 0.0
    %2405 = vmatpush2.msra.mxu0 0.0
    %2406 = vmatprep.subr.mxu0 0.0
    %2407 = vmatpush2.msra.mxu0 0.0
    %2408 = vmatprep.subr.mxu0 0.0
    %2409 = vmatpush2.msra.mxu0 0.0
    %2410 = vmatprep.subr.mxu0 0.0
    %2411 = vmatpush2.msra.mxu0 0.0
    %2412 = vmatprep.subr.mxu0 0.0
    %2413 = vmatpush2.msra.mxu0 0.0
    %2414 = vmatprep.subr.mxu0 0.0
    %2415 = vmatpush2.msra.mxu0 0.0
    %2416 = vmatprep.subr.mxu0 0.0
    %2417 = vmatpush2.msra.mxu0 0.0
    %2418 = vmatprep.subr.mxu0 0.0
    %2419 = vmatpush2.msra.mxu0 0.0
    %2420 = vmatprep.subr.mxu0 0.0
    %2421 = vmatpush2.msra.mxu0 0.0
    %2422 = vmatprep.subr.mxu0 0.0
    %2423 = vmatpush2.msra.mxu0 0.0
    %2424 = vmatprep.mubr.f32.mxu0 0.0
    %v2425 = vand.u32 %v62, 4294901760
    %2426 = vmatmul.mubr.f32.gmra.mxu0 %v2425
    %v2427 = vpop.f32.mrf.mxu0
    %v2428 = vadd.f32 %v2189, %v2427
    %v2429 = vpop.f32.mrf.mxu0
    %2430 = vmatprep.mubr.f32.mxu0 0.0
    %v2431 = vand.u32 %v64, 4294901760
    %2432 = vmatmul.mubr.f32.gmra.mxu0 %v2431
    %v2433 = vpop.f32.mrf.mxu0
    %v2434 = vadd.f32 %v2197, %v2433
    %v2435 = vpop.f32.mrf.mxu0
    %2436 = vmatprep.mubr.f32.mxu0 0.0
    %v2437 = vand.u32 %v66, 4294901760
    %2438 = vmatmul.mubr.f32.gmra.mxu0 %v2437
    %v2439 = vpop.f32.mrf.mxu0
    %v2440 = vadd.f32 %v2205, %v2439
    %v2441 = vpop.f32.mrf.mxu0
    %2442 = vmatprep.mubr.f32.mxu0 0.0
    %v2443 = vand.u32 %v68, 4294901760
    %2444 = vmatmul.mubr.f32.gmra.mxu0 %v2443
    %v2445 = vpop.f32.mrf.mxu0
    %v2446 = vadd.f32 %v2213, %v2445
    %v2447 = vpop.f32.mrf.mxu0
    %2448 = vmatprep.mubr.f32.mxu0 0.0
    %v2449 = vand.u32 %v70, 4294901760
    %2450 = vmatmul.mubr.f32.gmra.mxu0 %v2449
    %v2451 = vpop.f32.mrf.mxu0
    %v2452 = vadd.f32 %v2221, %v2451
    %v2453 = vpop.f32.mrf.mxu0
    %2454 = vmatprep.mubr.f32.mxu0 0.0
    %v2455 = vand.u32 %v72, 4294901760
    %2456 = vmatmul.mubr.f32.gmra.mxu0 %v2455
    %v2457 = vpop.f32.mrf.mxu0
    %v2458 = vadd.f32 %v2229, %v2457
    %v2459 = vpop.f32.mrf.mxu0
    %2460 = vmatprep.mubr.f32.mxu0 0.0
    %v2461 = vand.u32 %v74, 4294901760
    %2462 = vmatmul.mubr.f32.gmra.mxu0 %v2461
    %v2463 = vpop.f32.mrf.mxu0
    %v2464 = vadd.f32 %v2237, %v2463
    %v2465 = vpop.f32.mrf.mxu0
    %2466 = vmatprep.mubr.f32.mxu0 0.0
    %v2467 = vand.u32 %v76, 4294901760
    %2468 = vmatmul.mubr.f32.gmra.mxu0 %v2467
    %v2469 = vpop.f32.mrf.mxu0
    %v2470 = vadd.f32 %v2245, %v2469
    %v2471 = vpop.f32.mrf.mxu0
    %2472 = vmatprep.mubr.f32.mxu0 0.0
    %v2473 = vand.u32 %v78, 4294901760
    %2474 = vmatmul.mubr.f32.gmra.mxu0 %v2473
    %v2475 = vpop.f32.mrf.mxu0
    %v2476 = vadd.f32 %v2253, %v2475
    %v2477 = vpop.f32.mrf.mxu0
    %2478 = vmatprep.mubr.f32.mxu0 0.0
    %v2479 = vand.u32 %v80, 4294901760
    %2480 = vmatmul.mubr.f32.gmra.mxu0 %v2479
    %v2481 = vpop.f32.mrf.mxu0
    %v2482 = vadd.f32 %v2261, %v2481
    %v2483 = vpop.f32.mrf.mxu0
    %2484 = vmatprep.mubr.f32.mxu0 0.0
    %v2485 = vand.u32 %v82, 4294901760
    %2486 = vmatmul.mubr.f32.gmra.mxu0 %v2485
    %v2487 = vpop.f32.mrf.mxu0
    %v2488 = vadd.f32 %v2269, %v2487
    %v2489 = vpop.f32.mrf.mxu0
    %2490 = vmatprep.mubr.f32.mxu0 0.0
    %v2491 = vand.u32 %v84, 4294901760
    %2492 = vmatmul.mubr.f32.gmra.mxu0 %v2491
    %v2493 = vpop.f32.mrf.mxu0
    %v2494 = vadd.f32 %v2277, %v2493
    %v2495 = vpop.f32.mrf.mxu0
    %2496 = vmatprep.mubr.f32.mxu0 0.0
    %v2497 = vand.u32 %v86, 4294901760
    %2498 = vmatmul.mubr.f32.gmra.mxu0 %v2497
    %v2499 = vpop.f32.mrf.mxu0
    %v2500 = vadd.f32 %v2285, %v2499
    %v2501 = vpop.f32.mrf.mxu0
    %2502 = vmatprep.mubr.f32.mxu0 0.0
    %v2503 = vand.u32 %v88, 4294901760
    %2504 = vmatmul.mubr.f32.gmra.mxu0 %v2503
    %v2505 = vpop.f32.mrf.mxu0
    %v2506 = vadd.f32 %v2293, %v2505
    %v2507 = vpop.f32.mrf.mxu0
    %2508 = vmatprep.mubr.f32.mxu0 0.0
    %v2509 = vand.u32 %v90, 4294901760
    %2510 = vmatmul.mubr.f32.gmra.mxu0 %v2509
    %v2511 = vpop.f32.mrf.mxu0
    %v2512 = vadd.f32 %v2301, %v2511
    %v2513 = vpop.f32.mrf.mxu0
    %2514 = vmatprep.mubr.f32.mxu0 0.0
    %v2515 = vand.u32 %v92, 4294901760
    %2516 = vmatmul.mubr.f32.gmra.mxu0 %v2515
    %v2517 = vpop.f32.mrf.mxu0
    %v2518 = vadd.f32 %v2309, %v2517
    %v2519 = vpop.f32.mrf.mxu0
    %2520 = vdwg.mxu0
    %2521 = vmatprep.subr.mxu0 0.0
    %v2522 = vand.u32 %v109, 4294901760
    %2523 = vmatpush1.msra.mxu0 %v2522
    %2524 = vmatprep.subr.mxu0 0.0
    %v2525 = vand.u32 %v108, 4294901760
    %2526 = vmatpush1.msra.mxu0 %v2525
    %2527 = vmatprep.subr.mxu0 0.0
    %v2528 = vand.u32 %v107, 4294901760
    %2529 = vmatpush1.msra.mxu0 %v2528
    %2530 = vmatprep.subr.mxu0 0.0
    %v2531 = vand.u32 %v106, 4294901760
    %2532 = vmatpush1.msra.mxu0 %v2531
    %2533 = vmatprep.subr.mxu0 0.0
    %v2534 = vand.u32 %v105, 4294901760
    %2535 = vmatpush1.msra.mxu0 %v2534
    %2536 = vmatprep.subr.mxu0 0.0
    %v2537 = vand.u32 %v104, 4294901760
    %2538 = vmatpush1.msra.mxu0 %v2537
    %2539 = vmatprep.subr.mxu0 0.0
    %v2540 = vand.u32 %v103, 4294901760
    %2541 = vmatpush1.msra.mxu0 %v2540
    %2542 = vmatprep.subr.mxu0 0.0
    %v2543 = vand.u32 %v102, 4294901760
    %2544 = vmatpush1.msra.mxu0 %v2543
    %2545 = vmatprep.subr.mxu0 0.0
    %v2546 = vand.u32 %v101, 4294901760
    %2547 = vmatpush1.msra.mxu0 %v2546
    %2548 = vmatprep.subr.mxu0 0.0
    %v2549 = vand.u32 %v100, 4294901760
    %2550 = vmatpush1.msra.mxu0 %v2549
    %2551 = vmatprep.subr.mxu0 0.0
    %v2552 = vand.u32 %v99, 4294901760
    %2553 = vmatpush1.msra.mxu0 %v2552
    %2554 = vmatprep.subr.mxu0 0.0
    %v2555 = vand.u32 %v98, 4294901760
    %2556 = vmatpush1.msra.mxu0 %v2555
    %2557 = vmatprep.subr.mxu0 0.0
    %v2558 = vand.u32 %v97, 4294901760
    %2559 = vmatpush1.msra.mxu0 %v2558
    %2560 = vmatprep.subr.mxu0 0.0
    %v2561 = vand.u32 %v96, 4294901760
    %2562 = vmatpush1.msra.mxu0 %v2561
    %2563 = vmatprep.subr.mxu0 0.0
    %v2564 = vand.u32 %v95, 4294901760
    %2565 = vmatpush1.msra.mxu0 %v2564
    %2566 = vmatprep.subr.mxu0 0.0
    %v2567 = vand.u32 %v94, 4294901760
    %2568 = vmatpush1.msra.mxu0 %v2567
    %2569 = vmatprep.subr.mxu0 0.0
    %2570 = vmatpush2.msra.mxu0 0.0
    %2571 = vmatprep.subr.mxu0 0.0
    %2572 = vmatpush2.msra.mxu0 0.0
    %2573 = vmatprep.subr.mxu0 0.0
    %2574 = vmatpush2.msra.mxu0 0.0
    %2575 = vmatprep.subr.mxu0 0.0
    %2576 = vmatpush2.msra.mxu0 0.0
    %2577 = vmatprep.subr.mxu0 0.0
    %2578 = vmatpush2.msra.mxu0 0.0
    %2579 = vmatprep.subr.mxu0 0.0
    %2580 = vmatpush2.msra.mxu0 0.0
    %2581 = vmatprep.subr.mxu0 0.0
    %2582 = vmatpush2.msra.mxu0 0.0
    %2583 = vmatprep.subr.mxu0 0.0
    %2584 = vmatpush2.msra.mxu0 0.0
    %2585 = vmatprep.subr.mxu0 0.0
    %2586 = vmatpush2.msra.mxu0 0.0
    %2587 = vmatprep.subr.mxu0 0.0
    %2588 = vmatpush2.msra.mxu0 0.0
    %2589 = vmatprep.subr.mxu0 0.0
    %2590 = vmatpush2.msra.mxu0 0.0
    %2591 = vmatprep.subr.mxu0 0.0
    %2592 = vmatpush2.msra.mxu0 0.0
    %2593 = vmatprep.subr.mxu0 0.0
    %2594 = vmatpush2.msra.mxu0 0.0
    %2595 = vmatprep.subr.mxu0 0.0
    %2596 = vmatpush2.msra.mxu0 0.0
    %2597 = vmatprep.subr.mxu0 0.0
    %2598 = vmatpush2.msra.mxu0 0.0
    %2599 = vmatprep.subr.mxu0 0.0
    %2600 = vmatpush2.msra.mxu0 0.0
    %2601 = vmatprep.mubr.f32.mxu0 0.0
    %v2602 = vand.u32 %v62, 4294901760
    %2603 = vmatmul.mubr.f32.gmra.mxu0 %v2602
    %v2604 = vpop.f32.mrf.mxu0
    %v2605 = vadd.f32 %v2428, %v2604
    %v2606 = vpop.f32.mrf.mxu0
    %2607 = vmatprep.mubr.f32.mxu0 0.0
    %v2608 = vand.u32 %v64, 4294901760
    %2609 = vmatmul.mubr.f32.gmra.mxu0 %v2608
    %v2610 = vpop.f32.mrf.mxu0
    %v2611 = vadd.f32 %v2434, %v2610
    %v2612 = vpop.f32.mrf.mxu0
    %2613 = vmatprep.mubr.f32.mxu0 0.0
    %v2614 = vand.u32 %v66, 4294901760
    %2615 = vmatmul.mubr.f32.gmra.mxu0 %v2614
    %v2616 = vpop.f32.mrf.mxu0
    %v2617 = vadd.f32 %v2440, %v2616
    %v2618 = vpop.f32.mrf.mxu0
    %2619 = vmatprep.mubr.f32.mxu0 0.0
    %v2620 = vand.u32 %v68, 4294901760
    %2621 = vmatmul.mubr.f32.gmra.mxu0 %v2620
    %v2622 = vpop.f32.mrf.mxu0
    %v2623 = vadd.f32 %v2446, %v2622
    %v2624 = vpop.f32.mrf.mxu0
    %2625 = vmatprep.mubr.f32.mxu0 0.0
    %v2626 = vand.u32 %v70, 4294901760
    %2627 = vmatmul.mubr.f32.gmra.mxu0 %v2626
    %v2628 = vpop.f32.mrf.mxu0
    %v2629 = vadd.f32 %v2452, %v2628
    %v2630 = vpop.f32.mrf.mxu0
    %2631 = vmatprep.mubr.f32.mxu0 0.0
    %v2632 = vand.u32 %v72, 4294901760
    %2633 = vmatmul.mubr.f32.gmra.mxu0 %v2632
    %v2634 = vpop.f32.mrf.mxu0
    %v2635 = vadd.f32 %v2458, %v2634
    %v2636 = vpop.f32.mrf.mxu0
    %2637 = vmatprep.mubr.f32.mxu0 0.0
    %v2638 = vand.u32 %v74, 4294901760
    %2639 = vmatmul.mubr.f32.gmra.mxu0 %v2638
    %v2640 = vpop.f32.mrf.mxu0
    %v2641 = vadd.f32 %v2464, %v2640
    %v2642 = vpop.f32.mrf.mxu0
    %2643 = vmatprep.mubr.f32.mxu0 0.0
    %v2644 = vand.u32 %v76, 4294901760
    %2645 = vmatmul.mubr.f32.gmra.mxu0 %v2644
    %v2646 = vpop.f32.mrf.mxu0
    %v2647 = vadd.f32 %v2470, %v2646
    %v2648 = vpop.f32.mrf.mxu0
    %2649 = vmatprep.mubr.f32.mxu0 0.0
    %v2650 = vand.u32 %v78, 4294901760
    %2651 = vmatmul.mubr.f32.gmra.mxu0 %v2650
    %v2652 = vpop.f32.mrf.mxu0
    %v2653 = vadd.f32 %v2476, %v2652
    %v2654 = vpop.f32.mrf.mxu0
    %2655 = vmatprep.mubr.f32.mxu0 0.0
    %v2656 = vand.u32 %v80, 4294901760
    %2657 = vmatmul.mubr.f32.gmra.mxu0 %v2656
    %v2658 = vpop.f32.mrf.mxu0
    %v2659 = vadd.f32 %v2482, %v2658
    %v2660 = vpop.f32.mrf.mxu0
    %2661 = vmatprep.mubr.f32.mxu0 0.0
    %v2662 = vand.u32 %v82, 4294901760
    %2663 = vmatmul.mubr.f32.gmra.mxu0 %v2662
    %v2664 = vpop.f32.mrf.mxu0
    %v2665 = vadd.f32 %v2488, %v2664
    %v2666 = vpop.f32.mrf.mxu0
    %2667 = vmatprep.mubr.f32.mxu0 0.0
    %v2668 = vand.u32 %v84, 4294901760
    %2669 = vmatmul.mubr.f32.gmra.mxu0 %v2668
    %v2670 = vpop.f32.mrf.mxu0
    %v2671 = vadd.f32 %v2494, %v2670
    %v2672 = vpop.f32.mrf.mxu0
    %2673 = vmatprep.mubr.f32.mxu0 0.0
    %v2674 = vand.u32 %v86, 4294901760
    %2675 = vmatmul.mubr.f32.gmra.mxu0 %v2674
    %v2676 = vpop.f32.mrf.mxu0
    %v2677 = vadd.f32 %v2500, %v2676
    %v2678 = vpop.f32.mrf.mxu0
    %2679 = vmatprep.mubr.f32.mxu0 0.0
    %v2680 = vand.u32 %v88, 4294901760
    %2681 = vmatmul.mubr.f32.gmra.mxu0 %v2680
    %v2682 = vpop.f32.mrf.mxu0
    %v2683 = vadd.f32 %v2506, %v2682
    %v2684 = vpop.f32.mrf.mxu0
    %2685 = vmatprep.mubr.f32.mxu0 0.0
    %v2686 = vand.u32 %v90, 4294901760
    %2687 = vmatmul.mubr.f32.gmra.mxu0 %v2686
    %v2688 = vpop.f32.mrf.mxu0
    %v2689 = vadd.f32 %v2512, %v2688
    %v2690 = vpop.f32.mrf.mxu0
    %2691 = vmatprep.mubr.f32.mxu0 0.0
    %v2692 = vand.u32 %v92, 4294901760
    %2693 = vmatmul.mubr.f32.gmra.mxu0 %v2692
    %v2694 = vpop.f32.mrf.mxu0
    %v2695 = vadd.f32 %v2518, %v2694
    %v2696 = vpop.f32.mrf.mxu0
    %2697 = vdwg.mxu0
    %v2698 = vld [vmem:[%s3] sm:$0x1]
    %v2700 = vlaneseq
    %v2701 = vshrl.u32 %v2700, 7
    %v2702 = vsub.s32 0, %v2701
    %v2703 = vrot.slane %v2698, %v2702
    %v2705 = vadd.f32 %v2605, %v2703
    %v2706 = vadd.f32 %v2611, %v2703
    %v2707 = vadd.f32 %v2617, %v2703
    %v2708 = vadd.f32 %v2623, %v2703
    %v2709 = vadd.f32 %v2629, %v2703
    %v2710 = vadd.f32 %v2635, %v2703
    %v2711 = vadd.f32 %v2641, %v2703
    %v2712 = vadd.f32 %v2647, %v2703
    %v2713 = vadd.f32 %v2653, %v2703
    %v2714 = vadd.f32 %v2659, %v2703
    %v2715 = vadd.f32 %v2665, %v2703
    %v2716 = vadd.f32 %v2671, %v2703
    %v2717 = vadd.f32 %v2677, %v2703
    %v2718 = vadd.f32 %v2683, %v2703
    %v2719 = vadd.f32 %v2689, %v2703
    %v2720 = vadd.f32 %v2695, %v2703
    %vm2721 = vcmask 523264
    %v2722 = vsel %vm2721, %v2705, -inf
    %2723 = vmax.xlane.f32.xlu0 %v2722
    %v2724 = vpop.xlane.xlu0 %2723
    %v2725 = vsel %vm2721, %v2706, -inf
    %2726 = vmax.xlane.f32.xlu0 %v2725
    %v2727 = vpop.xlane.xlu0 %2726
    %v2728 = vsel %vm2721, %v2707, -inf
    %2729 = vmax.xlane.f32.xlu0 %v2728
    %v2730 = vpop.xlane.xlu0 %2729
    %v2731 = vsel %vm2721, %v2708, -inf
    %2732 = vmax.xlane.f32.xlu0 %v2731
    %v2733 = vpop.xlane.xlu0 %2732
    %v2734 = vsel %vm2721, %v2709, -inf
    %2735 = vmax.xlane.f32.xlu0 %v2734
    %v2736 = vpop.xlane.xlu0 %2735
    %v2737 = vsel %vm2721, %v2710, -inf
    %2738 = vmax.xlane.f32.xlu0 %v2737
    %v2739 = vpop.xlane.xlu0 %2738
    %v2740 = vsel %vm2721, %v2711, -inf
    %2741 = vmax.xlane.f32.xlu0 %v2740
    %v2742 = vpop.xlane.xlu0 %2741
    %v2743 = vsel %vm2721, %v2712, -inf
    %2744 = vmax.xlane.f32.xlu0 %v2743
    %v2745 = vpop.xlane.xlu0 %2744
    %v2746 = vsel %vm2721, %v2713, -inf
    %2747 = vmax.xlane.f32.xlu0 %v2746
    %v2748 = vpop.xlane.xlu0 %2747
    %v2749 = vsel %vm2721, %v2714, -inf
    %2750 = vmax.xlane.f32.xlu0 %v2749
    %v2751 = vpop.xlane.xlu0 %2750
    %v2752 = vsel %vm2721, %v2715, -inf
    %2753 = vmax.xlane.f32.xlu0 %v2752
    %v2754 = vpop.xlane.xlu0 %2753
    %v2755 = vsel %vm2721, %v2716, -inf
    %2756 = vmax.xlane.f32.xlu0 %v2755
    %v2757 = vpop.xlane.xlu0 %2756
    %v2758 = vsel %vm2721, %v2717, -inf
    %2759 = vmax.xlane.f32.xlu0 %v2758
    %v2760 = vpop.xlane.xlu0 %2759
    %v2761 = vsel %vm2721, %v2718, -inf
    %2762 = vmax.xlane.f32.xlu0 %v2761
    %v2763 = vpop.xlane.xlu0 %2762
    %v2764 = vsel %vm2721, %v2719, -inf
    %2765 = vmax.xlane.f32.xlu0 %v2764
    %v2766 = vpop.xlane.xlu0 %2765
    %v2767 = vsel %vm2721, %v2720, -inf
    %2768 = vmax.xlane.f32.xlu0 %v2767
    %v2769 = vpop.xlane.xlu0 %2768
    %s2770 = sld [smem:[#allocation2]]
    %v2788 = vrot.slane 0.0, 7
    %v2789 = vrot.slane %v2724, 7
    %v2790 = vrot.slane %v2727, 7
    %v2791 = vrot.slane %v2730, 7
    %v2792 = vrot.slane %v2733, 7
    %v2793 = vrot.slane %v2736, 7
    %v2794 = vrot.slane %v2739, 7
    %v2795 = vrot.slane %v2742, 7
    %v2796 = vrot.slane %v2745, 7
    %v2797 = vrot.slane %v2748, 7
    %v2798 = vrot.slane %v2751, 7
    %v2799 = vrot.slane %v2754, 7
    %v2800 = vrot.slane %v2757, 7
    %v2801 = vrot.slane %v2760, 7
    %v2802 = vrot.slane %v2763, 7
    %v2803 = vrot.slane %v2766, 7
    %v2804 = vrot.slane %v2769, 7
    %vm2822 = vcmask 1040384
    %v2823 = vsel %vm2822, 0.0, %v2788
    %v2824 = vsel %vm2822, 0.0, %v2789
    %v2825 = vsel %vm2822, 0.0, %v2790
    %v2826 = vsel %vm2822, 0.0, %v2791
    %v2827 = vsel %vm2822, 0.0, %v2792
    %v2828 = vsel %vm2822, 0.0, %v2793
    %v2829 = vsel %vm2822, 0.0, %v2794
    %v2830 = vsel %vm2822, 0.0, %v2795
    %v2831 = vsel %vm2822, 0.0, %v2796
    %v2832 = vsel %vm2822, 0.0, %v2797
    %v2833 = vsel %vm2822, 0.0, %v2798
    %v2834 = vsel %vm2822, 0.0, %v2799
    %v2835 = vsel %vm2822, 0.0, %v2800
    %v2836 = vsel %vm2822, 0.0, %v2801
    %v2837 = vsel %vm2822, 0.0, %v2802
    %v2838 = vsel %vm2822, 0.0, %v2803
    %v2839 = vsel %vm2822, 0.0, %v2804
    %v2840 = vsel %vm2822, %v2788, 0.0
    %v2841 = vsel %vm2822, %v2789, 0.0
    %v2842 = vsel %vm2822, %v2790, 0.0
    %v2843 = vsel %vm2822, %v2791, 0.0
    %v2844 = vsel %vm2822, %v2792, 0.0
    %v2845 = vsel %vm2822, %v2793, 0.0
    %v2846 = vsel %vm2822, %v2794, 0.0
    %v2847 = vsel %vm2822, %v2795, 0.0
    %v2848 = vsel %vm2822, %v2796, 0.0
    %v2849 = vsel %vm2822, %v2797, 0.0
    %v2850 = vsel %vm2822, %v2798, 0.0
    %v2851 = vsel %vm2822, %v2799, 0.0
    %v2852 = vsel %vm2822, %v2800, 0.0
    %v2853 = vsel %vm2822, %v2801, 0.0
    %v2854 = vsel %vm2822, %v2802, 0.0
    %v2855 = vsel %vm2822, %v2803, 0.0
    %v2856 = vsel %vm2822, %v2804, 0.0
    %s2857 = sld [smem:[#allocation4]]
    %v2858 = vstv %s2857
    %v2859 = vmul.f32 %v2823, %v2858
    %v2860 = vmul.f32 %v2824, %v2858
    %v2861 = vmul.f32 %v2825, %v2858
    %v2862 = vmul.f32 %v2826, %v2858
    %v2863 = vmul.f32 %v2827, %v2858
    %v2864 = vmul.f32 %v2828, %v2858
    %v2865 = vmul.f32 %v2829, %v2858
    %v2866 = vmul.f32 %v2830, %v2858
    %v2867 = vmul.f32 %v2832, %v2858
    %v2868 = vmul.f32 %v2833, %v2858
    %v2869 = vmul.f32 %v2834, %v2858
    %v2870 = vmul.f32 %v2835, %v2858
    %v2871 = vmul.f32 %v2836, %v2858
    %v2872 = vmul.f32 %v2837, %v2858
    %v2873 = vmul.f32 %v2838, %v2858
    %s2874 = sld [smem:[#allocation4 + $0x1]]
    %v2875 = vstv %s2874
    %v2876 = vmul.f32 %v2823, %v2875
    %v2877 = vmul.f32 %v2840, %v2875
    %v2878 = vmul.f32 %v2824, %v2875
    %v2879 = vmul.f32 %v2841, %v2875
    %v2880 = vmul.f32 %v2825, %v2875
    %v2881 = vmul.f32 %v2842, %v2875
    %v2882 = vmul.f32 %v2826, %v2875
    %v2883 = vmul.f32 %v2843, %v2875
    %v2884 = vmul.f32 %v2827, %v2875
    %v2885 = vmul.f32 %v2844, %v2875
    %v2886 = vmul.f32 %v2828, %v2875
    %v2887 = vmul.f32 %v2845, %v2875
    %v2888 = vmul.f32 %v2829, %v2875
    %v2889 = vmul.f32 %v2846, %v2875
    %v2890 = vmul.f32 %v2830, %v2875
    %v2891 = vmul.f32 %v2847, %v2875
    %v2892 = vmul.f32 %v2832, %v2875
    %v2893 = vmul.f32 %v2849, %v2875
    %v2894 = vmul.f32 %v2833, %v2875
    %v2895 = vmul.f32 %v2850, %v2875
    %v2896 = vmul.f32 %v2834, %v2875
    %v2897 = vmul.f32 %v2851, %v2875
    %v2898 = vmul.f32 %v2835, %v2875
    %v2899 = vmul.f32 %v2852, %v2875
    %v2900 = vmul.f32 %v2836, %v2875
    %v2901 = vmul.f32 %v2853, %v2875
    %v2902 = vmul.f32 %v2837, %v2875
    %v2903 = vmul.f32 %v2854, %v2875
    %v2904 = vmul.f32 %v2838, %v2875
    %v2905 = vmul.f32 %v2855, %v2875
    %vm2936 = vcmask 1046528
    %v2937 = vrot.slane %v2876, 1
    %v2938 = vrot.slane %v2877, 1
    %v2939 = vsel %vm2936, %v2937, %v2938
    %v2940 = vrot.slane %v2878, 1
    %v2941 = vrot.slane %v2879, 1
    %v2942 = vsel %vm2936, %v2940, %v2941
    %v2943 = vrot.slane %v2880, 1
    %v2944 = vrot.slane %v2881, 1
    %v2945 = vsel %vm2936, %v2943, %v2944
    %v2946 = vrot.slane %v2882, 1
    %v2947 = vrot.slane %v2883, 1
    %v2948 = vsel %vm2936, %v2946, %v2947
    %v2949 = vrot.slane %v2884, 1
    %v2950 = vrot.slane %v2885, 1
    %v2951 = vsel %vm2936, %v2949, %v2950
    %v2952 = vrot.slane %v2886, 1
    %v2953 = vrot.slane %v2887, 1
    %v2954 = vsel %vm2936, %v2952, %v2953
    %v2955 = vrot.slane %v2888, 1
    %v2956 = vrot.slane %v2889, 1
    %v2957 = vsel %vm2936, %v2955, %v2956
    %v2958 = vrot.slane %v2890, 1
    %v2959 = vrot.slane %v2891, 1
    %v2960 = vsel %vm2936, %v2958, %v2959
    %v2961 = vrot.slane %v2892, 1
    %v2962 = vrot.slane %v2893, 1
    %v2963 = vsel %vm2936, %v2961, %v2962
    %v2964 = vrot.slane %v2894, 1
    %v2965 = vrot.slane %v2895, 1
    %v2966 = vsel %vm2936, %v2964, %v2965
    %v2967 = vrot.slane %v2896, 1
    %v2968 = vrot.slane %v2897, 1
    %v2969 = vsel %vm2936, %v2967, %v2968
    %v2970 = vrot.slane %v2898, 1
    %v2971 = vrot.slane %v2899, 1
    %v2972 = vsel %vm2936, %v2970, %v2971
    %v2973 = vrot.slane %v2900, 1
    %v2974 = vrot.slane %v2901, 1
    %v2975 = vsel %vm2936, %v2973, %v2974
    %v2976 = vrot.slane %v2902, 1
    %v2977 = vrot.slane %v2903, 1
    %v2978 = vsel %vm2936, %v2976, %v2977
    %v2979 = vrot.slane %v2904, 1
    %v2980 = vrot.slane %v2905, 1
    %v2981 = vsel %vm2936, %v2979, %v2980
    %v2997 = vadd.f32 %v2859, %v2939
    %v2998 = vadd.f32 %v2860, %v2942
    %v2999 = vadd.f32 %v2861, %v2945
    %v3000 = vadd.f32 %v2862, %v2948
    %v3001 = vadd.f32 %v2863, %v2951
    %v3002 = vadd.f32 %v2864, %v2954
    %v3003 = vadd.f32 %v2865, %v2957
    %v3004 = vadd.f32 %v2866, %v2960
    %v3005 = vadd.f32 %v2867, %v2963
    %v3006 = vadd.f32 %v2868, %v2966
    %v3007 = vadd.f32 %v2869, %v2969
    %v3008 = vadd.f32 %v2870, %v2972
    %v3009 = vadd.f32 %v2871, %v2975
    %v3010 = vadd.f32 %v2872, %v2978
    %v3011 = vadd.f32 %v2873, %v2981
    %s3012 = sld [smem:[#allocation4 + $0x2]]
    %v3013 = vstv %s3012
    %v3014 = vmul.f32 %v2823, %v3013
    %v3015 = vmul.f32 %v2840, %v3013
    %v3016 = vmul.f32 %v2824, %v3013
    %v3017 = vmul.f32 %v2841, %v3013
    %v3018 = vmul.f32 %v2825, %v3013
    %v3019 = vmul.f32 %v2842, %v3013
    %v3020 = vmul.f32 %v2826, %v3013
    %v3021 = vmul.f32 %v2843, %v3013
    %v3022 = vmul.f32 %v2827, %v3013
    %v3023 = vmul.f32 %v2844, %v3013
    %v3024 = vmul.f32 %v2828, %v3013
    %v3025 = vmul.f32 %v2845, %v3013
    %v3026 = vmul.f32 %v2829, %v3013
    %v3027 = vmul.f32 %v2846, %v3013
    %v3028 = vmul.f32 %v2830, %v3013
    %v3029 = vmul.f32 %v2847, %v3013
    %v3030 = vmul.f32 %v2832, %v3013
    %v3031 = vmul.f32 %v2849, %v3013
    %v3032 = vmul.f32 %v2833, %v3013
    %v3033 = vmul.f32 %v2850, %v3013
    %v3034 = vmul.f32 %v2834, %v3013
    %v3035 = vmul.f32 %v2851, %v3013
    %v3036 = vmul.f32 %v2835, %v3013
    %v3037 = vmul.f32 %v2852, %v3013
    %v3038 = vmul.f32 %v2836, %v3013
    %v3039 = vmul.f32 %v2853, %v3013
    %v3040 = vmul.f32 %v2837, %v3013
    %v3041 = vmul.f32 %v2854, %v3013
    %v3042 = vmul.f32 %v2838, %v3013
    %v3043 = vmul.f32 %v2855, %v3013
    %vm3074 = vcmask 1045504
    %v3075 = vrot.slane %v3014, 2
    %v3076 = vrot.slane %v3015, 2
    %v3077 = vsel %vm3074, %v3075, %v3076
    %v3078 = vrot.slane %v3016, 2
    %v3079 = vrot.slane %v3017, 2
    %v3080 = vsel %vm3074, %v3078, %v3079
    %v3081 = vrot.slane %v3018, 2
    %v3082 = vrot.slane %v3019, 2
    %v3083 = vsel %vm3074, %v3081, %v3082
    %v3084 = vrot.slane %v3020, 2
    %v3085 = vrot.slane %v3021, 2
    %v3086 = vsel %vm3074, %v3084, %v3085
    %v3087 = vrot.slane %v3022, 2
    %v3088 = vrot.slane %v3023, 2
    %v3089 = vsel %vm3074, %v3087, %v3088
    %v3090 = vrot.slane %v3024, 2
    %v3091 = vrot.slane %v3025, 2
    %v3092 = vsel %vm3074, %v3090, %v3091
    %v3093 = vrot.slane %v3026, 2
    %v3094 = vrot.slane %v3027, 2
    %v3095 = vsel %vm3074, %v3093, %v3094
    %v3096 = vrot.slane %v3028, 2
    %v3097 = vrot.slane %v3029, 2
    %v3098 = vsel %vm3074, %v3096, %v3097
    %v3099 = vrot.slane %v3030, 2
    %v3100 = vrot.slane %v3031, 2
    %v3101 = vsel %vm3074, %v3099, %v3100
    %v3102 = vrot.slane %v3032, 2
    %v3103 = vrot.slane %v3033, 2
    %v3104 = vsel %vm3074, %v3102, %v3103
    %v3105 = vrot.slane %v3034, 2
    %v3106 = vrot.slane %v3035, 2
    %v3107 = vsel %vm3074, %v3105, %v3106
    %v3108 = vrot.slane %v3036, 2
    %v3109 = vrot.slane %v3037, 2
    %v3110 = vsel %vm3074, %v3108, %v3109
    %v3111 = vrot.slane %v3038, 2
    %v3112 = vrot.slane %v3039, 2
    %v3113 = vsel %vm3074, %v3111, %v3112
    %v3114 = vrot.slane %v3040, 2
    %v3115 = vrot.slane %v3041, 2
    %v3116 = vsel %vm3074, %v3114, %v3115
    %v3117 = vrot.slane %v3042, 2
    %v3118 = vrot.slane %v3043, 2
    %v3119 = vsel %vm3074, %v3117, %v3118
    %v3135 = vadd.f32 %v2997, %v3077
    %v3136 = vadd.f32 %v2998, %v3080
    %v3137 = vadd.f32 %v2999, %v3083
    %v3138 = vadd.f32 %v3000, %v3086
    %v3139 = vadd.f32 %v3001, %v3089
    %v3140 = vadd.f32 %v3002, %v3092
    %v3141 = vadd.f32 %v3003, %v3095
    %v3142 = vadd.f32 %v3004, %v3098
    %v3143 = vadd.f32 %v3005, %v3101
    %v3144 = vadd.f32 %v3006, %v3104
    %v3145 = vadd.f32 %v3007, %v3107
    %v3146 = vadd.f32 %v3008, %v3110
    %v3147 = vadd.f32 %v3009, %v3113
    %v3148 = vadd.f32 %v3010, %v3116
    %v3149 = vadd.f32 %v3011, %v3119
    %s3150 = sld [smem:[#allocation4 + $0x3]]
    %v3151 = vstv %s3150
    %v3152 = vmul.f32 %v2824, %v3151
    %v3153 = vmul.f32 %v2825, %v3151
    %v3154 = vmul.f32 %v2826, %v3151
    %v3155 = vmul.f32 %v2827, %v3151
    %v3156 = vmul.f32 %v2828, %v3151
    %v3157 = vmul.f32 %v2829, %v3151
    %v3158 = vmul.f32 %v2830, %v3151
    %v3159 = vmul.f32 %v2831, %v3151
    %v3160 = vmul.f32 %v2832, %v3151
    %v3161 = vmul.f32 %v2833, %v3151
    %v3162 = vmul.f32 %v2834, %v3151
    %v3163 = vmul.f32 %v2835, %v3151
    %v3164 = vmul.f32 %v2836, %v3151
    %v3165 = vmul.f32 %v2837, %v3151
    %v3166 = vmul.f32 %v2838, %v3151
    %v3167 = vmul.f32 %v2839, %v3151
    %v3168 = vadd.f32 %v3135, %v3152
    %v3169 = vadd.f32 %v3136, %v3153
    %v3170 = vadd.f32 %v3137, %v3154
    %v3171 = vadd.f32 %v3138, %v3155
    %v3172 = vadd.f32 %v3139, %v3156
    %v3173 = vadd.f32 %v3140, %v3157
    %v3174 = vadd.f32 %v3141, %v3158
    %v3175 = vadd.f32 %v3142, %v3159
    %v3176 = vadd.f32 %v3135, %v3160
    %v3177 = vadd.f32 %v3143, %v3161
    %v3178 = vadd.f32 %v3144, %v3162
    %v3179 = vadd.f32 %v3145, %v3163
    %v3180 = vadd.f32 %v3146, %v3164
    %v3181 = vadd.f32 %v3147, %v3165
    %v3182 = vadd.f32 %v3148, %v3166
    %v3183 = vadd.f32 %v3149, %v3167
    %s3184 = sld [smem:[#allocation4 + $0x4]]
    %v3185 = vstv %s3184
    %v3186 = vmul.f32 %v2824, %v3185
    %v3187 = vmul.f32 %v2841, %v3185
    %v3188 = vmul.f32 %v2825, %v3185
    %v3189 = vmul.f32 %v2842, %v3185
    %v3190 = vmul.f32 %v2826, %v3185
    %v3191 = vmul.f32 %v2843, %v3185
    %v3192 = vmul.f32 %v2827, %v3185
    %v3193 = vmul.f32 %v2844, %v3185
    %v3194 = vmul.f32 %v2828, %v3185
    %v3195 = vmul.f32 %v2845, %v3185
    %v3196 = vmul.f32 %v2829, %v3185
    %v3197 = vmul.f32 %v2846, %v3185
    %v3198 = vmul.f32 %v2830, %v3185
    %v3199 = vmul.f32 %v2847, %v3185
    %v3200 = vmul.f32 %v2831, %v3185
    %v3201 = vmul.f32 %v2848, %v3185
    %v3202 = vmul.f32 %v2832, %v3185
    %v3203 = vmul.f32 %v2849, %v3185
    %v3204 = vmul.f32 %v2833, %v3185
    %v3205 = vmul.f32 %v2850, %v3185
    %v3206 = vmul.f32 %v2834, %v3185
    %v3207 = vmul.f32 %v2851, %v3185
    %v3208 = vmul.f32 %v2835, %v3185
    %v3209 = vmul.f32 %v2852, %v3185
    %v3210 = vmul.f32 %v2836, %v3185
    %v3211 = vmul.f32 %v2853, %v3185
    %v3212 = vmul.f32 %v2837, %v3185
    %v3213 = vmul.f32 %v2854, %v3185
    %v3214 = vmul.f32 %v2838, %v3185
    %v3215 = vmul.f32 %v2855, %v3185
    %v3216 = vmul.f32 %v2839, %v3185
    %v3217 = vmul.f32 %v2856, %v3185
    %v3250 = vrot.slane %v3186, 1
    %v3251 = vrot.slane %v3187, 1
    %v3252 = vsel %vm2936, %v3250, %v3251
    %v3253 = vrot.slane %v3188, 1
    %v3254 = vrot.slane %v3189, 1
    %v3255 = vsel %vm2936, %v3253, %v3254
    %v3256 = vrot.slane %v3190, 1
    %v3257 = vrot.slane %v3191, 1
    %v3258 = vsel %vm2936, %v3256, %v3257
    %v3259 = vrot.slane %v3192, 1
    %v3260 = vrot.slane %v3193, 1
    %v3261 = vsel %vm2936, %v3259, %v3260
    %v3262 = vrot.slane %v3194, 1
    %v3263 = vrot.slane %v3195, 1
    %v3264 = vsel %vm2936, %v3262, %v3263
    %v3265 = vrot.slane %v3196, 1
    %v3266 = vrot.slane %v3197, 1
    %v3267 = vsel %vm2936, %v3265, %v3266
    %v3268 = vrot.slane %v3198, 1
    %v3269 = vrot.slane %v3199, 1
    %v3270 = vsel %vm2936, %v3268, %v3269
    %v3271 = vrot.slane %v3200, 1
    %v3272 = vrot.slane %v3201, 1
    %v3273 = vsel %vm2936, %v3271, %v3272
    %v3274 = vrot.slane %v3202, 1
    %v3275 = vrot.slane %v3203, 1
    %v3276 = vsel %vm2936, %v3274, %v3275
    %v3277 = vrot.slane %v3204, 1
    %v3278 = vrot.slane %v3205, 1
    %v3279 = vsel %vm2936, %v3277, %v3278
    %v3280 = vrot.slane %v3206, 1
    %v3281 = vrot.slane %v3207, 1
    %v3282 = vsel %vm2936, %v3280, %v3281
    %v3283 = vrot.slane %v3208, 1
    %v3284 = vrot.slane %v3209, 1
    %v3285 = vsel %vm2936, %v3283, %v3284
    %v3286 = vrot.slane %v3210, 1
    %v3287 = vrot.slane %v3211, 1
    %v3288 = vsel %vm2936, %v3286, %v3287
    %v3289 = vrot.slane %v3212, 1
    %v3290 = vrot.slane %v3213, 1
    %v3291 = vsel %vm2936, %v3289, %v3290
    %v3292 = vrot.slane %v3214, 1
    %v3293 = vrot.slane %v3215, 1
    %v3294 = vsel %vm2936, %v3292, %v3293
    %v3295 = vrot.slane %v3216, 1
    %v3296 = vrot.slane %v3217, 1
    %v3297 = vsel %vm2936, %v3295, %v3296
    %v3314 = vadd.f32 %v3168, %v3252
    %v3315 = vadd.f32 %v3169, %v3255
    %v3316 = vadd.f32 %v3170, %v3258
    %v3317 = vadd.f32 %v3171, %v3261
    %v3318 = vadd.f32 %v3172, %v3264
    %v3319 = vadd.f32 %v3173, %v3267
    %v3320 = vadd.f32 %v3174, %v3270
    %v3321 = vadd.f32 %v3175, %v3273
    %v3322 = vadd.f32 %v3176, %v3276
    %v3323 = vadd.f32 %v3177, %v3279
    %v3324 = vadd.f32 %v3178, %v3282
    %v3325 = vadd.f32 %v3179, %v3285
    %v3326 = vadd.f32 %v3180, %v3288
    %v3327 = vadd.f32 %v3181, %v3291
    %v3328 = vadd.f32 %v3182, %v3294
    %v3329 = vadd.f32 %v3183, %v3297
    %s3330 = sld [smem:[#allocation4 + $0x5]]
    %v3331 = vstv %s3330
    %v3332 = vmul.f32 %v2824, %v3331
    %v3333 = vmul.f32 %v2841, %v3331
    %v3334 = vmul.f32 %v2825, %v3331
    %v3335 = vmul.f32 %v2842, %v3331
    %v3336 = vmul.f32 %v2826, %v3331
    %v3337 = vmul.f32 %v2843, %v3331
    %v3338 = vmul.f32 %v2827, %v3331
    %v3339 = vmul.f32 %v2844, %v3331
    %v3340 = vmul.f32 %v2828, %v3331
    %v3341 = vmul.f32 %v2845, %v3331
    %v3342 = vmul.f32 %v2829, %v3331
    %v3343 = vmul.f32 %v2846, %v3331
    %v3344 = vmul.f32 %v2830, %v3331
    %v3345 = vmul.f32 %v2847, %v3331
    %v3346 = vmul.f32 %v2831, %v3331
    %v3347 = vmul.f32 %v2848, %v3331
    %v3348 = vmul.f32 %v2832, %v3331
    %v3349 = vmul.f32 %v2849, %v3331
    %v3350 = vmul.f32 %v2833, %v3331
    %v3351 = vmul.f32 %v2850, %v3331
    %v3352 = vmul.f32 %v2834, %v3331
    %v3353 = vmul.f32 %v2851, %v3331
    %v3354 = vmul.f32 %v2835, %v3331
    %v3355 = vmul.f32 %v2852, %v3331
    %v3356 = vmul.f32 %v2836, %v3331
    %v3357 = vmul.f32 %v2853, %v3331
    %v3358 = vmul.f32 %v2837, %v3331
    %v3359 = vmul.f32 %v2854, %v3331
    %v3360 = vmul.f32 %v2838, %v3331
    %v3361 = vmul.f32 %v2855, %v3331
    %v3362 = vmul.f32 %v2839, %v3331
    %v3363 = vmul.f32 %v2856, %v3331
    %v3396 = vrot.slane %v3332, 2
    %v3397 = vrot.slane %v3333, 2
    %v3398 = vsel %vm3074, %v3396, %v3397
    %v3399 = vrot.slane %v3334, 2
    %v3400 = vrot.slane %v3335, 2
    %v3401 = vsel %vm3074, %v3399, %v3400
    %v3402 = vrot.slane %v3336, 2
    %v3403 = vrot.slane %v3337, 2
    %v3404 = vsel %vm3074, %v3402, %v3403
    %v3405 = vrot.slane %v3338, 2
    %v3406 = vrot.slane %v3339, 2
    %v3407 = vsel %vm3074, %v3405, %v3406
    %v3408 = vrot.slane %v3340, 2
    %v3409 = vrot.slane %v3341, 2
    %v3410 = vsel %vm3074, %v3408, %v3409
    %v3411 = vrot.slane %v3342, 2
    %v3412 = vrot.slane %v3343, 2
    %v3413 = vsel %vm3074, %v3411, %v3412
    %v3414 = vrot.slane %v3344, 2
    %v3415 = vrot.slane %v3345, 2
    %v3416 = vsel %vm3074, %v3414, %v3415
    %v3417 = vrot.slane %v3346, 2
    %v3418 = vrot.slane %v3347, 2
    %v3419 = vsel %vm3074, %v3417, %v3418
    %v3420 = vrot.slane %v3348, 2
    %v3421 = vrot.slane %v3349, 2
    %v3422 = vsel %vm3074, %v3420, %v3421
    %v3423 = vrot.slane %v3350, 2
    %v3424 = vrot.slane %v3351, 2
    %v3425 = vsel %vm3074, %v3423, %v3424
    %v3426 = vrot.slane %v3352, 2
    %v3427 = vrot.slane %v3353, 2
    %v3428 = vsel %vm3074, %v3426, %v3427
    %v3429 = vrot.slane %v3354, 2
    %v3430 = vrot.slane %v3355, 2
    %v3431 = vsel %vm3074, %v3429, %v3430
    %v3432 = vrot.slane %v3356, 2
    %v3433 = vrot.slane %v3357, 2
    %v3434 = vsel %vm3074, %v3432, %v3433
    %v3435 = vrot.slane %v3358, 2
    %v3436 = vrot.slane %v3359, 2
    %v3437 = vsel %vm3074, %v3435, %v3436
    %v3438 = vrot.slane %v3360, 2
    %v3439 = vrot.slane %v3361, 2
    %v3440 = vsel %vm3074, %v3438, %v3439
    %v3441 = vrot.slane %v3362, 2
    %v3442 = vrot.slane %v3363, 2
    %v3443 = vsel %vm3074, %v3441, %v3442
    %v3460 = vadd.f32 %v3314, %v3398
    %v3461 = vadd.f32 %v3315, %v3401
    %v3462 = vadd.f32 %v3316, %v3404
    %v3463 = vadd.f32 %v3317, %v3407
    %v3464 = vadd.f32 %v3318, %v3410
    %v3465 = vadd.f32 %v3319, %v3413
    %v3466 = vadd.f32 %v3320, %v3416
    %v3467 = vadd.f32 %v3321, %v3419
    %v3468 = vadd.f32 %v3322, %v3422
    %v3469 = vadd.f32 %v3323, %v3425
    %v3470 = vadd.f32 %v3324, %v3428
    %v3471 = vadd.f32 %v3325, %v3431
    %v3472 = vadd.f32 %v3326, %v3434
    %v3473 = vadd.f32 %v3327, %v3437
    %v3474 = vadd.f32 %v3328, %v3440
    %v3475 = vadd.f32 %v3329, %v3443
    %s3476 = sld [smem:[#allocation4 + $0x6]]
    %v3477 = vstv %s3476
    %v3478 = vmul.f32 %v2825, %v3477
    %v3479 = vmul.f32 %v2826, %v3477
    %v3480 = vmul.f32 %v2827, %v3477
    %v3481 = vmul.f32 %v2828, %v3477
    %v3482 = vmul.f32 %v2829, %v3477
    %v3483 = vmul.f32 %v2830, %v3477
    %v3484 = vmul.f32 %v2831, %v3477
    %v3485 = vmul.f32 %v2823, %v3477
    %v3486 = vmul.f32 %v2833, %v3477
    %v3487 = vmul.f32 %v2834, %v3477
    %v3488 = vmul.f32 %v2835, %v3477
    %v3489 = vmul.f32 %v2836, %v3477
    %v3490 = vmul.f32 %v2837, %v3477
    %v3491 = vmul.f32 %v2838, %v3477
    %v3492 = vmul.f32 %v2839, %v3477
    %v3493 = vadd.f32 %v3460, %v3478
    %v3494 = vadd.f32 %v3461, %v3479
    %v3495 = vadd.f32 %v3462, %v3480
    %v3496 = vadd.f32 %v3463, %v3481
    %v3497 = vadd.f32 %v3464, %v3482
    %v3498 = vadd.f32 %v3465, %v3483
    %v3499 = vadd.f32 %v3466, %v3484
    %v3500 = vadd.f32 %v3467, %v3485
    %v3501 = vadd.f32 %v3468, %v3486
    %v3502 = vadd.f32 %v3469, %v3487
    %v3503 = vadd.f32 %v3470, %v3488
    %v3504 = vadd.f32 %v3471, %v3489
    %v3505 = vadd.f32 %v3472, %v3490
    %v3506 = vadd.f32 %v3473, %v3491
    %v3507 = vadd.f32 %v3474, %v3492
    %v3508 = vadd.f32 %v3475, %v3485
    %s3509 = sld [smem:[#allocation4 + $0x7]]
    %v3510 = vstv %s3509
    %v3511 = vmul.f32 %v2825, %v3510
    %v3512 = vmul.f32 %v2842, %v3510
    %v3513 = vmul.f32 %v2826, %v3510
    %v3514 = vmul.f32 %v2843, %v3510
    %v3515 = vmul.f32 %v2827, %v3510
    %v3516 = vmul.f32 %v2844, %v3510
    %v3517 = vmul.f32 %v2828, %v3510
    %v3518 = vmul.f32 %v2845, %v3510
    %v3519 = vmul.f32 %v2829, %v3510
    %v3520 = vmul.f32 %v2846, %v3510
    %v3521 = vmul.f32 %v2830, %v3510
    %v3522 = vmul.f32 %v2847, %v3510
    %v3523 = vmul.f32 %v2831, %v3510
    %v3524 = vmul.f32 %v2848, %v3510
    %v3525 = vmul.f32 %v2823, %v3510
    %v3526 = vmul.f32 %v2840, %v3510
    %v3527 = vmul.f32 %v2833, %v3510
    %v3528 = vmul.f32 %v2850, %v3510
    %v3529 = vmul.f32 %v2834, %v3510
    %v3530 = vmul.f32 %v2851, %v3510
    %v3531 = vmul.f32 %v2835, %v3510
    %v3532 = vmul.f32 %v2852, %v3510
    %v3533 = vmul.f32 %v2836, %v3510
    %v3534 = vmul.f32 %v2853, %v3510
    %v3535 = vmul.f32 %v2837, %v3510
    %v3536 = vmul.f32 %v2854, %v3510
    %v3537 = vmul.f32 %v2838, %v3510
    %v3538 = vmul.f32 %v2855, %v3510
    %v3539 = vmul.f32 %v2839, %v3510
    %v3540 = vmul.f32 %v2856, %v3510
    %v3571 = vrot.slane %v3511, 1
    %v3572 = vrot.slane %v3512, 1
    %v3573 = vsel %vm2936, %v3571, %v3572
    %v3574 = vrot.slane %v3513, 1
    %v3575 = vrot.slane %v3514, 1
    %v3576 = vsel %vm2936, %v3574, %v3575
    %v3577 = vrot.slane %v3515, 1
    %v3578 = vrot.slane %v3516, 1
    %v3579 = vsel %vm2936, %v3577, %v3578
    %v3580 = vrot.slane %v3517, 1
    %v3581 = vrot.slane %v3518, 1
    %v3582 = vsel %vm2936, %v3580, %v3581
    %v3583 = vrot.slane %v3519, 1
    %v3584 = vrot.slane %v3520, 1
    %v3585 = vsel %vm2936, %v3583, %v3584
    %v3586 = vrot.slane %v3521, 1
    %v3587 = vrot.slane %v3522, 1
    %v3588 = vsel %vm2936, %v3586, %v3587
    %v3589 = vrot.slane %v3523, 1
    %v3590 = vrot.slane %v3524, 1
    %v3591 = vsel %vm2936, %v3589, %v3590
    %v3592 = vrot.slane %v3525, 1
    %v3593 = vrot.slane %v3526, 1
    %v3594 = vsel %vm2936, %v3592, %v3593
    %v3595 = vrot.slane %v3527, 1
    %v3596 = vrot.slane %v3528, 1
    %v3597 = vsel %vm2936, %v3595, %v3596
    %v3598 = vrot.slane %v3529, 1
    %v3599 = vrot.slane %v3530, 1
    %v3600 = vsel %vm2936, %v3598, %v3599
    %v3601 = vrot.slane %v3531, 1
    %v3602 = vrot.slane %v3532, 1
    %v3603 = vsel %vm2936, %v3601, %v3602
    %v3604 = vrot.slane %v3533, 1
    %v3605 = vrot.slane %v3534, 1
    %v3606 = vsel %vm2936, %v3604, %v3605
    %v3607 = vrot.slane %v3535, 1
    %v3608 = vrot.slane %v3536, 1
    %v3609 = vsel %vm2936, %v3607, %v3608
    %v3610 = vrot.slane %v3537, 1
    %v3611 = vrot.slane %v3538, 1
    %v3612 = vsel %vm2936, %v3610, %v3611
    %v3613 = vrot.slane %v3539, 1
    %v3614 = vrot.slane %v3540, 1
    %v3615 = vsel %vm2936, %v3613, %v3614
    %v3631 = vadd.f32 %v3493, %v3573
    %v3632 = vadd.f32 %v3494, %v3576
    %v3633 = vadd.f32 %v3495, %v3579
    %v3634 = vadd.f32 %v3496, %v3582
    %v3635 = vadd.f32 %v3497, %v3585
    %v3636 = vadd.f32 %v3498, %v3588
    %v3637 = vadd.f32 %v3499, %v3591
    %v3638 = vadd.f32 %v3500, %v3594
    %v3639 = vadd.f32 %v3501, %v3597
    %v3640 = vadd.f32 %v3502, %v3600
    %v3641 = vadd.f32 %v3503, %v3603
    %v3642 = vadd.f32 %v3504, %v3606
    %v3643 = vadd.f32 %v3505, %v3609
    %v3644 = vadd.f32 %v3506, %v3612
    %v3645 = vadd.f32 %v3507, %v3615
    %v3646 = vadd.f32 %v3508, %v3594
    %s3647 = sld [smem:[#allocation4 + $0x8]]
    %v3648 = vstv %s3647
    %v3649 = vmul.f32 %v2825, %v3648
    %v3650 = vmul.f32 %v2842, %v3648
    %v3651 = vmul.f32 %v2826, %v3648
    %v3652 = vmul.f32 %v2843, %v3648
    %v3653 = vmul.f32 %v2827, %v3648
    %v3654 = vmul.f32 %v2844, %v3648
    %v3655 = vmul.f32 %v2828, %v3648
    %v3656 = vmul.f32 %v2845, %v3648
    %v3657 = vmul.f32 %v2829, %v3648
    %v3658 = vmul.f32 %v2846, %v3648
    %v3659 = vmul.f32 %v2830, %v3648
    %v3660 = vmul.f32 %v2847, %v3648
    %v3661 = vmul.f32 %v2831, %v3648
    %v3662 = vmul.f32 %v2848, %v3648
    %v3663 = vmul.f32 %v2823, %v3648
    %v3664 = vmul.f32 %v2840, %v3648
    %v3665 = vmul.f32 %v2833, %v3648
    %v3666 = vmul.f32 %v2850, %v3648
    %v3667 = vmul.f32 %v2834, %v3648
    %v3668 = vmul.f32 %v2851, %v3648
    %v3669 = vmul.f32 %v2835, %v3648
    %v3670 = vmul.f32 %v2852, %v3648
    %v3671 = vmul.f32 %v2836, %v3648
    %v3672 = vmul.f32 %v2853, %v3648
    %v3673 = vmul.f32 %v2837, %v3648
    %v3674 = vmul.f32 %v2854, %v3648
    %v3675 = vmul.f32 %v2838, %v3648
    %v3676 = vmul.f32 %v2855, %v3648
    %v3677 = vmul.f32 %v2839, %v3648
    %v3678 = vmul.f32 %v2856, %v3648
    %v3709 = vrot.slane %v3649, 2
    %v3710 = vrot.slane %v3650, 2
    %v3711 = vsel %vm3074, %v3709, %v3710
    %v3712 = vrot.slane %v3651, 2
    %v3713 = vrot.slane %v3652, 2
    %v3714 = vsel %vm3074, %v3712, %v3713
    %v3715 = vrot.slane %v3653, 2
    %v3716 = vrot.slane %v3654, 2
    %v3717 = vsel %vm3074, %v3715, %v3716
    %v3718 = vrot.slane %v3655, 2
    %v3719 = vrot.slane %v3656, 2
    %v3720 = vsel %vm3074, %v3718, %v3719
    %v3721 = vrot.slane %v3657, 2
    %v3722 = vrot.slane %v3658, 2
    %v3723 = vsel %vm3074, %v3721, %v3722
    %v3724 = vrot.slane %v3659, 2
    %v3725 = vrot.slane %v3660, 2
    %v3726 = vsel %vm3074, %v3724, %v3725
    %v3727 = vrot.slane %v3661, 2
    %v3728 = vrot.slane %v3662, 2
    %v3729 = vsel %vm3074, %v3727, %v3728
    %v3730 = vrot.slane %v3663, 2
    %v3731 = vrot.slane %v3664, 2
    %v3732 = vsel %vm3074, %v3730, %v3731
    %v3733 = vrot.slane %v3665, 2
    %v3734 = vrot.slane %v3666, 2
    %v3735 = vsel %vm3074, %v3733, %v3734
    %v3736 = vrot.slane %v3667, 2
    %v3737 = vrot.slane %v3668, 2
    %v3738 = vsel %vm3074, %v3736, %v3737
    %v3739 = vrot.slane %v3669, 2
    %v3740 = vrot.slane %v3670, 2
    %v3741 = vsel %vm3074, %v3739, %v3740
    %v3742 = vrot.slane %v3671, 2
    %v3743 = vrot.slane %v3672, 2
    %v3744 = vsel %vm3074, %v3742, %v3743
    %v3745 = vrot.slane %v3673, 2
    %v3746 = vrot.slane %v3674, 2
    %v3747 = vsel %vm3074, %v3745, %v3746
    %v3748 = vrot.slane %v3675, 2
    %v3749 = vrot.slane %v3676, 2
    %v3750 = vsel %vm3074, %v3748, %v3749
    %v3751 = vrot.slane %v3677, 2
    %v3752 = vrot.slane %v3678, 2
    %v3753 = vsel %vm3074, %v3751, %v3752
    %v3769 = vadd.f32 %v3631, %v3711
    %v3770 = vadd.f32 %v3632, %v3714
    %v3771 = vadd.f32 %v3633, %v3717
    %v3772 = vadd.f32 %v3634, %v3720
    %v3773 = vadd.f32 %v3635, %v3723
    %v3774 = vadd.f32 %v3636, %v3726
    %v3775 = vadd.f32 %v3637, %v3729
    %v3776 = vadd.f32 %v3638, %v3732
    %v3777 = vadd.f32 %v3639, %v3735
    %v3778 = vadd.f32 %v3640, %v3738
    %v3779 = vadd.f32 %v3641, %v3741
    %v3780 = vadd.f32 %v3642, %v3744
    %v3781 = vadd.f32 %v3643, %v3747
    %v3782 = vadd.f32 %v3644, %v3750
    %v3783 = vadd.f32 %v3645, %v3753
    %v3784 = vadd.f32 %v3646, %v3732
    %v3785 = vstv %s2770
    %v3786 = vadd.f32 %v3769, %v3785
    %v3787 = vadd.f32 %v3770, %v3785
    %v3788 = vadd.f32 %v3771, %v3785
    %v3789 = vadd.f32 %v3772, %v3785
    %v3790 = vadd.f32 %v3773, %v3785
    %v3791 = vadd.f32 %v3774, %v3785
    %v3792 = vadd.f32 %v3775, %v3785
    %v3793 = vadd.f32 %v3776, %v3785
    %v3794 = vadd.f32 %v3777, %v3785
    %v3795 = vadd.f32 %v3778, %v3785
    %v3796 = vadd.f32 %v3779, %v3785
    %v3797 = vadd.f32 %v3780, %v3785
    %v3798 = vadd.f32 %v3781, %v3785
    %v3799 = vadd.f32 %v3782, %v3785
    %v3800 = vadd.f32 %v3783, %v3785
    %v3801 = vadd.f32 %v3784, %v3785
    %s3802 = sld [smem:[#allocation3]]
    %v3819 = vrot.slane %v3786, 7
    %v3820 = vrot.slane %v3787, 7
    %v3821 = vrot.slane %v3788, 7
    %v3822 = vrot.slane %v3789, 7
    %v3823 = vrot.slane %v3790, 7
    %v3824 = vrot.slane %v3791, 7
    %v3825 = vrot.slane %v3792, 7
    %v3826 = vrot.slane %v3793, 7
    %v3827 = vrot.slane %v3794, 7
    %v3828 = vrot.slane %v3795, 7
    %v3829 = vrot.slane %v3796, 7
    %v3830 = vrot.slane %v3797, 7
    %v3831 = vrot.slane %v3798, 7
    %v3832 = vrot.slane %v3799, 7
    %v3833 = vrot.slane %v3800, 7
    %v3834 = vrot.slane %v3801, 7
    %v3851 = vsel %vm2822, 0.0, %v3819
    %v3852 = vsel %vm2822, 0.0, %v3820
    %v3853 = vsel %vm2822, 0.0, %v3821
    %v3854 = vsel %vm2822, 0.0, %v3822
    %v3855 = vsel %vm2822, 0.0, %v3823
    %v3856 = vsel %vm2822, 0.0, %v3824
    %v3857 = vsel %vm2822, 0.0, %v3825
    %v3858 = vsel %vm2822, 0.0, %v3826
    %v3859 = vsel %vm2822, 0.0, %v3827
    %v3860 = vsel %vm2822, 0.0, %v3828
    %v3861 = vsel %vm2822, 0.0, %v3829
    %v3862 = vsel %vm2822, 0.0, %v3830
    %v3863 = vsel %vm2822, 0.0, %v3831
    %v3864 = vsel %vm2822, 0.0, %v3832
    %v3865 = vsel %vm2822, 0.0, %v3833
    %v3866 = vsel %vm2822, 0.0, %v3834
    %v3867 = vsel %vm2822, %v3819, 0.0
    %v3868 = vsel %vm2822, %v3820, 0.0
    %v3869 = vsel %vm2822, %v3821, 0.0
    %v3870 = vsel %vm2822, %v3822, 0.0
    %v3871 = vsel %vm2822, %v3823, 0.0
    %v3872 = vsel %vm2822, %v3824, 0.0
    %v3873 = vsel %vm2822, %v3825, 0.0
    %v3874 = vsel %vm2822, %v3826, 0.0
    %v3875 = vsel %vm2822, %v3827, 0.0
    %v3876 = vsel %vm2822, %v3828, 0.0
    %v3877 = vsel %vm2822, %v3829, 0.0
    %v3878 = vsel %vm2822, %v3830, 0.0
    %v3879 = vsel %vm2822, %v3831, 0.0
    %v3880 = vsel %vm2822, %v3832, 0.0
    %v3881 = vsel %vm2822, %v3833, 0.0
    %v3882 = vsel %vm2822, %v3834, 0.0
    %s3883 = sld [smem:[#allocation6]]
    %v3884 = vstv %s3883
    %v3885 = vmul.f32 %v2823, %v3884
    %v3886 = vmul.f32 %v3851, %v3884
    %v3887 = vmul.f32 %v3852, %v3884
    %v3888 = vmul.f32 %v3853, %v3884
    %v3889 = vmul.f32 %v3854, %v3884
    %v3890 = vmul.f32 %v3855, %v3884
    %v3891 = vmul.f32 %v3856, %v3884
    %v3892 = vmul.f32 %v3857, %v3884
    %v3893 = vmul.f32 %v3859, %v3884
    %v3894 = vmul.f32 %v3860, %v3884
    %v3895 = vmul.f32 %v3861, %v3884
    %v3896 = vmul.f32 %v3862, %v3884
    %v3897 = vmul.f32 %v3863, %v3884
    %v3898 = vmul.f32 %v3864, %v3884
    %v3899 = vmul.f32 %v3865, %v3884
    %s3900 = sld [smem:[#allocation6 + $0x1]]
    %v3901 = vstv %s3900
    %v3902 = vmul.f32 %v2823, %v3901
    %v3903 = vmul.f32 %v2840, %v3901
    %v3904 = vmul.f32 %v3851, %v3901
    %v3905 = vmul.f32 %v3867, %v3901
    %v3906 = vmul.f32 %v3852, %v3901
    %v3907 = vmul.f32 %v3868, %v3901
    %v3908 = vmul.f32 %v3853, %v3901
    %v3909 = vmul.f32 %v3869, %v3901
    %v3910 = vmul.f32 %v3854, %v3901
    %v3911 = vmul.f32 %v3870, %v3901
    %v3912 = vmul.f32 %v3855, %v3901
    %v3913 = vmul.f32 %v3871, %v3901
    %v3914 = vmul.f32 %v3856, %v3901
    %v3915 = vmul.f32 %v3872, %v3901
    %v3916 = vmul.f32 %v3857, %v3901
    %v3917 = vmul.f32 %v3873, %v3901
    %v3918 = vmul.f32 %v3859, %v3901
    %v3919 = vmul.f32 %v3875, %v3901
    %v3920 = vmul.f32 %v3860, %v3901
    %v3921 = vmul.f32 %v3876, %v3901
    %v3922 = vmul.f32 %v3861, %v3901
    %v3923 = vmul.f32 %v3877, %v3901
    %v3924 = vmul.f32 %v3862, %v3901
    %v3925 = vmul.f32 %v3878, %v3901
    %v3926 = vmul.f32 %v3863, %v3901
    %v3927 = vmul.f32 %v3879, %v3901
    %v3928 = vmul.f32 %v3864, %v3901
    %v3929 = vmul.f32 %v3880, %v3901
    %v3930 = vmul.f32 %v3865, %v3901
    %v3931 = vmul.f32 %v3881, %v3901
    %v3962 = vrot.slane %v3902, 1
    %v3963 = vrot.slane %v3903, 1
    %v3964 = vsel %vm2936, %v3962, %v3963
    %v3965 = vrot.slane %v3904, 1
    %v3966 = vrot.slane %v3905, 1
    %v3967 = vsel %vm2936, %v3965, %v3966
    %v3968 = vrot.slane %v3906, 1
    %v3969 = vrot.slane %v3907, 1
    %v3970 = vsel %vm2936, %v3968, %v3969
    %v3971 = vrot.slane %v3908, 1
    %v3972 = vrot.slane %v3909, 1
    %v3973 = vsel %vm2936, %v3971, %v3972
    %v3974 = vrot.slane %v3910, 1
    %v3975 = vrot.slane %v3911, 1
    %v3976 = vsel %vm2936, %v3974, %v3975
    %v3977 = vrot.slane %v3912, 1
    %v3978 = vrot.slane %v3913, 1
    %v3979 = vsel %vm2936, %v3977, %v3978
    %v3980 = vrot.slane %v3914, 1
    %v3981 = vrot.slane %v3915, 1
    %v3982 = vsel %vm2936, %v3980, %v3981
    %v3983 = vrot.slane %v3916, 1
    %v3984 = vrot.slane %v3917, 1
    %v3985 = vsel %vm2936, %v3983, %v3984
    %v3986 = vrot.slane %v3918, 1
    %v3987 = vrot.slane %v3919, 1
    %v3988 = vsel %vm2936, %v3986, %v3987
    %v3989 = vrot.slane %v3920, 1
    %v3990 = vrot.slane %v3921, 1
    %v3991 = vsel %vm2936, %v3989, %v3990
    %v3992 = vrot.slane %v3922, 1
    %v3993 = vrot.slane %v3923, 1
    %v3994 = vsel %vm2936, %v3992, %v3993
    %v3995 = vrot.slane %v3924, 1
    %v3996 = vrot.slane %v3925, 1
    %v3997 = vsel %vm2936, %v3995, %v3996
    %v3998 = vrot.slane %v3926, 1
    %v3999 = vrot.slane %v3927, 1
    %v4000 = vsel %vm2936, %v3998, %v3999
    %v4001 = vrot.slane %v3928, 1
    %v4002 = vrot.slane %v3929, 1
    %v4003 = vsel %vm2936, %v4001, %v4002
    %v4004 = vrot.slane %v3930, 1
    %v4005 = vrot.slane %v3931, 1
    %v4006 = vsel %vm2936, %v4004, %v4005
    %v4022 = vadd.f32 %v3885, %v3964
    %v4023 = vadd.f32 %v3886, %v3967
    %v4024 = vadd.f32 %v3887, %v3970
    %v4025 = vadd.f32 %v3888, %v3973
    %v4026 = vadd.f32 %v3889, %v3976
    %v4027 = vadd.f32 %v3890, %v3979
    %v4028 = vadd.f32 %v3891, %v3982
    %v4029 = vadd.f32 %v3892, %v3985
    %v4030 = vadd.f32 %v3893, %v3988
    %v4031 = vadd.f32 %v3894, %v3991
    %v4032 = vadd.f32 %v3895, %v3994
    %v4033 = vadd.f32 %v3896, %v3997
    %v4034 = vadd.f32 %v3897, %v4000
    %v4035 = vadd.f32 %v3898, %v4003
    %v4036 = vadd.f32 %v3899, %v4006
    %s4037 = sld [smem:[#allocation6 + $0x2]]
    %v4038 = vstv %s4037
    %v4039 = vmul.f32 %v2823, %v4038
    %v4040 = vmul.f32 %v2840, %v4038
    %v4041 = vmul.f32 %v3851, %v4038
    %v4042 = vmul.f32 %v3867, %v4038
    %v4043 = vmul.f32 %v3852, %v4038
    %v4044 = vmul.f32 %v3868, %v4038
    %v4045 = vmul.f32 %v3853, %v4038
    %v4046 = vmul.f32 %v3869, %v4038
    %v4047 = vmul.f32 %v3854, %v4038
    %v4048 = vmul.f32 %v3870, %v4038
    %v4049 = vmul.f32 %v3855, %v4038
    %v4050 = vmul.f32 %v3871, %v4038
    %v4051 = vmul.f32 %v3856, %v4038
    %v4052 = vmul.f32 %v3872, %v4038
    %v4053 = vmul.f32 %v3857, %v4038
    %v4054 = vmul.f32 %v3873, %v4038
    %v4055 = vmul.f32 %v3859, %v4038
    %v4056 = vmul.f32 %v3875, %v4038
    %v4057 = vmul.f32 %v3860, %v4038
    %v4058 = vmul.f32 %v3876, %v4038
    %v4059 = vmul.f32 %v3861, %v4038
    %v4060 = vmul.f32 %v3877, %v4038
    %v4061 = vmul.f32 %v3862, %v4038
    %v4062 = vmul.f32 %v3878, %v4038
    %v4063 = vmul.f32 %v3863, %v4038
    %v4064 = vmul.f32 %v3879, %v4038
    %v4065 = vmul.f32 %v3864, %v4038
    %v4066 = vmul.f32 %v3880, %v4038
    %v4067 = vmul.f32 %v3865, %v4038
    %v4068 = vmul.f32 %v3881, %v4038
    %v4099 = vrot.slane %v4039, 2
    %v4100 = vrot.slane %v4040, 2
    %v4101 = vsel %vm3074, %v4099, %v4100
    %v4102 = vrot.slane %v4041, 2
    %v4103 = vrot.slane %v4042, 2
    %v4104 = vsel %vm3074, %v4102, %v4103
    %v4105 = vrot.slane %v4043, 2
    %v4106 = vrot.slane %v4044, 2
    %v4107 = vsel %vm3074, %v4105, %v4106
    %v4108 = vrot.slane %v4045, 2
    %v4109 = vrot.slane %v4046, 2
    %v4110 = vsel %vm3074, %v4108, %v4109
    %v4111 = vrot.slane %v4047, 2
    %v4112 = vrot.slane %v4048, 2
    %v4113 = vsel %vm3074, %v4111, %v4112
    %v4114 = vrot.slane %v4049, 2
    %v4115 = vrot.slane %v4050, 2
    %v4116 = vsel %vm3074, %v4114, %v4115
    %v4117 = vrot.slane %v4051, 2
    %v4118 = vrot.slane %v4052, 2
    %v4119 = vsel %vm3074, %v4117, %v4118
    %v4120 = vrot.slane %v4053, 2
    %v4121 = vrot.slane %v4054, 2
    %v4122 = vsel %vm3074, %v4120, %v4121
    %v4123 = vrot.slane %v4055, 2
    %v4124 = vrot.slane %v4056, 2
    %v4125 = vsel %vm3074, %v4123, %v4124
    %v4126 = vrot.slane %v4057, 2
    %v4127 = vrot.slane %v4058, 2
    %v4128 = vsel %vm3074, %v4126, %v4127
    %v4129 = vrot.slane %v4059, 2
    %v4130 = vrot.slane %v4060, 2
    %v4131 = vsel %vm3074, %v4129, %v4130
    %v4132 = vrot.slane %v4061, 2
    %v4133 = vrot.slane %v4062, 2
    %v4134 = vsel %vm3074, %v4132, %v4133
    %v4135 = vrot.slane %v4063, 2
    %v4136 = vrot.slane %v4064, 2
    %v4137 = vsel %vm3074, %v4135, %v4136
    %v4138 = vrot.slane %v4065, 2
    %v4139 = vrot.slane %v4066, 2
    %v4140 = vsel %vm3074, %v4138, %v4139
    %v4141 = vrot.slane %v4067, 2
    %v4142 = vrot.slane %v4068, 2
    %v4143 = vsel %vm3074, %v4141, %v4142
    %v4159 = vadd.f32 %v4022, %v4101
    %v4160 = vadd.f32 %v4023, %v4104
    %v4161 = vadd.f32 %v4024, %v4107
    %v4162 = vadd.f32 %v4025, %v4110
    %v4163 = vadd.f32 %v4026, %v4113
    %v4164 = vadd.f32 %v4027, %v4116
    %v4165 = vadd.f32 %v4028, %v4119
    %v4166 = vadd.f32 %v4029, %v4122
    %v4167 = vadd.f32 %v4030, %v4125
    %v4168 = vadd.f32 %v4031, %v4128
    %v4169 = vadd.f32 %v4032, %v4131
    %v4170 = vadd.f32 %v4033, %v4134
    %v4171 = vadd.f32 %v4034, %v4137
    %v4172 = vadd.f32 %v4035, %v4140
    %v4173 = vadd.f32 %v4036, %v4143
    %s4174 = sld [smem:[#allocation6 + $0x3]]
    %v4175 = vstv %s4174
    %v4176 = vmul.f32 %v3851, %v4175
    %v4177 = vmul.f32 %v3852, %v4175
    %v4178 = vmul.f32 %v3853, %v4175
    %v4179 = vmul.f32 %v3854, %v4175
    %v4180 = vmul.f32 %v3855, %v4175
    %v4181 = vmul.f32 %v3856, %v4175
    %v4182 = vmul.f32 %v3857, %v4175
    %v4183 = vmul.f32 %v3858, %v4175
    %v4184 = vmul.f32 %v3859, %v4175
    %v4185 = vmul.f32 %v3860, %v4175
    %v4186 = vmul.f32 %v3861, %v4175
    %v4187 = vmul.f32 %v3862, %v4175
    %v4188 = vmul.f32 %v3863, %v4175
    %v4189 = vmul.f32 %v3864, %v4175
    %v4190 = vmul.f32 %v3865, %v4175
    %v4191 = vmul.f32 %v3866, %v4175
    %v4192 = vadd.f32 %v4159, %v4176
    %v4193 = vadd.f32 %v4160, %v4177
    %v4194 = vadd.f32 %v4161, %v4178
    %v4195 = vadd.f32 %v4162, %v4179
    %v4196 = vadd.f32 %v4163, %v4180
    %v4197 = vadd.f32 %v4164, %v4181
    %v4198 = vadd.f32 %v4165, %v4182
    %v4199 = vadd.f32 %v4166, %v4183
    %v4200 = vadd.f32 %v4159, %v4184
    %v4201 = vadd.f32 %v4167, %v4185
    %v4202 = vadd.f32 %v4168, %v4186
    %v4203 = vadd.f32 %v4169, %v4187
    %v4204 = vadd.f32 %v4170, %v4188
    %v4205 = vadd.f32 %v4171, %v4189
    %v4206 = vadd.f32 %v4172, %v4190
    %v4207 = vadd.f32 %v4173, %v4191
    %s4208 = sld [smem:[#allocation6 + $0x4]]
    %v4209 = vstv %s4208
    %v4210 = vmul.f32 %v3851, %v4209
    %v4211 = vmul.f32 %v3867, %v4209
    %v4212 = vmul.f32 %v3852, %v4209
    %v4213 = vmul.f32 %v3868, %v4209
    %v4214 = vmul.f32 %v3853, %v4209
    %v4215 = vmul.f32 %v3869, %v4209
    %v4216 = vmul.f32 %v3854, %v4209
    %v4217 = vmul.f32 %v3870, %v4209
    %v4218 = vmul.f32 %v3855, %v4209
    %v4219 = vmul.f32 %v3871, %v4209
    %v4220 = vmul.f32 %v3856, %v4209
    %v4221 = vmul.f32 %v3872, %v4209
    %v4222 = vmul.f32 %v3857, %v4209
    %v4223 = vmul.f32 %v3873, %v4209
    %v4224 = vmul.f32 %v3858, %v4209
    %v4225 = vmul.f32 %v3874, %v4209
    %v4226 = vmul.f32 %v3859, %v4209
    %v4227 = vmul.f32 %v3875, %v4209
    %v4228 = vmul.f32 %v3860, %v4209
    %v4229 = vmul.f32 %v3876, %v4209
    %v4230 = vmul.f32 %v3861, %v4209
    %v4231 = vmul.f32 %v3877, %v4209
    %v4232 = vmul.f32 %v3862, %v4209
    %v4233 = vmul.f32 %v3878, %v4209
    %v4234 = vmul.f32 %v3863, %v4209
    %v4235 = vmul.f32 %v3879, %v4209
    %v4236 = vmul.f32 %v3864, %v4209
    %v4237 = vmul.f32 %v3880, %v4209
    %v4238 = vmul.f32 %v3865, %v4209
    %v4239 = vmul.f32 %v3881, %v4209
    %v4240 = vmul.f32 %v3866, %v4209
    %v4241 = vmul.f32 %v3882, %v4209
    %v4274 = vrot.slane %v4210, 1
    %v4275 = vrot.slane %v4211, 1
    %v4276 = vsel %vm2936, %v4274, %v4275
    %v4277 = vrot.slane %v4212, 1
    %v4278 = vrot.slane %v4213, 1
    %v4279 = vsel %vm2936, %v4277, %v4278
    %v4280 = vrot.slane %v4214, 1
    %v4281 = vrot.slane %v4215, 1
    %v4282 = vsel %vm2936, %v4280, %v4281
    %v4283 = vrot.slane %v4216, 1
    %v4284 = vrot.slane %v4217, 1
    %v4285 = vsel %vm2936, %v4283, %v4284
    %v4286 = vrot.slane %v4218, 1
    %v4287 = vrot.slane %v4219, 1
    %v4288 = vsel %vm2936, %v4286, %v4287
    %v4289 = vrot.slane %v4220, 1
    %v4290 = vrot.slane %v4221, 1
    %v4291 = vsel %vm2936, %v4289, %v4290
    %v4292 = vrot.slane %v4222, 1
    %v4293 = vrot.slane %v4223, 1
    %v4294 = vsel %vm2936, %v4292, %v4293
    %v4295 = vrot.slane %v4224, 1
    %v4296 = vrot.slane %v4225, 1
    %v4297 = vsel %vm2936, %v4295, %v4296
    %v4298 = vrot.slane %v4226, 1
    %v4299 = vrot.slane %v4227, 1
    %v4300 = vsel %vm2936, %v4298, %v4299
    %v4301 = vrot.slane %v4228, 1
    %v4302 = vrot.slane %v4229, 1
    %v4303 = vsel %vm2936, %v4301, %v4302
    %v4304 = vrot.slane %v4230, 1
    %v4305 = vrot.slane %v4231, 1
    %v4306 = vsel %vm2936, %v4304, %v4305
    %v4307 = vrot.slane %v4232, 1
    %v4308 = vrot.slane %v4233, 1
    %v4309 = vsel %vm2936, %v4307, %v4308
    %v4310 = vrot.slane %v4234, 1
    %v4311 = vrot.slane %v4235, 1
    %v4312 = vsel %vm2936, %v4310, %v4311
    %v4313 = vrot.slane %v4236, 1
    %v4314 = vrot.slane %v4237, 1
    %v4315 = vsel %vm2936, %v4313, %v4314
    %v4316 = vrot.slane %v4238, 1
    %v4317 = vrot.slane %v4239, 1
    %v4318 = vsel %vm2936, %v4316, %v4317
    %v4319 = vrot.slane %v4240, 1
    %v4320 = vrot.slane %v4241, 1
    %v4321 = vsel %vm2936, %v4319, %v4320
    %v4338 = vadd.f32 %v4192, %v4276
    %v4339 = vadd.f32 %v4193, %v4279
    %v4340 = vadd.f32 %v4194, %v4282
    %v4341 = vadd.f32 %v4195, %v4285
    %v4342 = vadd.f32 %v4196, %v4288
    %v4343 = vadd.f32 %v4197, %v4291
    %v4344 = vadd.f32 %v4198, %v4294
    %v4345 = vadd.f32 %v4199, %v4297
    %v4346 = vadd.f32 %v4200, %v4300
    %v4347 = vadd.f32 %v4201, %v4303
    %v4348 = vadd.f32 %v4202, %v4306
    %v4349 = vadd.f32 %v4203, %v4309
    %v4350 = vadd.f32 %v4204, %v4312
    %v4351 = vadd.f32 %v4205, %v4315
    %v4352 = vadd.f32 %v4206, %v4318
    %v4353 = vadd.f32 %v4207, %v4321
    %s4354 = sld [smem:[#allocation6 + $0x5]]
    %v4355 = vstv %s4354
    %v4356 = vmul.f32 %v3851, %v4355
    %v4357 = vmul.f32 %v3867, %v4355
    %v4358 = vmul.f32 %v3852, %v4355
    %v4359 = vmul.f32 %v3868, %v4355
    %v4360 = vmul.f32 %v3853, %v4355
    %v4361 = vmul.f32 %v3869, %v4355
    %v4362 = vmul.f32 %v3854, %v4355
    %v4363 = vmul.f32 %v3870, %v4355
    %v4364 = vmul.f32 %v3855, %v4355
    %v4365 = vmul.f32 %v3871, %v4355
    %v4366 = vmul.f32 %v3856, %v4355
    %v4367 = vmul.f32 %v3872, %v4355
    %v4368 = vmul.f32 %v3857, %v4355
    %v4369 = vmul.f32 %v3873, %v4355
    %v4370 = vmul.f32 %v3858, %v4355
    %v4371 = vmul.f32 %v3874, %v4355
    %v4372 = vmul.f32 %v3859, %v4355
    %v4373 = vmul.f32 %v3875, %v4355
    %v4374 = vmul.f32 %v3860, %v4355
    %v4375 = vmul.f32 %v3876, %v4355
    %v4376 = vmul.f32 %v3861, %v4355
    %v4377 = vmul.f32 %v3877, %v4355
    %v4378 = vmul.f32 %v3862, %v4355
    %v4379 = vmul.f32 %v3878, %v4355
    %v4380 = vmul.f32 %v3863, %v4355
    %v4381 = vmul.f32 %v3879, %v4355
    %v4382 = vmul.f32 %v3864, %v4355
    %v4383 = vmul.f32 %v3880, %v4355
    %v4384 = vmul.f32 %v3865, %v4355
    %v4385 = vmul.f32 %v3881, %v4355
    %v4386 = vmul.f32 %v3866, %v4355
    %v4387 = vmul.f32 %v3882, %v4355
    %v4420 = vrot.slane %v4356, 2
    %v4421 = vrot.slane %v4357, 2
    %v4422 = vsel %vm3074, %v4420, %v4421
    %v4423 = vrot.slane %v4358, 2
    %v4424 = vrot.slane %v4359, 2
    %v4425 = vsel %vm3074, %v4423, %v4424
    %v4426 = vrot.slane %v4360, 2
    %v4427 = vrot.slane %v4361, 2
    %v4428 = vsel %vm3074, %v4426, %v4427
    %v4429 = vrot.slane %v4362, 2
    %v4430 = vrot.slane %v4363, 2
    %v4431 = vsel %vm3074, %v4429, %v4430
    %v4432 = vrot.slane %v4364, 2
    %v4433 = vrot.slane %v4365, 2
    %v4434 = vsel %vm3074, %v4432, %v4433
    %v4435 = vrot.slane %v4366, 2
    %v4436 = vrot.slane %v4367, 2
    %v4437 = vsel %vm3074, %v4435, %v4436
    %v4438 = vrot.slane %v4368, 2
    %v4439 = vrot.slane %v4369, 2
    %v4440 = vsel %vm3074, %v4438, %v4439
    %v4441 = vrot.slane %v4370, 2
    %v4442 = vrot.slane %v4371, 2
    %v4443 = vsel %vm3074, %v4441, %v4442
    %v4444 = vrot.slane %v4372, 2
    %v4445 = vrot.slane %v4373, 2
    %v4446 = vsel %vm3074, %v4444, %v4445
    %v4447 = vrot.slane %v4374, 2
    %v4448 = vrot.slane %v4375, 2
    %v4449 = vsel %vm3074, %v4447, %v4448
    %v4450 = vrot.slane %v4376, 2
    %v4451 = vrot.slane %v4377, 2
    %v4452 = vsel %vm3074, %v4450, %v4451
    %v4453 = vrot.slane %v4378, 2
    %v4454 = vrot.slane %v4379, 2
    %v4455 = vsel %vm3074, %v4453, %v4454
    %v4456 = vrot.slane %v4380, 2
    %v4457 = vrot.slane %v4381, 2
    %v4458 = vsel %vm3074, %v4456, %v4457
    %v4459 = vrot.slane %v4382, 2
    %v4460 = vrot.slane %v4383, 2
    %v4461 = vsel %vm3074, %v4459, %v4460
    %v4462 = vrot.slane %v4384, 2
    %v4463 = vrot.slane %v4385, 2
    %v4464 = vsel %vm3074, %v4462, %v4463
    %v4465 = vrot.slane %v4386, 2
    %v4466 = vrot.slane %v4387, 2
    %v4467 = vsel %vm3074, %v4465, %v4466
    %v4484 = vadd.f32 %v4338, %v4422
    %v4485 = vadd.f32 %v4339, %v4425
    %v4486 = vadd.f32 %v4340, %v4428
    %v4487 = vadd.f32 %v4341, %v4431
    %v4488 = vadd.f32 %v4342, %v4434
    %v4489 = vadd.f32 %v4343, %v4437
    %v4490 = vadd.f32 %v4344, %v4440
    %v4491 = vadd.f32 %v4345, %v4443
    %v4492 = vadd.f32 %v4346, %v4446
    %v4493 = vadd.f32 %v4347, %v4449
    %v4494 = vadd.f32 %v4348, %v4452
    %v4495 = vadd.f32 %v4349, %v4455
    %v4496 = vadd.f32 %v4350, %v4458
    %v4497 = vadd.f32 %v4351, %v4461
    %v4498 = vadd.f32 %v4352, %v4464
    %v4499 = vadd.f32 %v4353, %v4467
    %s4500 = sld [smem:[#allocation6 + $0x6]]
    %v4501 = vstv %s4500
    %v4502 = vmul.f32 %v3852, %v4501
    %v4503 = vmul.f32 %v3853, %v4501
    %v4504 = vmul.f32 %v3854, %v4501
    %v4505 = vmul.f32 %v3855, %v4501
    %v4506 = vmul.f32 %v3856, %v4501
    %v4507 = vmul.f32 %v3857, %v4501
    %v4508 = vmul.f32 %v3858, %v4501
    %v4509 = vmul.f32 %v2823, %v4501
    %v4510 = vmul.f32 %v3860, %v4501
    %v4511 = vmul.f32 %v3861, %v4501
    %v4512 = vmul.f32 %v3862, %v4501
    %v4513 = vmul.f32 %v3863, %v4501
    %v4514 = vmul.f32 %v3864, %v4501
    %v4515 = vmul.f32 %v3865, %v4501
    %v4516 = vmul.f32 %v3866, %v4501
    %v4517 = vadd.f32 %v4484, %v4502
    %v4518 = vadd.f32 %v4485, %v4503
    %v4519 = vadd.f32 %v4486, %v4504
    %v4520 = vadd.f32 %v4487, %v4505
    %v4521 = vadd.f32 %v4488, %v4506
    %v4522 = vadd.f32 %v4489, %v4507
    %v4523 = vadd.f32 %v4490, %v4508
    %v4524 = vadd.f32 %v4491, %v4509
    %v4525 = vadd.f32 %v4492, %v4510
    %v4526 = vadd.f32 %v4493, %v4511
    %v4527 = vadd.f32 %v4494, %v4512
    %v4528 = vadd.f32 %v4495, %v4513
    %v4529 = vadd.f32 %v4496, %v4514
    %v4530 = vadd.f32 %v4497, %v4515
    %v4531 = vadd.f32 %v4498, %v4516
    %v4532 = vadd.f32 %v4499, %v4509
    %s4533 = sld [smem:[#allocation6 + $0x7]]
    %v4534 = vstv %s4533
    %v4535 = vmul.f32 %v3852, %v4534
    %v4536 = vmul.f32 %v3868, %v4534
    %v4537 = vmul.f32 %v3853, %v4534
    %v4538 = vmul.f32 %v3869, %v4534
    %v4539 = vmul.f32 %v3854, %v4534
    %v4540 = vmul.f32 %v3870, %v4534
    %v4541 = vmul.f32 %v3855, %v4534
    %v4542 = vmul.f32 %v3871, %v4534
    %v4543 = vmul.f32 %v3856, %v4534
    %v4544 = vmul.f32 %v3872, %v4534
    %v4545 = vmul.f32 %v3857, %v4534
    %v4546 = vmul.f32 %v3873, %v4534
    %v4547 = vmul.f32 %v3858, %v4534
    %v4548 = vmul.f32 %v3874, %v4534
    %v4549 = vmul.f32 %v2823, %v4534
    %v4550 = vmul.f32 %v2840, %v4534
    %v4551 = vmul.f32 %v3860, %v4534
    %v4552 = vmul.f32 %v3876, %v4534
    %v4553 = vmul.f32 %v3861, %v4534
    %v4554 = vmul.f32 %v3877, %v4534
    %v4555 = vmul.f32 %v3862, %v4534
    %v4556 = vmul.f32 %v3878, %v4534
    %v4557 = vmul.f32 %v3863, %v4534
    %v4558 = vmul.f32 %v3879, %v4534
    %v4559 = vmul.f32 %v3864, %v4534
    %v4560 = vmul.f32 %v3880, %v4534
    %v4561 = vmul.f32 %v3865, %v4534
    %v4562 = vmul.f32 %v3881, %v4534
    %v4563 = vmul.f32 %v3866, %v4534
    %v4564 = vmul.f32 %v3882, %v4534
    %v4595 = vrot.slane %v4535, 1
    %v4596 = vrot.slane %v4536, 1
    %v4597 = vsel %vm2936, %v4595, %v4596
    %v4598 = vrot.slane %v4537, 1
    %v4599 = vrot.slane %v4538, 1
    %v4600 = vsel %vm2936, %v4598, %v4599
    %v4601 = vrot.slane %v4539, 1
    %v4602 = vrot.slane %v4540, 1
    %v4603 = vsel %vm2936, %v4601, %v4602
    %v4604 = vrot.slane %v4541, 1
    %v4605 = vrot.slane %v4542, 1
    %v4606 = vsel %vm2936, %v4604, %v4605
    %v4607 = vrot.slane %v4543, 1
    %v4608 = vrot.slane %v4544, 1
    %v4609 = vsel %vm2936, %v4607, %v4608
    %v4610 = vrot.slane %v4545, 1
    %v4611 = vrot.slane %v4546, 1
    %v4612 = vsel %vm2936, %v4610, %v4611
    %v4613 = vrot.slane %v4547, 1
    %v4614 = vrot.slane %v4548, 1
    %v4615 = vsel %vm2936, %v4613, %v4614
    %v4616 = vrot.slane %v4549, 1
    %v4617 = vrot.slane %v4550, 1
    %v4618 = vsel %vm2936, %v4616, %v4617
    %v4619 = vrot.slane %v4551, 1
    %v4620 = vrot.slane %v4552, 1
    %v4621 = vsel %vm2936, %v4619, %v4620
    %v4622 = vrot.slane %v4553, 1
    %v4623 = vrot.slane %v4554, 1
    %v4624 = vsel %vm2936, %v4622, %v4623
    %v4625 = vrot.slane %v4555, 1
    %v4626 = vrot.slane %v4556, 1
    %v4627 = vsel %vm2936, %v4625, %v4626
    %v4628 = vrot.slane %v4557, 1
    %v4629 = vrot.slane %v4558, 1
    %v4630 = vsel %vm2936, %v4628, %v4629
    %v4631 = vrot.slane %v4559, 1
    %v4632 = vrot.slane %v4560, 1
    %v4633 = vsel %vm2936, %v4631, %v4632
    %v4634 = vrot.slane %v4561, 1
    %v4635 = vrot.slane %v4562, 1
    %v4636 = vsel %vm2936, %v4634, %v4635
    %v4637 = vrot.slane %v4563, 1
    %v4638 = vrot.slane %v4564, 1
    %v4639 = vsel %vm2936, %v4637, %v4638
    %v4655 = vadd.f32 %v4517, %v4597
    %v4656 = vadd.f32 %v4518, %v4600
    %v4657 = vadd.f32 %v4519, %v4603
    %v4658 = vadd.f32 %v4520, %v4606
    %v4659 = vadd.f32 %v4521, %v4609
    %v4660 = vadd.f32 %v4522, %v4612
    %v4661 = vadd.f32 %v4523, %v4615
    %v4662 = vadd.f32 %v4524, %v4618
    %v4663 = vadd.f32 %v4525, %v4621
    %v4664 = vadd.f32 %v4526, %v4624
    %v4665 = vadd.f32 %v4527, %v4627
    %v4666 = vadd.f32 %v4528, %v4630
    %v4667 = vadd.f32 %v4529, %v4633
    %v4668 = vadd.f32 %v4530, %v4636
    %v4669 = vadd.f32 %v4531, %v4639
    %v4670 = vadd.f32 %v4532, %v4618
    %s4671 = sld [smem:[#allocation6 + $0x8]]
    %v4672 = vstv %s4671
    %v4673 = vmul.f32 %v3852, %v4672
    %v4674 = vmul.f32 %v3868, %v4672
    %v4675 = vmul.f32 %v3853, %v4672
    %v4676 = vmul.f32 %v3869, %v4672
    %v4677 = vmul.f32 %v3854, %v4672
    %v4678 = vmul.f32 %v3870, %v4672
    %v4679 = vmul.f32 %v3855, %v4672
    %v4680 = vmul.f32 %v3871, %v4672
    %v4681 = vmul.f32 %v3856, %v4672
    %v4682 = vmul.f32 %v3872, %v4672
    %v4683 = vmul.f32 %v3857, %v4672
    %v4684 = vmul.f32 %v3873, %v4672
    %v4685 = vmul.f32 %v3858, %v4672
    %v4686 = vmul.f32 %v3874, %v4672
    %v4687 = vmul.f32 %v2823, %v4672
    %v4688 = vmul.f32 %v2840, %v4672
    %v4689 = vmul.f32 %v3860, %v4672
    %v4690 = vmul.f32 %v3876, %v4672
    %v4691 = vmul.f32 %v3861, %v4672
    %v4692 = vmul.f32 %v3877, %v4672
    %v4693 = vmul.f32 %v3862, %v4672
    %v4694 = vmul.f32 %v3878, %v4672
    %v4695 = vmul.f32 %v3863, %v4672
    %v4696 = vmul.f32 %v3879, %v4672
    %v4697 = vmul.f32 %v3864, %v4672
    %v4698 = vmul.f32 %v3880, %v4672
    %v4699 = vmul.f32 %v3865, %v4672
    %v4700 = vmul.f32 %v3881, %v4672
    %v4701 = vmul.f32 %v3866, %v4672
    %v4702 = vmul.f32 %v3882, %v4672
    %v4733 = vrot.slane %v4673, 2
    %v4734 = vrot.slane %v4674, 2
    %v4735 = vsel %vm3074, %v4733, %v4734
    %v4736 = vrot.slane %v4675, 2
    %v4737 = vrot.slane %v4676, 2
    %v4738 = vsel %vm3074, %v4736, %v4737
    %v4739 = vrot.slane %v4677, 2
    %v4740 = vrot.slane %v4678, 2
    %v4741 = vsel %vm3074, %v4739, %v4740
    %v4742 = vrot.slane %v4679, 2
    %v4743 = vrot.slane %v4680, 2
    %v4744 = vsel %vm3074, %v4742, %v4743
    %v4745 = vrot.slane %v4681, 2
    %v4746 = vrot.slane %v4682, 2
    %v4747 = vsel %vm3074, %v4745, %v4746
    %v4748 = vrot.slane %v4683, 2
    %v4749 = vrot.slane %v4684, 2
    %v4750 = vsel %vm3074, %v4748, %v4749
    %v4751 = vrot.slane %v4685, 2
    %v4752 = vrot.slane %v4686, 2
    %v4753 = vsel %vm3074, %v4751, %v4752
    %v4754 = vrot.slane %v4687, 2
    %v4755 = vrot.slane %v4688, 2
    %v4756 = vsel %vm3074, %v4754, %v4755
    %v4757 = vrot.slane %v4689, 2
    %v4758 = vrot.slane %v4690, 2
    %v4759 = vsel %vm3074, %v4757, %v4758
    %v4760 = vrot.slane %v4691, 2
    %v4761 = vrot.slane %v4692, 2
    %v4762 = vsel %vm3074, %v4760, %v4761
    %v4763 = vrot.slane %v4693, 2
    %v4764 = vrot.slane %v4694, 2
    %v4765 = vsel %vm3074, %v4763, %v4764
    %v4766 = vrot.slane %v4695, 2
    %v4767 = vrot.slane %v4696, 2
    %v4768 = vsel %vm3074, %v4766, %v4767
    %v4769 = vrot.slane %v4697, 2
    %v4770 = vrot.slane %v4698, 2
    %v4771 = vsel %vm3074, %v4769, %v4770
    %v4772 = vrot.slane %v4699, 2
    %v4773 = vrot.slane %v4700, 2
    %v4774 = vsel %vm3074, %v4772, %v4773
    %v4775 = vrot.slane %v4701, 2
    %v4776 = vrot.slane %v4702, 2
    %v4777 = vsel %vm3074, %v4775, %v4776
    %v4793 = vadd.f32 %v4655, %v4735
    %v4794 = vadd.f32 %v4656, %v4738
    %v4795 = vadd.f32 %v4657, %v4741
    %v4796 = vadd.f32 %v4658, %v4744
    %v4797 = vadd.f32 %v4659, %v4747
    %v4798 = vadd.f32 %v4660, %v4750
    %v4799 = vadd.f32 %v4661, %v4753
    %v4800 = vadd.f32 %v4662, %v4756
    %v4801 = vadd.f32 %v4663, %v4759
    %v4802 = vadd.f32 %v4664, %v4762
    %v4803 = vadd.f32 %v4665, %v4765
    %v4804 = vadd.f32 %v4666, %v4768
    %v4805 = vadd.f32 %v4667, %v4771
    %v4806 = vadd.f32 %v4668, %v4774
    %v4807 = vadd.f32 %v4669, %v4777
    %v4808 = vadd.f32 %v4670, %v4756
    %v4809 = vstv %s3802
    %v4810 = vadd.f32 %v4793, %v4809
    %v4811 = vadd.f32 %v4794, %v4809
    %v4812 = vadd.f32 %v4795, %v4809
    %v4813 = vadd.f32 %v4796, %v4809
    %v4814 = vadd.f32 %v4797, %v4809
    %v4815 = vadd.f32 %v4798, %v4809
    %v4816 = vadd.f32 %v4799, %v4809
    %v4817 = vadd.f32 %v4800, %v4809
    %v4818 = vadd.f32 %v4801, %v4809
    %v4819 = vadd.f32 %v4802, %v4809
    %v4820 = vadd.f32 %v4803, %v4809
    %v4821 = vadd.f32 %v4804, %v4809
    %v4822 = vadd.f32 %v4805, %v4809
    %v4823 = vadd.f32 %v4806, %v4809
    %v4824 = vadd.f32 %v4807, %v4809
    %v4825 = vadd.f32 %v4808, %v4809
    %v4842 = vrot.slane %v4810, 7
    %v4843 = vrot.slane %v4811, 7
    %v4844 = vrot.slane %v4812, 7
    %v4845 = vrot.slane %v4813, 7
    %v4846 = vrot.slane %v4814, 7
    %v4847 = vrot.slane %v4815, 7
    %v4848 = vrot.slane %v4816, 7
    %v4849 = vrot.slane %v4817, 7
    %v4850 = vrot.slane %v4818, 7
    %v4851 = vrot.slane %v4819, 7
    %v4852 = vrot.slane %v4820, 7
    %v4853 = vrot.slane %v4821, 7
    %v4854 = vrot.slane %v4822, 7
    %v4855 = vrot.slane %v4823, 7
    %v4856 = vrot.slane %v4824, 7
    %v4857 = vrot.slane %v4825, 7
    %v4874 = vsel %vm2822, 0.0, %v4842
    %v4875 = vsel %vm2822, 0.0, %v4843
    %v4876 = vsel %vm2822, 0.0, %v4844
    %v4877 = vsel %vm2822, 0.0, %v4845
    %v4878 = vsel %vm2822, 0.0, %v4846
    %v4879 = vsel %vm2822, 0.0, %v4847
    %v4880 = vsel %vm2822, 0.0, %v4848
    %v4881 = vsel %vm2822, 0.0, %v4849
    %v4882 = vsel %vm2822, 0.0, %v4850
    %v4883 = vsel %vm2822, 0.0, %v4851
    %v4884 = vsel %vm2822, 0.0, %v4852
    %v4885 = vsel %vm2822, 0.0, %v4853
    %v4886 = vsel %vm2822, 0.0, %v4854
    %v4887 = vsel %vm2822, 0.0, %v4855
    %v4888 = vsel %vm2822, 0.0, %v4856
    %v4889 = vsel %vm2822, 0.0, %v4857
    %v4890 = vsel %vm2822, %v4842, 0.0
    %v4891 = vsel %vm2822, %v4843, 0.0
    %v4892 = vsel %vm2822, %v4844, 0.0
    %v4893 = vsel %vm2822, %v4845, 0.0
    %v4894 = vsel %vm2822, %v4846, 0.0
    %v4895 = vsel %vm2822, %v4847, 0.0
    %v4896 = vsel %vm2822, %v4848, 0.0
    %v4897 = vsel %vm2822, %v4849, 0.0
    %v4898 = vsel %vm2822, %v4850, 0.0
    %v4899 = vsel %vm2822, %v4851, 0.0
    %v4900 = vsel %vm2822, %v4852, 0.0
    %v4901 = vsel %vm2822, %v4853, 0.0
    %v4902 = vsel %vm2822, %v4854, 0.0
    %v4903 = vsel %vm2822, %v4855, 0.0
    %v4904 = vsel %vm2822, %v4856, 0.0
    %v4905 = vsel %vm2822, %v4857, 0.0
    %v4906 = vmul.f32 %v4874, %v3884
    %v4907 = vmul.f32 %v4875, %v3884
    %v4908 = vmul.f32 %v4876, %v3884
    %v4909 = vmul.f32 %v4877, %v3884
    %v4910 = vmul.f32 %v4878, %v3884
    %v4911 = vmul.f32 %v4879, %v3884
    %v4912 = vmul.f32 %v4880, %v3884
    %v4913 = vmul.f32 %v4882, %v3884
    %v4914 = vmul.f32 %v4883, %v3884
    %v4915 = vmul.f32 %v4884, %v3884
    %v4916 = vmul.f32 %v4885, %v3884
    %v4917 = vmul.f32 %v4886, %v3884
    %v4918 = vmul.f32 %v4887, %v3884
    %v4919 = vmul.f32 %v4888, %v3884
    %v4920 = vmul.f32 %v4874, %v3901
    %v4921 = vmul.f32 %v4890, %v3901
    %v4922 = vmul.f32 %v4875, %v3901
    %v4923 = vmul.f32 %v4891, %v3901
    %v4924 = vmul.f32 %v4876, %v3901
    %v4925 = vmul.f32 %v4892, %v3901
    %v4926 = vmul.f32 %v4877, %v3901
    %v4927 = vmul.f32 %v4893, %v3901
    %v4928 = vmul.f32 %v4878, %v3901
    %v4929 = vmul.f32 %v4894, %v3901
    %v4930 = vmul.f32 %v4879, %v3901
    %v4931 = vmul.f32 %v4895, %v3901
    %v4932 = vmul.f32 %v4880, %v3901
    %v4933 = vmul.f32 %v4896, %v3901
    %v4934 = vmul.f32 %v4882, %v3901
    %v4935 = vmul.f32 %v4898, %v3901
    %v4936 = vmul.f32 %v4883, %v3901
    %v4937 = vmul.f32 %v4899, %v3901
    %v4938 = vmul.f32 %v4884, %v3901
    %v4939 = vmul.f32 %v4900, %v3901
    %v4940 = vmul.f32 %v4885, %v3901
    %v4941 = vmul.f32 %v4901, %v3901
    %v4942 = vmul.f32 %v4886, %v3901
    %v4943 = vmul.f32 %v4902, %v3901
    %v4944 = vmul.f32 %v4887, %v3901
    %v4945 = vmul.f32 %v4903, %v3901
    %v4946 = vmul.f32 %v4888, %v3901
    %v4947 = vmul.f32 %v4904, %v3901
    %v4976 = vrot.slane %v4920, 1
    %v4977 = vrot.slane %v4921, 1
    %v4978 = vsel %vm2936, %v4976, %v4977
    %v4979 = vrot.slane %v4922, 1
    %v4980 = vrot.slane %v4923, 1
    %v4981 = vsel %vm2936, %v4979, %v4980
    %v4982 = vrot.slane %v4924, 1
    %v4983 = vrot.slane %v4925, 1
    %v4984 = vsel %vm2936, %v4982, %v4983
    %v4985 = vrot.slane %v4926, 1
    %v4986 = vrot.slane %v4927, 1
    %v4987 = vsel %vm2936, %v4985, %v4986
    %v4988 = vrot.slane %v4928, 1
    %v4989 = vrot.slane %v4929, 1
    %v4990 = vsel %vm2936, %v4988, %v4989
    %v4991 = vrot.slane %v4930, 1
    %v4992 = vrot.slane %v4931, 1
    %v4993 = vsel %vm2936, %v4991, %v4992
    %v4994 = vrot.slane %v4932, 1
    %v4995 = vrot.slane %v4933, 1
    %v4996 = vsel %vm2936, %v4994, %v4995
    %v4997 = vrot.slane %v4934, 1
    %v4998 = vrot.slane %v4935, 1
    %v4999 = vsel %vm2936, %v4997, %v4998
    %v5000 = vrot.slane %v4936, 1
    %v5001 = vrot.slane %v4937, 1
    %v5002 = vsel %vm2936, %v5000, %v5001
    %v5003 = vrot.slane %v4938, 1
    %v5004 = vrot.slane %v4939, 1
    %v5005 = vsel %vm2936, %v5003, %v5004
    %v5006 = vrot.slane %v4940, 1
    %v5007 = vrot.slane %v4941, 1
    %v5008 = vsel %vm2936, %v5006, %v5007
    %v5009 = vrot.slane %v4942, 1
    %v5010 = vrot.slane %v4943, 1
    %v5011 = vsel %vm2936, %v5009, %v5010
    %v5012 = vrot.slane %v4944, 1
    %v5013 = vrot.slane %v4945, 1
    %v5014 = vsel %vm2936, %v5012, %v5013
    %v5015 = vrot.slane %v4946, 1
    %v5016 = vrot.slane %v4947, 1
    %v5017 = vsel %vm2936, %v5015, %v5016
    %v5032 = vadd.f32 %v4906, %v4978
    %v5033 = vadd.f32 %v4907, %v4981
    %v5034 = vadd.f32 %v4908, %v4984
    %v5035 = vadd.f32 %v4909, %v4987
    %v5036 = vadd.f32 %v4910, %v4990
    %v5037 = vadd.f32 %v4911, %v4993
    %v5038 = vadd.f32 %v4912, %v4996
    %v5039 = vadd.f32 %v4913, %v4999
    %v5040 = vadd.f32 %v4914, %v5002
    %v5041 = vadd.f32 %v4915, %v5005
    %v5042 = vadd.f32 %v4916, %v5008
    %v5043 = vadd.f32 %v4917, %v5011
    %v5044 = vadd.f32 %v4918, %v5014
    %v5045 = vadd.f32 %v4919, %v5017
    %v5046 = vmul.f32 %v4874, %v4038
    %v5047 = vmul.f32 %v4890, %v4038
    %v5048 = vmul.f32 %v4875, %v4038
    %v5049 = vmul.f32 %v4891, %v4038
    %v5050 = vmul.f32 %v4876, %v4038
    %v5051 = vmul.f32 %v4892, %v4038
    %v5052 = vmul.f32 %v4877, %v4038
    %v5053 = vmul.f32 %v4893, %v4038
    %v5054 = vmul.f32 %v4878, %v4038
    %v5055 = vmul.f32 %v4894, %v4038
    %v5056 = vmul.f32 %v4879, %v4038
    %v5057 = vmul.f32 %v4895, %v4038
    %v5058 = vmul.f32 %v4880, %v4038
    %v5059 = vmul.f32 %v4896, %v4038
    %v5060 = vmul.f32 %v4882, %v4038
    %v5061 = vmul.f32 %v4898, %v4038
    %v5062 = vmul.f32 %v4883, %v4038
    %v5063 = vmul.f32 %v4899, %v4038
    %v5064 = vmul.f32 %v4884, %v4038
    %v5065 = vmul.f32 %v4900, %v4038
    %v5066 = vmul.f32 %v4885, %v4038
    %v5067 = vmul.f32 %v4901, %v4038
    %v5068 = vmul.f32 %v4886, %v4038
    %v5069 = vmul.f32 %v4902, %v4038
    %v5070 = vmul.f32 %v4887, %v4038
    %v5071 = vmul.f32 %v4903, %v4038
    %v5072 = vmul.f32 %v4888, %v4038
    %v5073 = vmul.f32 %v4904, %v4038
    %v5102 = vrot.slane %v5046, 2
    %v5103 = vrot.slane %v5047, 2
    %v5104 = vsel %vm3074, %v5102, %v5103
    %v5105 = vrot.slane %v5048, 2
    %v5106 = vrot.slane %v5049, 2
    %v5107 = vsel %vm3074, %v5105, %v5106
    %v5108 = vrot.slane %v5050, 2
    %v5109 = vrot.slane %v5051, 2
    %v5110 = vsel %vm3074, %v5108, %v5109
    %v5111 = vrot.slane %v5052, 2
    %v5112 = vrot.slane %v5053, 2
    %v5113 = vsel %vm3074, %v5111, %v5112
    %v5114 = vrot.slane %v5054, 2
    %v5115 = vrot.slane %v5055, 2
    %v5116 = vsel %vm3074, %v5114, %v5115
    %v5117 = vrot.slane %v5056, 2
    %v5118 = vrot.slane %v5057, 2
    %v5119 = vsel %vm3074, %v5117, %v5118
    %v5120 = vrot.slane %v5058, 2
    %v5121 = vrot.slane %v5059, 2
    %v5122 = vsel %vm3074, %v5120, %v5121
    %v5123 = vrot.slane %v5060, 2
    %v5124 = vrot.slane %v5061, 2
    %v5125 = vsel %vm3074, %v5123, %v5124
    %v5126 = vrot.slane %v5062, 2
    %v5127 = vrot.slane %v5063, 2
    %v5128 = vsel %vm3074, %v5126, %v5127
    %v5129 = vrot.slane %v5064, 2
    %v5130 = vrot.slane %v5065, 2
    %v5131 = vsel %vm3074, %v5129, %v5130
    %v5132 = vrot.slane %v5066, 2
    %v5133 = vrot.slane %v5067, 2
    %v5134 = vsel %vm3074, %v5132, %v5133
    %v5135 = vrot.slane %v5068, 2
    %v5136 = vrot.slane %v5069, 2
    %v5137 = vsel %vm3074, %v5135, %v5136
    %v5138 = vrot.slane %v5070, 2
    %v5139 = vrot.slane %v5071, 2
    %v5140 = vsel %vm3074, %v5138, %v5139
    %v5141 = vrot.slane %v5072, 2
    %v5142 = vrot.slane %v5073, 2
    %v5143 = vsel %vm3074, %v5141, %v5142
    %v5158 = vadd.f32 %v5032, %v5104
    %v5159 = vadd.f32 %v5033, %v5107
    %v5160 = vadd.f32 %v5034, %v5110
    %v5161 = vadd.f32 %v5035, %v5113
    %v5162 = vadd.f32 %v5036, %v5116
    %v5163 = vadd.f32 %v5037, %v5119
    %v5164 = vadd.f32 %v5038, %v5122
    %v5165 = vadd.f32 %v5039, %v5125
    %v5166 = vadd.f32 %v5040, %v5128
    %v5167 = vadd.f32 %v5041, %v5131
    %v5168 = vadd.f32 %v5042, %v5134
    %v5169 = vadd.f32 %v5043, %v5137
    %v5170 = vadd.f32 %v5044, %v5140
    %v5171 = vadd.f32 %v5045, %v5143
    %v5172 = vmul.f32 %v4874, %v4175
    %v5173 = vmul.f32 %v4875, %v4175
    %v5174 = vmul.f32 %v4876, %v4175
    %v5175 = vmul.f32 %v4877, %v4175
    %v5176 = vmul.f32 %v4878, %v4175
    %v5177 = vmul.f32 %v4879, %v4175
    %v5178 = vmul.f32 %v4880, %v4175
    %v5179 = vmul.f32 %v4881, %v4175
    %v5180 = vmul.f32 %v4882, %v4175
    %v5181 = vmul.f32 %v4883, %v4175
    %v5182 = vmul.f32 %v4884, %v4175
    %v5183 = vmul.f32 %v4885, %v4175
    %v5184 = vmul.f32 %v4886, %v4175
    %v5185 = vmul.f32 %v4887, %v4175
    %v5186 = vmul.f32 %v4888, %v4175
    %v5187 = vmul.f32 %v4889, %v4175
    %v5188 = vadd.f32 %v4159, %v5172
    %v5189 = vadd.f32 %v5158, %v5173
    %v5190 = vadd.f32 %v5159, %v5174
    %v5191 = vadd.f32 %v5160, %v5175
    %v5192 = vadd.f32 %v5161, %v5176
    %v5193 = vadd.f32 %v5162, %v5177
    %v5194 = vadd.f32 %v5163, %v5178
    %v5195 = vadd.f32 %v5164, %v5179
    %v5196 = vadd.f32 %v4159, %v5180
    %v5197 = vadd.f32 %v5165, %v5181
    %v5198 = vadd.f32 %v5166, %v5182
    %v5199 = vadd.f32 %v5167, %v5183
    %v5200 = vadd.f32 %v5168, %v5184
    %v5201 = vadd.f32 %v5169, %v5185
    %v5202 = vadd.f32 %v5170, %v5186
    %v5203 = vadd.f32 %v5171, %v5187
    %v5204 = vmul.f32 %v4874, %v4209
    %v5205 = vmul.f32 %v4890, %v4209
    %v5206 = vmul.f32 %v4875, %v4209
    %v5207 = vmul.f32 %v4891, %v4209
    %v5208 = vmul.f32 %v4876, %v4209
    %v5209 = vmul.f32 %v4892, %v4209
    %v5210 = vmul.f32 %v4877, %v4209
    %v5211 = vmul.f32 %v4893, %v4209
    %v5212 = vmul.f32 %v4878, %v4209
    %v5213 = vmul.f32 %v4894, %v4209
    %v5214 = vmul.f32 %v4879, %v4209
    %v5215 = vmul.f32 %v4895, %v4209
    %v5216 = vmul.f32 %v4880, %v4209
    %v5217 = vmul.f32 %v4896, %v4209
    %v5218 = vmul.f32 %v4881, %v4209
    %v5219 = vmul.f32 %v4897, %v4209
    %v5220 = vmul.f32 %v4882, %v4209
    %v5221 = vmul.f32 %v4898, %v4209
    %v5222 = vmul.f32 %v4883, %v4209
    %v5223 = vmul.f32 %v4899, %v4209
    %v5224 = vmul.f32 %v4884, %v4209
    %v5225 = vmul.f32 %v4900, %v4209
    %v5226 = vmul.f32 %v4885, %v4209
    %v5227 = vmul.f32 %v4901, %v4209
    %v5228 = vmul.f32 %v4886, %v4209
    %v5229 = vmul.f32 %v4902, %v4209
    %v5230 = vmul.f32 %v4887, %v4209
    %v5231 = vmul.f32 %v4903, %v4209
    %v5232 = vmul.f32 %v4888, %v4209
    %v5233 = vmul.f32 %v4904, %v4209
    %v5234 = vmul.f32 %v4889, %v4209
    %v5235 = vmul.f32 %v4905, %v4209
    %v5268 = vrot.slane %v5204, 1
    %v5269 = vrot.slane %v5205, 1
    %v5270 = vsel %vm2936, %v5268, %v5269
    %v5271 = vrot.slane %v5206, 1
    %v5272 = vrot.slane %v5207, 1
    %v5273 = vsel %vm2936, %v5271, %v5272
    %v5274 = vrot.slane %v5208, 1
    %v5275 = vrot.slane %v5209, 1
    %v5276 = vsel %vm2936, %v5274, %v5275
    %v5277 = vrot.slane %v5210, 1
    %v5278 = vrot.slane %v5211, 1
    %v5279 = vsel %vm2936, %v5277, %v5278
    %v5280 = vrot.slane %v5212, 1
    %v5281 = vrot.slane %v5213, 1
    %v5282 = vsel %vm2936, %v5280, %v5281
    %v5283 = vrot.slane %v5214, 1
    %v5284 = vrot.slane %v5215, 1
    %v5285 = vsel %vm2936, %v5283, %v5284
    %v5286 = vrot.slane %v5216, 1
    %v5287 = vrot.slane %v5217, 1
    %v5288 = vsel %vm2936, %v5286, %v5287
    %v5289 = vrot.slane %v5218, 1
    %v5290 = vrot.slane %v5219, 1
    %v5291 = vsel %vm2936, %v5289, %v5290
    %v5292 = vrot.slane %v5220, 1
    %v5293 = vrot.slane %v5221, 1
    %v5294 = vsel %vm2936, %v5292, %v5293
    %v5295 = vrot.slane %v5222, 1
    %v5296 = vrot.slane %v5223, 1
    %v5297 = vsel %vm2936, %v5295, %v5296
    %v5298 = vrot.slane %v5224, 1
    %v5299 = vrot.slane %v5225, 1
    %v5300 = vsel %vm2936, %v5298, %v5299
    %v5301 = vrot.slane %v5226, 1
    %v5302 = vrot.slane %v5227, 1
    %v5303 = vsel %vm2936, %v5301, %v5302
    %v5304 = vrot.slane %v5228, 1
    %v5305 = vrot.slane %v5229, 1
    %v5306 = vsel %vm2936, %v5304, %v5305
    %v5307 = vrot.slane %v5230, 1
    %v5308 = vrot.slane %v5231, 1
    %v5309 = vsel %vm2936, %v5307, %v5308
    %v5310 = vrot.slane %v5232, 1
    %v5311 = vrot.slane %v5233, 1
    %v5312 = vsel %vm2936, %v5310, %v5311
    %v5313 = vrot.slane %v5234, 1
    %v5314 = vrot.slane %v5235, 1
    %v5315 = vsel %vm2936, %v5313, %v5314
    %v5332 = vadd.f32 %v5188, %v5270
    %v5333 = vadd.f32 %v5189, %v5273
    %v5334 = vadd.f32 %v5190, %v5276
    %v5335 = vadd.f32 %v5191, %v5279
    %v5336 = vadd.f32 %v5192, %v5282
    %v5337 = vadd.f32 %v5193, %v5285
    %v5338 = vadd.f32 %v5194, %v5288
    %v5339 = vadd.f32 %v5195, %v5291
    %v5340 = vadd.f32 %v5196, %v5294
    %v5341 = vadd.f32 %v5197, %v5297
    %v5342 = vadd.f32 %v5198, %v5300
    %v5343 = vadd.f32 %v5199, %v5303
    %v5344 = vadd.f32 %v5200, %v5306
    %v5345 = vadd.f32 %v5201, %v5309
    %v5346 = vadd.f32 %v5202, %v5312
    %v5347 = vadd.f32 %v5203, %v5315
    %v5348 = vmul.f32 %v4874, %v4355
    %v5349 = vmul.f32 %v4890, %v4355
    %v5350 = vmul.f32 %v4875, %v4355
    %v5351 = vmul.f32 %v4891, %v4355
    %v5352 = vmul.f32 %v4876, %v4355
    %v5353 = vmul.f32 %v4892, %v4355
    %v5354 = vmul.f32 %v4877, %v4355
    %v5355 = vmul.f32 %v4893, %v4355
    %v5356 = vmul.f32 %v4878, %v4355
    %v5357 = vmul.f32 %v4894, %v4355
    %v5358 = vmul.f32 %v4879, %v4355
    %v5359 = vmul.f32 %v4895, %v4355
    %v5360 = vmul.f32 %v4880, %v4355
    %v5361 = vmul.f32 %v4896, %v4355
    %v5362 = vmul.f32 %v4881, %v4355
    %v5363 = vmul.f32 %v4897, %v4355
    %v5364 = vmul.f32 %v4882, %v4355
    %v5365 = vmul.f32 %v4898, %v4355
    %v5366 = vmul.f32 %v4883, %v4355
    %v5367 = vmul.f32 %v4899, %v4355
    %v5368 = vmul.f32 %v4884, %v4355
    %v5369 = vmul.f32 %v4900, %v4355
    %v5370 = vmul.f32 %v4885, %v4355
    %v5371 = vmul.f32 %v4901, %v4355
    %v5372 = vmul.f32 %v4886, %v4355
    %v5373 = vmul.f32 %v4902, %v4355
    %v5374 = vmul.f32 %v4887, %v4355
    %v5375 = vmul.f32 %v4903, %v4355
    %v5376 = vmul.f32 %v4888, %v4355
    %v5377 = vmul.f32 %v4904, %v4355
    %v5378 = vmul.f32 %v4889, %v4355
    %v5379 = vmul.f32 %v4905, %v4355
    %v5412 = vrot.slane %v5348, 2
    %v5413 = vrot.slane %v5349, 2
    %v5414 = vsel %vm3074, %v5412, %v5413
    %v5415 = vrot.slane %v5350, 2
    %v5416 = vrot.slane %v5351, 2
    %v5417 = vsel %vm3074, %v5415, %v5416
    %v5418 = vrot.slane %v5352, 2
    %v5419 = vrot.slane %v5353, 2
    %v5420 = vsel %vm3074, %v5418, %v5419
    %v5421 = vrot.slane %v5354, 2
    %v5422 = vrot.slane %v5355, 2
    %v5423 = vsel %vm3074, %v5421, %v5422
    %v5424 = vrot.slane %v5356, 2
    %v5425 = vrot.slane %v5357, 2
    %v5426 = vsel %vm3074, %v5424, %v5425
    %v5427 = vrot.slane %v5358, 2
    %v5428 = vrot.slane %v5359, 2
    %v5429 = vsel %vm3074, %v5427, %v5428
    %v5430 = vrot.slane %v5360, 2
    %v5431 = vrot.slane %v5361, 2
    %v5432 = vsel %vm3074, %v5430, %v5431
    %v5433 = vrot.slane %v5362, 2
    %v5434 = vrot.slane %v5363, 2
    %v5435 = vsel %vm3074, %v5433, %v5434
    %v5436 = vrot.slane %v5364, 2
    %v5437 = vrot.slane %v5365, 2
    %v5438 = vsel %vm3074, %v5436, %v5437
    %v5439 = vrot.slane %v5366, 2
    %v5440 = vrot.slane %v5367, 2
    %v5441 = vsel %vm3074, %v5439, %v5440
    %v5442 = vrot.slane %v5368, 2
    %v5443 = vrot.slane %v5369, 2
    %v5444 = vsel %vm3074, %v5442, %v5443
    %v5445 = vrot.slane %v5370, 2
    %v5446 = vrot.slane %v5371, 2
    %v5447 = vsel %vm3074, %v5445, %v5446
    %v5448 = vrot.slane %v5372, 2
    %v5449 = vrot.slane %v5373, 2
    %v5450 = vsel %vm3074, %v5448, %v5449
    %v5451 = vrot.slane %v5374, 2
    %v5452 = vrot.slane %v5375, 2
    %v5453 = vsel %vm3074, %v5451, %v5452
    %v5454 = vrot.slane %v5376, 2
    %v5455 = vrot.slane %v5377, 2
    %v5456 = vsel %vm3074, %v5454, %v5455
    %v5457 = vrot.slane %v5378, 2
    %v5458 = vrot.slane %v5379, 2
    %v5459 = vsel %vm3074, %v5457, %v5458
    %v5476 = vadd.f32 %v5332, %v5414
    %v5477 = vadd.f32 %v5333, %v5417
    %v5478 = vadd.f32 %v5334, %v5420
    %v5479 = vadd.f32 %v5335, %v5423
    %v5480 = vadd.f32 %v5336, %v5426
    %v5481 = vadd.f32 %v5337, %v5429
    %v5482 = vadd.f32 %v5338, %v5432
    %v5483 = vadd.f32 %v5339, %v5435
    %v5484 = vadd.f32 %v5340, %v5438
    %v5485 = vadd.f32 %v5341, %v5441
    %v5486 = vadd.f32 %v5342, %v5444
    %v5487 = vadd.f32 %v5343, %v5447
    %v5488 = vadd.f32 %v5344, %v5450
    %v5489 = vadd.f32 %v5345, %v5453
    %v5490 = vadd.f32 %v5346, %v5456
    %v5491 = vadd.f32 %v5347, %v5459
    %v5492 = vmul.f32 %v4875, %v4501
    %v5493 = vmul.f32 %v4876, %v4501
    %v5494 = vmul.f32 %v4877, %v4501
    %v5495 = vmul.f32 %v4878, %v4501
    %v5496 = vmul.f32 %v4879, %v4501
    %v5497 = vmul.f32 %v4880, %v4501
    %v5498 = vmul.f32 %v4881, %v4501
    %v5499 = vmul.f32 %v4883, %v4501
    %v5500 = vmul.f32 %v4884, %v4501
    %v5501 = vmul.f32 %v4885, %v4501
    %v5502 = vmul.f32 %v4886, %v4501
    %v5503 = vmul.f32 %v4887, %v4501
    %v5504 = vmul.f32 %v4888, %v4501
    %v5505 = vmul.f32 %v4889, %v4501
    %v5506 = vadd.f32 %v5476, %v5492
    %v5507 = vadd.f32 %v5477, %v5493
    %v5508 = vadd.f32 %v5478, %v5494
    %v5509 = vadd.f32 %v5479, %v5495
    %v5510 = vadd.f32 %v5480, %v5496
    %v5511 = vadd.f32 %v5481, %v5497
    %v5512 = vadd.f32 %v5482, %v5498
    %v5513 = vadd.f32 %v5483, %v4509
    %v5514 = vadd.f32 %v5484, %v5499
    %v5515 = vadd.f32 %v5485, %v5500
    %v5516 = vadd.f32 %v5486, %v5501
    %v5517 = vadd.f32 %v5487, %v5502
    %v5518 = vadd.f32 %v5488, %v5503
    %v5519 = vadd.f32 %v5489, %v5504
    %v5520 = vadd.f32 %v5490, %v5505
    %v5521 = vadd.f32 %v5491, %v4509
    %v5522 = vmul.f32 %v4875, %v4534
    %v5523 = vmul.f32 %v4891, %v4534
    %v5524 = vmul.f32 %v4876, %v4534
    %v5525 = vmul.f32 %v4892, %v4534
    %v5526 = vmul.f32 %v4877, %v4534
    %v5527 = vmul.f32 %v4893, %v4534
    %v5528 = vmul.f32 %v4878, %v4534
    %v5529 = vmul.f32 %v4894, %v4534
    %v5530 = vmul.f32 %v4879, %v4534
    %v5531 = vmul.f32 %v4895, %v4534
    %v5532 = vmul.f32 %v4880, %v4534
    %v5533 = vmul.f32 %v4896, %v4534
    %v5534 = vmul.f32 %v4881, %v4534
    %v5535 = vmul.f32 %v4897, %v4534
    %v5536 = vmul.f32 %v4883, %v4534
    %v5537 = vmul.f32 %v4899, %v4534
    %v5538 = vmul.f32 %v4884, %v4534
    %v5539 = vmul.f32 %v4900, %v4534
    %v5540 = vmul.f32 %v4885, %v4534
    %v5541 = vmul.f32 %v4901, %v4534
    %v5542 = vmul.f32 %v4886, %v4534
    %v5543 = vmul.f32 %v4902, %v4534
    %v5544 = vmul.f32 %v4887, %v4534
    %v5545 = vmul.f32 %v4903, %v4534
    %v5546 = vmul.f32 %v4888, %v4534
    %v5547 = vmul.f32 %v4904, %v4534
    %v5548 = vmul.f32 %v4889, %v4534
    %v5549 = vmul.f32 %v4905, %v4534
    %v5578 = vrot.slane %v5522, 1
    %v5579 = vrot.slane %v5523, 1
    %v5580 = vsel %vm2936, %v5578, %v5579
    %v5581 = vrot.slane %v5524, 1
    %v5582 = vrot.slane %v5525, 1
    %v5583 = vsel %vm2936, %v5581, %v5582
    %v5584 = vrot.slane %v5526, 1
    %v5585 = vrot.slane %v5527, 1
    %v5586 = vsel %vm2936, %v5584, %v5585
    %v5587 = vrot.slane %v5528, 1
    %v5588 = vrot.slane %v5529, 1
    %v5589 = vsel %vm2936, %v5587, %v5588
    %v5590 = vrot.slane %v5530, 1
    %v5591 = vrot.slane %v5531, 1
    %v5592 = vsel %vm2936, %v5590, %v5591
    %v5593 = vrot.slane %v5532, 1
    %v5594 = vrot.slane %v5533, 1
    %v5595 = vsel %vm2936, %v5593, %v5594
    %v5596 = vrot.slane %v5534, 1
    %v5597 = vrot.slane %v5535, 1
    %v5598 = vsel %vm2936, %v5596, %v5597
    %v5599 = vrot.slane %v5536, 1
    %v5600 = vrot.slane %v5537, 1
    %v5601 = vsel %vm2936, %v5599, %v5600
    %v5602 = vrot.slane %v5538, 1
    %v5603 = vrot.slane %v5539, 1
    %v5604 = vsel %vm2936, %v5602, %v5603
    %v5605 = vrot.slane %v5540, 1
    %v5606 = vrot.slane %v5541, 1
    %v5607 = vsel %vm2936, %v5605, %v5606
    %v5608 = vrot.slane %v5542, 1
    %v5609 = vrot.slane %v5543, 1
    %v5610 = vsel %vm2936, %v5608, %v5609
    %v5611 = vrot.slane %v5544, 1
    %v5612 = vrot.slane %v5545, 1
    %v5613 = vsel %vm2936, %v5611, %v5612
    %v5614 = vrot.slane %v5546, 1
    %v5615 = vrot.slane %v5547, 1
    %v5616 = vsel %vm2936, %v5614, %v5615
    %v5617 = vrot.slane %v5548, 1
    %v5618 = vrot.slane %v5549, 1
    %v5619 = vsel %vm2936, %v5617, %v5618
    %v5634 = vadd.f32 %v5506, %v5580
    %v5635 = vadd.f32 %v5507, %v5583
    %v5636 = vadd.f32 %v5508, %v5586
    %v5637 = vadd.f32 %v5509, %v5589
    %v5638 = vadd.f32 %v5510, %v5592
    %v5639 = vadd.f32 %v5511, %v5595
    %v5640 = vadd.f32 %v5512, %v5598
    %v5641 = vadd.f32 %v5513, %v4618
    %v5642 = vadd.f32 %v5514, %v5601
    %v5643 = vadd.f32 %v5515, %v5604
    %v5644 = vadd.f32 %v5516, %v5607
    %v5645 = vadd.f32 %v5517, %v5610
    %v5646 = vadd.f32 %v5518, %v5613
    %v5647 = vadd.f32 %v5519, %v5616
    %v5648 = vadd.f32 %v5520, %v5619
    %v5649 = vadd.f32 %v5521, %v4618
    %v5650 = vmul.f32 %v4875, %v4672
    %v5651 = vmul.f32 %v4891, %v4672
    %v5652 = vmul.f32 %v4876, %v4672
    %v5653 = vmul.f32 %v4892, %v4672
    %v5654 = vmul.f32 %v4877, %v4672
    %v5655 = vmul.f32 %v4893, %v4672
    %v5656 = vmul.f32 %v4878, %v4672
    %v5657 = vmul.f32 %v4894, %v4672
    %v5658 = vmul.f32 %v4879, %v4672
    %v5659 = vmul.f32 %v4895, %v4672
    %v5660 = vmul.f32 %v4880, %v4672
    %v5661 = vmul.f32 %v4896, %v4672
    %v5662 = vmul.f32 %v4881, %v4672
    %v5663 = vmul.f32 %v4897, %v4672
    %v5664 = vmul.f32 %v4883, %v4672
    %v5665 = vmul.f32 %v4899, %v4672
    %v5666 = vmul.f32 %v4884, %v4672
    %v5667 = vmul.f32 %v4900, %v4672
    %v5668 = vmul.f32 %v4885, %v4672
    %v5669 = vmul.f32 %v4901, %v4672
    %v5670 = vmul.f32 %v4886, %v4672
    %v5671 = vmul.f32 %v4902, %v4672
    %v5672 = vmul.f32 %v4887, %v4672
    %v5673 = vmul.f32 %v4903, %v4672
    %v5674 = vmul.f32 %v4888, %v4672
    %v5675 = vmul.f32 %v4904, %v4672
    %v5676 = vmul.f32 %v4889, %v4672
    %v5677 = vmul.f32 %v4905, %v4672
    %v5706 = vrot.slane %v5650, 2
    %v5707 = vrot.slane %v5651, 2
    %v5708 = vsel %vm3074, %v5706, %v5707
    %v5709 = vrot.slane %v5652, 2
    %v5710 = vrot.slane %v5653, 2
    %v5711 = vsel %vm3074, %v5709, %v5710
    %v5712 = vrot.slane %v5654, 2
    %v5713 = vrot.slane %v5655, 2
    %v5714 = vsel %vm3074, %v5712, %v5713
    %v5715 = vrot.slane %v5656, 2
    %v5716 = vrot.slane %v5657, 2
    %v5717 = vsel %vm3074, %v5715, %v5716
    %v5718 = vrot.slane %v5658, 2
    %v5719 = vrot.slane %v5659, 2
    %v5720 = vsel %vm3074, %v5718, %v5719
    %v5721 = vrot.slane %v5660, 2
    %v5722 = vrot.slane %v5661, 2
    %v5723 = vsel %vm3074, %v5721, %v5722
    %v5724 = vrot.slane %v5662, 2
    %v5725 = vrot.slane %v5663, 2
    %v5726 = vsel %vm3074, %v5724, %v5725
    %v5727 = vrot.slane %v5664, 2
    %v5728 = vrot.slane %v5665, 2
    %v5729 = vsel %vm3074, %v5727, %v5728
    %v5730 = vrot.slane %v5666, 2
    %v5731 = vrot.slane %v5667, 2
    %v5732 = vsel %vm3074, %v5730, %v5731
    %v5733 = vrot.slane %v5668, 2
    %v5734 = vrot.slane %v5669, 2
    %v5735 = vsel %vm3074, %v5733, %v5734
    %v5736 = vrot.slane %v5670, 2
    %v5737 = vrot.slane %v5671, 2
    %v5738 = vsel %vm3074, %v5736, %v5737
    %v5739 = vrot.slane %v5672, 2
    %v5740 = vrot.slane %v5673, 2
    %v5741 = vsel %vm3074, %v5739, %v5740
    %v5742 = vrot.slane %v5674, 2
    %v5743 = vrot.slane %v5675, 2
    %v5744 = vsel %vm3074, %v5742, %v5743
    %v5745 = vrot.slane %v5676, 2
    %v5746 = vrot.slane %v5677, 2
    %v5747 = vsel %vm3074, %v5745, %v5746
    %v5762 = vadd.f32 %v5634, %v5708
    %v5763 = vadd.f32 %v5635, %v5711
    %v5764 = vadd.f32 %v5636, %v5714
    %v5765 = vadd.f32 %v5637, %v5717
    %v5766 = vadd.f32 %v5638, %v5720
    %v5767 = vadd.f32 %v5639, %v5723
    %v5768 = vadd.f32 %v5640, %v5726
    %v5769 = vadd.f32 %v5641, %v4756
    %v5770 = vadd.f32 %v5642, %v5729
    %v5771 = vadd.f32 %v5643, %v5732
    %v5772 = vadd.f32 %v5644, %v5735
    %v5773 = vadd.f32 %v5645, %v5738
    %v5774 = vadd.f32 %v5646, %v5741
    %v5775 = vadd.f32 %v5647, %v5744
    %v5776 = vadd.f32 %v5648, %v5747
    %v5777 = vadd.f32 %v5649, %v4756
    %v5778 = vadd.f32 %v5762, %v4809
    %v5779 = vadd.f32 %v5763, %v4809
    %v5780 = vadd.f32 %v5764, %v4809
    %v5781 = vadd.f32 %v5765, %v4809
    %v5782 = vadd.f32 %v5766, %v4809
    %v5783 = vadd.f32 %v5767, %v4809
    %v5784 = vadd.f32 %v5768, %v4809
    %v5785 = vadd.f32 %v5769, %v4809
    %v5786 = vadd.f32 %v5770, %v4809
    %v5787 = vadd.f32 %v5771, %v4809
    %v5788 = vadd.f32 %v5772, %v4809
    %v5789 = vadd.f32 %v5773, %v4809
    %v5790 = vadd.f32 %v5774, %v4809
    %v5791 = vadd.f32 %v5775, %v4809
    %v5792 = vadd.f32 %v5776, %v4809
    %v5793 = vadd.f32 %v5777, %v4809
    %v5794 = vld [vmem:[%s8] sm:$0x7]
    %5795 = vset.pattern.permute.xlu0 0
    %5796 = vperm.xlu0 %5795, %v3786
    %v5797 = vpop.permute.xlu0 %5796
    %5799 = vset.pattern.permute.xlu0 0
    %5800 = vperm.xlu0 %5799, %v3787
    %v5801 = vpop.permute.xlu0 %5800
    %5803 = vset.pattern.permute.xlu0 0
    %5804 = vperm.xlu0 %5803, %v3788
    %v5805 = vpop.permute.xlu0 %5804
    %5807 = vset.pattern.permute.xlu0 0
    %5808 = vperm.xlu0 %5807, %v3789
    %v5809 = vpop.permute.xlu0 %5808
    %5811 = vset.pattern.permute.xlu0 0
    %5812 = vperm.xlu0 %5811, %v3790
    %v5813 = vpop.permute.xlu0 %5812
    %5815 = vset.pattern.permute.xlu0 0
    %5816 = vperm.xlu0 %5815, %v3791
    %v5817 = vpop.permute.xlu0 %5816
    %5819 = vset.pattern.permute.xlu0 0
    %5820 = vperm.xlu0 %5819, %v3792
    %v5821 = vpop.permute.xlu0 %5820
    %5823 = vset.pattern.permute.xlu0 0
    %5824 = vperm.xlu0 %5823, %v3793
    %v5825 = vpop.permute.xlu0 %5824
    %5827 = vset.pattern.permute.xlu0 0
    %5828 = vperm.xlu0 %5827, %v3794
    %v5829 = vpop.permute.xlu0 %5828
    %5831 = vset.pattern.permute.xlu0 0
    %5832 = vperm.xlu0 %5831, %v3795
    %v5833 = vpop.permute.xlu0 %5832
    %5835 = vset.pattern.permute.xlu0 0
    %5836 = vperm.xlu0 %5835, %v3796
    %v5837 = vpop.permute.xlu0 %5836
    %5839 = vset.pattern.permute.xlu0 0
    %5840 = vperm.xlu0 %5839, %v3797
    %v5841 = vpop.permute.xlu0 %5840
    %5843 = vset.pattern.permute.xlu0 0
    %5844 = vperm.xlu0 %5843, %v3798
    %v5845 = vpop.permute.xlu0 %5844
    %5847 = vset.pattern.permute.xlu0 0
    %5848 = vperm.xlu0 %5847, %v3799
    %v5849 = vpop.permute.xlu0 %5848
    %5851 = vset.pattern.permute.xlu0 0
    %5852 = vperm.xlu0 %5851, %v3800
    %v5853 = vpop.permute.xlu0 %5852
    %5855 = vset.pattern.permute.xlu0 0
    %5856 = vperm.xlu0 %5855, %v3801
    %v5857 = vpop.permute.xlu0 %5856
    %v5859 = vlaneseq
    %v5860 = vshrl.u32 %v5859, 7
    %v5861 = vsub.s32 0, %v5860
    %v5862 = vrot.slane %v5794, %v5861
    %v5863 = vmul.f32 %v5797, %v5862
    %v5864 = vmul.f32 %v5801, %v5862
    %v5865 = vmul.f32 %v5805, %v5862
    %v5866 = vmul.f32 %v5809, %v5862
    %v5867 = vmul.f32 %v5813, %v5862
    %v5868 = vmul.f32 %v5817, %v5862
    %v5869 = vmul.f32 %v5821, %v5862
    %v5870 = vmul.f32 %v5825, %v5862
    %v5871 = vmul.f32 %v5829, %v5862
    %v5872 = vmul.f32 %v5833, %v5862
    %v5873 = vmul.f32 %v5837, %v5862
    %v5874 = vmul.f32 %v5841, %v5862
    %v5875 = vmul.f32 %v5845, %v5862
    %v5876 = vmul.f32 %v5849, %v5862
    %v5877 = vmul.f32 %v5853, %v5862
    %v5878 = vmul.f32 %v5857, %v5862
    %5879 = vset.pattern.permute.xlu0 0
    %5880 = vperm.xlu0 %5879, %v4810
    %v5881 = vpop.permute.xlu0 %5880
    %5883 = vset.pattern.permute.xlu0 0
    %5884 = vperm.xlu0 %5883, %v4811
    %v5885 = vpop.permute.xlu0 %5884
    %5887 = vset.pattern.permute.xlu0 0
    %5888 = vperm.xlu0 %5887, %v4812
    %v5889 = vpop.permute.xlu0 %5888
    %5891 = vset.pattern.permute.xlu0 0
    %5892 = vperm.xlu0 %5891, %v4813
    %v5893 = vpop.permute.xlu0 %5892
    %5895 = vset.pattern.permute.xlu0 0
    %5896 = vperm.xlu0 %5895, %v4814
    %v5897 = vpop.permute.xlu0 %5896
    %5899 = vset.pattern.permute.xlu0 0
    %5900 = vperm.xlu0 %5899, %v4815
    %v5901 = vpop.permute.xlu0 %5900
    %5903 = vset.pattern.permute.xlu0 0
    %5904 = vperm.xlu0 %5903, %v4816
    %v5905 = vpop.permute.xlu0 %5904
    %5907 = vset.pattern.permute.xlu0 0
    %5908 = vperm.xlu0 %5907, %v4817
    %v5909 = vpop.permute.xlu0 %5908
    %5911 = vset.pattern.permute.xlu0 0
    %5912 = vperm.xlu0 %5911, %v4818
    %v5913 = vpop.permute.xlu0 %5912
    %5915 = vset.pattern.permute.xlu0 0
    %5916 = vperm.xlu0 %5915, %v4819
    %v5917 = vpop.permute.xlu0 %5916
    %5919 = vset.pattern.permute.xlu0 0
    %5920 = vperm.xlu0 %5919, %v4820
    %v5921 = vpop.permute.xlu0 %5920
    %5923 = vset.pattern.permute.xlu0 0
    %5924 = vperm.xlu0 %5923, %v4821
    %v5925 = vpop.permute.xlu0 %5924
    %5927 = vset.pattern.permute.xlu0 0
    %5928 = vperm.xlu0 %5927, %v4822
    %v5929 = vpop.permute.xlu0 %5928
    %5931 = vset.pattern.permute.xlu0 0
    %5932 = vperm.xlu0 %5931, %v4823
    %v5933 = vpop.permute.xlu0 %5932
    %5935 = vset.pattern.permute.xlu0 0
    %5936 = vperm.xlu0 %5935, %v4824
    %v5937 = vpop.permute.xlu0 %5936
    %5939 = vset.pattern.permute.xlu0 0
    %5940 = vperm.xlu0 %5939, %v4825
    %v5941 = vpop.permute.xlu0 %5940
    %v5943 = vlaneseq
    %v5944 = vshrl.u32 %v5943, 7
    %v5945 = vsub.s32 1, %v5944
    %v5946 = vrot.slane %v5794, %v5945
    %v5947 = vmul.f32 %v5881, %v5946
    %v5948 = vmul.f32 %v5885, %v5946
    %v5949 = vmul.f32 %v5889, %v5946
    %v5950 = vmul.f32 %v5893, %v5946
    %v5951 = vmul.f32 %v5897, %v5946
    %v5952 = vmul.f32 %v5901, %v5946
    %v5953 = vmul.f32 %v5905, %v5946
    %v5954 = vmul.f32 %v5909, %v5946
    %v5955 = vmul.f32 %v5913, %v5946
    %v5956 = vmul.f32 %v5917, %v5946
    %v5957 = vmul.f32 %v5921, %v5946
    %v5958 = vmul.f32 %v5925, %v5946
    %v5959 = vmul.f32 %v5929, %v5946
    %v5960 = vmul.f32 %v5933, %v5946
    %v5961 = vmul.f32 %v5937, %v5946
    %v5962 = vmul.f32 %v5941, %v5946
    %v5963 = vadd.f32 %v5863, %v5947
    %v5964 = vadd.f32 %v5864, %v5948
    %v5965 = vadd.f32 %v5865, %v5949
    %v5966 = vadd.f32 %v5866, %v5950
    %v5967 = vadd.f32 %v5867, %v5951
    %v5968 = vadd.f32 %v5868, %v5952
    %v5969 = vadd.f32 %v5869, %v5953
    %v5970 = vadd.f32 %v5870, %v5954
    %v5971 = vadd.f32 %v5871, %v5955
    %v5972 = vadd.f32 %v5872, %v5956
    %v5973 = vadd.f32 %v5873, %v5957
    %v5974 = vadd.f32 %v5874, %v5958
    %v5975 = vadd.f32 %v5875, %v5959
    %v5976 = vadd.f32 %v5876, %v5960
    %v5977 = vadd.f32 %v5877, %v5961
    %v5978 = vadd.f32 %v5878, %v5962
    %5980 = vset.pattern.permute.xlu0 0
    %5981 = vperm.xlu0 %5980, %v5778
    %v5982 = vpop.permute.xlu0 %5981
    %5985 = vset.pattern.permute.xlu0 0
    %5986 = vperm.xlu0 %5985, %v5779
    %v5987 = vpop.permute.xlu0 %5986
    %5990 = vset.pattern.permute.xlu0 0
    %5991 = vperm.xlu0 %5990, %v5780
    %v5992 = vpop.permute.xlu0 %5991
    %5995 = vset.pattern.permute.xlu0 0
    %5996 = vperm.xlu0 %5995, %v5781
    %v5997 = vpop.permute.xlu0 %5996
    %6000 = vset.pattern.permute.xlu0 0
    %6001 = vperm.xlu0 %6000, %v5782
    %v6002 = vpop.permute.xlu0 %6001
    %6005 = vset.pattern.permute.xlu0 0
    %6006 = vperm.xlu0 %6005, %v5783
    %v6007 = vpop.permute.xlu0 %6006
    %6010 = vset.pattern.permute.xlu0 0
    %6011 = vperm.xlu0 %6010, %v5784
    %v6012 = vpop.permute.xlu0 %6011
    %6015 = vset.pattern.permute.xlu0 0
    %6016 = vperm.xlu0 %6015, %v5785
    %v6017 = vpop.permute.xlu0 %6016
    %6020 = vset.pattern.permute.xlu0 0
    %6021 = vperm.xlu0 %6020, %v5786
    %v6022 = vpop.permute.xlu0 %6021
    %6025 = vset.pattern.permute.xlu0 0
    %6026 = vperm.xlu0 %6025, %v5787
    %v6027 = vpop.permute.xlu0 %6026
    %6030 = vset.pattern.permute.xlu0 0
    %6031 = vperm.xlu0 %6030, %v5788
    %v6032 = vpop.permute.xlu0 %6031
    %6035 = vset.pattern.permute.xlu0 0
    %6036 = vperm.xlu0 %6035, %v5789
    %v6037 = vpop.permute.xlu0 %6036
    %6040 = vset.pattern.permute.xlu0 0
    %6041 = vperm.xlu0 %6040, %v5790
    %v6042 = vpop.permute.xlu0 %6041
    %6045 = vset.pattern.permute.xlu0 0
    %6046 = vperm.xlu0 %6045, %v5791
    %v6047 = vpop.permute.xlu0 %6046
    %6050 = vset.pattern.permute.xlu0 0
    %6051 = vperm.xlu0 %6050, %v5792
    %v6052 = vpop.permute.xlu0 %6051
    %6055 = vset.pattern.permute.xlu0 0
    %6056 = vperm.xlu0 %6055, %v5793
    %v6057 = vpop.permute.xlu0 %6056
    %v6059 = vlaneseq
    %v6060 = vshrl.u32 %v6059, 7
    %v6061 = vsub.s32 2, %v6060
    %v6062 = vrot.slane %v5794, %v6061
    %v6063 = vmul.f32 %v5982, %v6062
    %v6064 = vmul.f32 %v5987, %v6062
    %v6065 = vmul.f32 %v5992, %v6062
    %v6066 = vmul.f32 %v5997, %v6062
    %v6067 = vmul.f32 %v6002, %v6062
    %v6068 = vmul.f32 %v6007, %v6062
    %v6069 = vmul.f32 %v6012, %v6062
    %v6070 = vmul.f32 %v6017, %v6062
    %v6071 = vmul.f32 %v6022, %v6062
    %v6072 = vmul.f32 %v6027, %v6062
    %v6073 = vmul.f32 %v6032, %v6062
    %v6074 = vmul.f32 %v6037, %v6062
    %v6075 = vmul.f32 %v6042, %v6062
    %v6076 = vmul.f32 %v6047, %v6062
    %v6077 = vmul.f32 %v6052, %v6062
    %v6078 = vmul.f32 %v6057, %v6062
    %v6079 = vadd.f32 %v5963, %v6063
    %v6080 = vadd.f32 %v5964, %v6064
    %v6081 = vadd.f32 %v5965, %v6065
    %v6082 = vadd.f32 %v5966, %v6066
    %v6083 = vadd.f32 %v5967, %v6067
    %v6084 = vadd.f32 %v5968, %v6068
    %v6085 = vadd.f32 %v5969, %v6069
    %v6086 = vadd.f32 %v5970, %v6070
    %v6087 = vadd.f32 %v5971, %v6071
    %v6088 = vadd.f32 %v5972, %v6072
    %v6089 = vadd.f32 %v5973, %v6073
    %v6090 = vadd.f32 %v5974, %v6074
    %v6091 = vadd.f32 %v5975, %v6075
    %v6092 = vadd.f32 %v5976, %v6076
    %v6093 = vadd.f32 %v5977, %v6077
    %v6094 = vadd.f32 %v5978, %v6078
    %v6095 = vld [vmem:[%s9] sm:$0x1]
    %v6097 = vlaneseq
    %v6098 = vshrl.u32 %v6097, 7
    %v6099 = vsub.s32 0, %v6098
    %v6100 = vrot.slane %v6095, %v6099
    %v6102 = vadd.f32 %v6079, %v6100
    %v6103 = vadd.f32 %v6080, %v6100
    %v6104 = vadd.f32 %v6081, %v6100
    %v6105 = vadd.f32 %v6082, %v6100
    %v6106 = vadd.f32 %v6083, %v6100
    %v6107 = vadd.f32 %v6084, %v6100
    %v6108 = vadd.f32 %v6085, %v6100
    %v6109 = vadd.f32 %v6086, %v6100
    %v6110 = vadd.f32 %v6087, %v6100
    %v6111 = vadd.f32 %v6088, %v6100
    %v6112 = vadd.f32 %v6089, %v6100
    %v6113 = vadd.f32 %v6090, %v6100
    %v6114 = vadd.f32 %v6091, %v6100
    %v6115 = vadd.f32 %v6092, %v6100
    %v6116 = vadd.f32 %v6093, %v6100
    %v6117 = vadd.f32 %v6094, %v6100
    %v6118 = vmul.f32 %v6102, 0.25
    %v6119 = vmul.f32 %v6103, 0.25
    %v6120 = vmul.f32 %v6104, 0.25
    %v6121 = vmul.f32 %v6105, 0.25
    %v6122 = vmul.f32 %v6106, 0.25
    %v6123 = vmul.f32 %v6107, 0.25
    %v6124 = vmul.f32 %v6108, 0.25
    %v6125 = vmul.f32 %v6110, 0.25
    %v6126 = vmul.f32 %v6111, 0.25
    %v6127 = vmul.f32 %v6112, 0.25
    %v6128 = vmul.f32 %v6113, 0.25
    %v6129 = vmul.f32 %v6114, 0.25
    %v6130 = vmul.f32 %v6115, 0.25
    %v6131 = vmul.f32 %v6116, 0.25
    %v6132 = vmul.f32 %v6102, 0.75
    %v6133 = vmul.f32 %v6103, 0.75
    %v6134 = vmul.f32 %v6104, 0.75
    %v6135 = vmul.f32 %v6105, 0.75
    %v6136 = vmul.f32 %v6106, 0.75
    %v6137 = vmul.f32 %v6107, 0.75
    %v6138 = vmul.f32 %v6108, 0.75
    %v6139 = vmul.f32 %v6109, 0.75
    %v6140 = vmul.f32 %v6110, 0.75
    %v6141 = vmul.f32 %v6111, 0.75
    %v6142 = vmul.f32 %v6112, 0.75
    %v6143 = vmul.f32 %v6113, 0.75
    %v6144 = vmul.f32 %v6114, 0.75
    %v6145 = vmul.f32 %v6115, 0.75
    %v6146 = vmul.f32 %v6116, 0.75
    %v6147 = vmul.f32 %v6117, 0.75
    %v6148 = vadd.f32 %v6118, %v6132
    %v6149 = vadd.f32 %v6118, %v6133
    %v6150 = vadd.f32 %v6119, %v6134
    %v6151 = vadd.f32 %v6120, %v6135
    %v6152 = vadd.f32 %v6121, %v6136
    %v6153 = vadd.f32 %v6122, %v6137
    %v6154 = vadd.f32 %v6123, %v6138
    %v6155 = vadd.f32 %v6124, %v6139
    %v6156 = vadd.f32 %v6125, %v6140
    %v6157 = vadd.f32 %v6125, %v6141
    %v6158 = vadd.f32 %v6126, %v6142
    %v6159 = vadd.f32 %v6127, %v6143
    %v6160 = vadd.f32 %v6128, %v6144
    %v6161 = vadd.f32 %v6129, %v6145
    %v6162 = vadd.f32 %v6130, %v6146
    %v6163 = vadd.f32 %v6131, %v6147
    %v6164 = vmul.f32 %v6109, 0.25
    %v6165 = vmul.f32 %v6117, 0.25
    %v6166 = vadd.f32 %v6132, %v6119
    %v6167 = vadd.f32 %v6133, %v6120
    %v6168 = vadd.f32 %v6134, %v6121
    %v6169 = vadd.f32 %v6135, %v6122
    %v6170 = vadd.f32 %v6136, %v6123
    %v6171 = vadd.f32 %v6137, %v6124
    %v6172 = vadd.f32 %v6138, %v6164
    %v6173 = vadd.f32 %v6139, %v6164
    %v6174 = vadd.f32 %v6140, %v6126
    %v6175 = vadd.f32 %v6141, %v6127
    %v6176 = vadd.f32 %v6142, %v6128
    %v6177 = vadd.f32 %v6143, %v6129
    %v6178 = vadd.f32 %v6144, %v6130
    %v6179 = vadd.f32 %v6145, %v6131
    %v6180 = vadd.f32 %v6146, %v6165
    %v6181 = vadd.f32 %v6147, %v6165
    %v6198 = vrot.slane %v6148, 7
    %v6199 = vrot.slane %v6149, 7
    %v6200 = vrot.slane %v6150, 7
    %v6201 = vrot.slane %v6151, 7
    %v6202 = vrot.slane %v6152, 7
    %v6203 = vrot.slane %v6153, 7
    %v6204 = vrot.slane %v6154, 7
    %v6205 = vrot.slane %v6155, 7
    %v6206 = vrot.slane %v6156, 7
    %v6207 = vrot.slane %v6157, 7
    %v6208 = vrot.slane %v6158, 7
    %v6209 = vrot.slane %v6159, 7
    %v6210 = vrot.slane %v6160, 7
    %v6211 = vrot.slane %v6161, 7
    %v6212 = vrot.slane %v6162, 7
    %v6213 = vrot.slane %v6163, 7
    %v6230 = vsel %vm2822, %v6148, %v6198
    %v6231 = vsel %vm2822, %v6149, %v6199
    %v6232 = vsel %vm2822, %v6150, %v6200
    %v6233 = vsel %vm2822, %v6151, %v6201
    %v6234 = vsel %vm2822, %v6152, %v6202
    %v6235 = vsel %vm2822, %v6153, %v6203
    %v6236 = vsel %vm2822, %v6154, %v6204
    %v6237 = vsel %vm2822, %v6155, %v6205
    %v6238 = vsel %vm2822, %v6156, %v6206
    %v6239 = vsel %vm2822, %v6157, %v6207
    %v6240 = vsel %vm2822, %v6158, %v6208
    %v6241 = vsel %vm2822, %v6159, %v6209
    %v6242 = vsel %vm2822, %v6160, %v6210
    %v6243 = vsel %vm2822, %v6161, %v6211
    %v6244 = vsel %vm2822, %v6162, %v6212
    %v6245 = vsel %vm2822, %v6163, %v6213
    %v6246 = vmul.f32 %v6230, 0.25
    %v6247 = vmul.f32 %v6231, 0.25
    %v6248 = vmul.f32 %v6232, 0.25
    %v6249 = vmul.f32 %v6233, 0.25
    %v6250 = vmul.f32 %v6234, 0.25
    %v6251 = vmul.f32 %v6235, 0.25
    %v6252 = vmul.f32 %v6236, 0.25
    %v6253 = vmul.f32 %v6237, 0.25
    %v6254 = vmul.f32 %v6238, 0.25
    %v6255 = vmul.f32 %v6239, 0.25
    %v6256 = vmul.f32 %v6240, 0.25
    %v6257 = vmul.f32 %v6241, 0.25
    %v6258 = vmul.f32 %v6242, 0.25
    %v6259 = vmul.f32 %v6243, 0.25
    %v6260 = vmul.f32 %v6244, 0.25
    %v6261 = vmul.f32 %v6245, 0.25
    %v6262 = vmul.f32 %v6148, 0.75
    %v6263 = vmul.f32 %v6149, 0.75
    %v6264 = vmul.f32 %v6150, 0.75
    %v6265 = vmul.f32 %v6151, 0.75
    %v6266 = vmul.f32 %v6152, 0.75
    %v6267 = vmul.f32 %v6153, 0.75
    %v6268 = vmul.f32 %v6154, 0.75
    %v6269 = vmul.f32 %v6155, 0.75
    %v6270 = vmul.f32 %v6156, 0.75
    %v6271 = vmul.f32 %v6157, 0.75
    %v6272 = vmul.f32 %v6158, 0.75
    %v6273 = vmul.f32 %v6159, 0.75
    %v6274 = vmul.f32 %v6160, 0.75
    %v6275 = vmul.f32 %v6161, 0.75
    %v6276 = vmul.f32 %v6162, 0.75
    %v6277 = vmul.f32 %v6163, 0.75
    %v6278 = vadd.f32 %v6246, %v6262
    %v6279 = vadd.f32 %v6247, %v6263
    %v6280 = vadd.f32 %v6248, %v6264
    %v6281 = vadd.f32 %v6249, %v6265
    %v6282 = vadd.f32 %v6250, %v6266
    %v6283 = vadd.f32 %v6251, %v6267
    %v6284 = vadd.f32 %v6252, %v6268
    %v6285 = vadd.f32 %v6253, %v6269
    %v6286 = vadd.f32 %v6254, %v6270
    %v6287 = vadd.f32 %v6255, %v6271
    %v6288 = vadd.f32 %v6256, %v6272
    %v6289 = vadd.f32 %v6257, %v6273
    %v6290 = vadd.f32 %v6258, %v6274
    %v6291 = vadd.f32 %v6259, %v6275
    %v6292 = vadd.f32 %v6260, %v6276
    %v6293 = vadd.f32 %v6261, %v6277
    %v6294 = vrot.slane %v6148, 1
    %v6295 = vrot.slane %v6149, 1
    %v6296 = vrot.slane %v6150, 1
    %v6297 = vrot.slane %v6151, 1
    %v6298 = vrot.slane %v6152, 1
    %v6299 = vrot.slane %v6153, 1
    %v6300 = vrot.slane %v6154, 1
    %v6301 = vrot.slane %v6155, 1
    %v6302 = vrot.slane %v6156, 1
    %v6303 = vrot.slane %v6157, 1
    %v6304 = vrot.slane %v6158, 1
    %v6305 = vrot.slane %v6159, 1
    %v6306 = vrot.slane %v6160, 1
    %v6307 = vrot.slane %v6161, 1
    %v6308 = vrot.slane %v6162, 1
    %v6309 = vrot.slane %v6163, 1
    %v6326 = vsel %vm2936, %v6294, %v6148
    %v6327 = vsel %vm2936, %v6295, %v6149
    %v6328 = vsel %vm2936, %v6296, %v6150
    %v6329 = vsel %vm2936, %v6297, %v6151
    %v6330 = vsel %vm2936, %v6298, %v6152
    %v6331 = vsel %vm2936, %v6299, %v6153
    %v6332 = vsel %vm2936, %v6300, %v6154
    %v6333 = vsel %vm2936, %v6301, %v6155
    %v6334 = vsel %vm2936, %v6302, %v6156
    %v6335 = vsel %vm2936, %v6303, %v6157
    %v6336 = vsel %vm2936, %v6304, %v6158
    %v6337 = vsel %vm2936, %v6305, %v6159
    %v6338 = vsel %vm2936, %v6306, %v6160
    %v6339 = vsel %vm2936, %v6307, %v6161
    %v6340 = vsel %vm2936, %v6308, %v6162
    %v6341 = vsel %vm2936, %v6309, %v6163
    %v6342 = vmul.f32 %v6326, 0.25
    %v6343 = vmul.f32 %v6327, 0.25
    %v6344 = vmul.f32 %v6328, 0.25
    %v6345 = vmul.f32 %v6329, 0.25
    %v6346 = vmul.f32 %v6330, 0.25
    %v6347 = vmul.f32 %v6331, 0.25
    %v6348 = vmul.f32 %v6332, 0.25
    %v6349 = vmul.f32 %v6333, 0.25
    %v6350 = vmul.f32 %v6334, 0.25
    %v6351 = vmul.f32 %v6335, 0.25
    %v6352 = vmul.f32 %v6336, 0.25
    %v6353 = vmul.f32 %v6337, 0.25
    %v6354 = vmul.f32 %v6338, 0.25
    %v6355 = vmul.f32 %v6339, 0.25
    %v6356 = vmul.f32 %v6340, 0.25
    %v6357 = vmul.f32 %v6341, 0.25
    %v6358 = vadd.f32 %v6262, %v6342
    %v6359 = vadd.f32 %v6263, %v6343
    %v6360 = vadd.f32 %v6264, %v6344
    %v6361 = vadd.f32 %v6265, %v6345
    %v6362 = vadd.f32 %v6266, %v6346
    %v6363 = vadd.f32 %v6267, %v6347
    %v6364 = vadd.f32 %v6268, %v6348
    %v6365 = vadd.f32 %v6269, %v6349
    %v6366 = vadd.f32 %v6270, %v6350
    %v6367 = vadd.f32 %v6271, %v6351
    %v6368 = vadd.f32 %v6272, %v6352
    %v6369 = vadd.f32 %v6273, %v6353
    %v6370 = vadd.f32 %v6274, %v6354
    %v6371 = vadd.f32 %v6275, %v6355
    %v6372 = vadd.f32 %v6276, %v6356
    %v6373 = vadd.f32 %v6277, %v6357
    %6390 = vrot.lane.b32.xlu0 %v6358, 64
    %v6391 = vpop.permute.xlu0 %6390
    %6392 = vrot.lane.b32.xlu0 %v6359, 64
    %v6393 = vpop.permute.xlu0 %6392
    %6394 = vrot.lane.b32.xlu0 %v6360, 64
    %v6395 = vpop.permute.xlu0 %6394
    %6396 = vrot.lane.b32.xlu0 %v6361, 64
    %v6397 = vpop.permute.xlu0 %6396
    %6398 = vrot.lane.b32.xlu0 %v6362, 64
    %v6399 = vpop.permute.xlu0 %6398
    %6400 = vrot.lane.b32.xlu0 %v6363, 64
    %v6401 = vpop.permute.xlu0 %6400
    %6402 = vrot.lane.b32.xlu0 %v6364, 64
    %v6403 = vpop.permute.xlu0 %6402
    %6404 = vrot.lane.b32.xlu0 %v6365, 64
    %v6405 = vpop.permute.xlu0 %6404
    %6406 = vrot.lane.b32.xlu0 %v6366, 64
    %v6407 = vpop.permute.xlu0 %6406
    %6408 = vrot.lane.b32.xlu0 %v6367, 64
    %v6409 = vpop.permute.xlu0 %6408
    %6410 = vrot.lane.b32.xlu0 %v6368, 64
    %v6411 = vpop.permute.xlu0 %6410
    %6412 = vrot.lane.b32.xlu0 %v6369, 64
    %v6413 = vpop.permute.xlu0 %6412
    %6414 = vrot.lane.b32.xlu0 %v6370, 64
    %v6415 = vpop.permute.xlu0 %6414
    %6416 = vrot.lane.b32.xlu0 %v6371, 64
    %v6417 = vpop.permute.xlu0 %6416
    %6418 = vrot.lane.b32.xlu0 %v6372, 64
    %v6419 = vpop.permute.xlu0 %6418
    %6420 = vrot.lane.b32.xlu0 %v6373, 64
    %v6421 = vpop.permute.xlu0 %6420
    %v6438 = vsel %vm2721, %v6278, %v6391
    %v6439 = vsel %vm2721, %v6279, %v6393
    %v6440 = vsel %vm2721, %v6280, %v6395
    %v6441 = vsel %vm2721, %v6281, %v6397
    %v6442 = vsel %vm2721, %v6282, %v6399
    %v6443 = vsel %vm2721, %v6283, %v6401
    %v6444 = vsel %vm2721, %v6284, %v6403
    %v6445 = vsel %vm2721, %v6285, %v6405
    %v6446 = vsel %vm2721, %v6286, %v6407
    %v6447 = vsel %vm2721, %v6287, %v6409
    %v6448 = vsel %vm2721, %v6288, %v6411
    %v6449 = vsel %vm2721, %v6289, %v6413
    %v6450 = vsel %vm2721, %v6290, %v6415
    %v6451 = vsel %vm2721, %v6291, %v6417
    %v6452 = vsel %vm2721, %v6292, %v6419
    %v6453 = vsel %vm2721, %v6293, %v6421
    %v6470 = vrot.slane %v6166, 7
    %v6471 = vrot.slane %v6167, 7
    %v6472 = vrot.slane %v6168, 7
    %v6473 = vrot.slane %v6169, 7
    %v6474 = vrot.slane %v6170, 7
    %v6475 = vrot.slane %v6171, 7
    %v6476 = vrot.slane %v6172, 7
    %v6477 = vrot.slane %v6173, 7
    %v6478 = vrot.slane %v6174, 7
    %v6479 = vrot.slane %v6175, 7
    %v6480 = vrot.slane %v6176, 7
    %v6481 = vrot.slane %v6177, 7
    %v6482 = vrot.slane %v6178, 7
    %v6483 = vrot.slane %v6179, 7
    %v6484 = vrot.slane %v6180, 7
    %v6485 = vrot.slane %v6181, 7
    %v6502 = vsel %vm2822, %v6166, %v6470
    %v6503 = vsel %vm2822, %v6167, %v6471
    %v6504 = vsel %vm2822, %v6168, %v6472
    %v6505 = vsel %vm2822, %v6169, %v6473
    %v6506 = vsel %vm2822, %v6170, %v6474
    %v6507 = vsel %vm2822, %v6171, %v6475
    %v6508 = vsel %vm2822, %v6172, %v6476
    %v6509 = vsel %vm2822, %v6173, %v6477
    %v6510 = vsel %vm2822, %v6174, %v6478
    %v6511 = vsel %vm2822, %v6175, %v6479
    %v6512 = vsel %vm2822, %v6176, %v6480
    %v6513 = vsel %vm2822, %v6177, %v6481
    %v6514 = vsel %vm2822, %v6178, %v6482
    %v6515 = vsel %vm2822, %v6179, %v6483
    %v6516 = vsel %vm2822, %v6180, %v6484
    %v6517 = vsel %vm2822, %v6181, %v6485
    %v6518 = vmul.f32 %v6502, 0.25
    %v6519 = vmul.f32 %v6503, 0.25
    %v6520 = vmul.f32 %v6504, 0.25
    %v6521 = vmul.f32 %v6505, 0.25
    %v6522 = vmul.f32 %v6506, 0.25
    %v6523 = vmul.f32 %v6507, 0.25
    %v6524 = vmul.f32 %v6508, 0.25
    %v6525 = vmul.f32 %v6509, 0.25
    %v6526 = vmul.f32 %v6510, 0.25
    %v6527 = vmul.f32 %v6511, 0.25
    %v6528 = vmul.f32 %v6512, 0.25
    %v6529 = vmul.f32 %v6513, 0.25
    %v6530 = vmul.f32 %v6514, 0.25
    %v6531 = vmul.f32 %v6515, 0.25
    %v6532 = vmul.f32 %v6516, 0.25
    %v6533 = vmul.f32 %v6517, 0.25
    %v6534 = vmul.f32 %v6166, 0.75
    %v6535 = vmul.f32 %v6167, 0.75
    %v6536 = vmul.f32 %v6168, 0.75
    %v6537 = vmul.f32 %v6169, 0.75
    %v6538 = vmul.f32 %v6170, 0.75
    %v6539 = vmul.f32 %v6171, 0.75
    %v6540 = vmul.f32 %v6172, 0.75
    %v6541 = vmul.f32 %v6173, 0.75
    %v6542 = vmul.f32 %v6174, 0.75
    %v6543 = vmul.f32 %v6175, 0.75
    %v6544 = vmul.f32 %v6176, 0.75
    %v6545 = vmul.f32 %v6177, 0.75
    %v6546 = vmul.f32 %v6178, 0.75
    %v6547 = vmul.f32 %v6179, 0.75
    %v6548 = vmul.f32 %v6180, 0.75
    %v6549 = vmul.f32 %v6181, 0.75
    %v6550 = vadd.f32 %v6518, %v6534
    %v6551 = vadd.f32 %v6519, %v6535
    %v6552 = vadd.f32 %v6520, %v6536
    %v6553 = vadd.f32 %v6521, %v6537
    %v6554 = vadd.f32 %v6522, %v6538
    %v6555 = vadd.f32 %v6523, %v6539
    %v6556 = vadd.f32 %v6524, %v6540
    %v6557 = vadd.f32 %v6525, %v6541
    %v6558 = vadd.f32 %v6526, %v6542
    %v6559 = vadd.f32 %v6527, %v6543
    %v6560 = vadd.f32 %v6528, %v6544
    %v6561 = vadd.f32 %v6529, %v6545
    %v6562 = vadd.f32 %v6530, %v6546
    %v6563 = vadd.f32 %v6531, %v6547
    %v6564 = vadd.f32 %v6532, %v6548
    %v6565 = vadd.f32 %v6533, %v6549
    %v6566 = vrot.slane %v6166, 1
    %v6567 = vrot.slane %v6167, 1
    %v6568 = vrot.slane %v6168, 1
    %v6569 = vrot.slane %v6169, 1
    %v6570 = vrot.slane %v6170, 1
    %v6571 = vrot.slane %v6171, 1
    %v6572 = vrot.slane %v6172, 1
    %v6573 = vrot.slane %v6173, 1
    %v6574 = vrot.slane %v6174, 1
    %v6575 = vrot.slane %v6175, 1
    %v6576 = vrot.slane %v6176, 1
    %v6577 = vrot.slane %v6177, 1
    %v6578 = vrot.slane %v6178, 1
    %v6579 = vrot.slane %v6179, 1
    %v6580 = vrot.slane %v6180, 1
    %v6581 = vrot.slane %v6181, 1
    %v6598 = vsel %vm2936, %v6566, %v6166
    %v6599 = vsel %vm2936, %v6567, %v6167
    %v6600 = vsel %vm2936, %v6568, %v6168
    %v6601 = vsel %vm2936, %v6569, %v6169
    %v6602 = vsel %vm2936, %v6570, %v6170
    %v6603 = vsel %vm2936, %v6571, %v6171
    %v6604 = vsel %vm2936, %v6572, %v6172
    %v6605 = vsel %vm2936, %v6573, %v6173
    %v6606 = vsel %vm2936, %v6574, %v6174
    %v6607 = vsel %vm2936, %v6575, %v6175
    %v6608 = vsel %vm2936, %v6576, %v6176
    %v6609 = vsel %vm2936, %v6577, %v6177
    %v6610 = vsel %vm2936, %v6578, %v6178
    %v6611 = vsel %vm2936, %v6579, %v6179
    %v6612 = vsel %vm2936, %v6580, %v6180
    %v6613 = vsel %vm2936, %v6581, %v6181
    %v6614 = vmul.f32 %v6598, 0.25
    %v6615 = vmul.f32 %v6599, 0.25
    %v6616 = vmul.f32 %v6600, 0.25
    %v6617 = vmul.f32 %v6601, 0.25
    %v6618 = vmul.f32 %v6602, 0.25
    %v6619 = vmul.f32 %v6603, 0.25
    %v6620 = vmul.f32 %v6604, 0.25
    %v6621 = vmul.f32 %v6605, 0.25
    %v6622 = vmul.f32 %v6606, 0.25
    %v6623 = vmul.f32 %v6607, 0.25
    %v6624 = vmul.f32 %v6608, 0.25
    %v6625 = vmul.f32 %v6609, 0.25
    %v6626 = vmul.f32 %v6610, 0.25
    %v6627 = vmul.f32 %v6611, 0.25
    %v6628 = vmul.f32 %v6612, 0.25
    %v6629 = vmul.f32 %v6613, 0.25
    %v6630 = vadd.f32 %v6534, %v6614
    %v6631 = vadd.f32 %v6535, %v6615
    %v6632 = vadd.f32 %v6536, %v6616
    %v6633 = vadd.f32 %v6537, %v6617
    %v6634 = vadd.f32 %v6538, %v6618
    %v6635 = vadd.f32 %v6539, %v6619
    %v6636 = vadd.f32 %v6540, %v6620
    %v6637 = vadd.f32 %v6541, %v6621
    %v6638 = vadd.f32 %v6542, %v6622
    %v6639 = vadd.f32 %v6543, %v6623
    %v6640 = vadd.f32 %v6544, %v6624
    %v6641 = vadd.f32 %v6545, %v6625
    %v6642 = vadd.f32 %v6546, %v6626
    %v6643 = vadd.f32 %v6547, %v6627
    %v6644 = vadd.f32 %v6548, %v6628
    %v6645 = vadd.f32 %v6549, %v6629
    %6662 = vrot.lane.b32.xlu0 %v6630, 64
    %v6663 = vpop.permute.xlu0 %6662
    %6664 = vrot.lane.b32.xlu0 %v6631, 64
    %v6665 = vpop.permute.xlu0 %6664
    %6666 = vrot.lane.b32.xlu0 %v6632, 64
    %v6667 = vpop.permute.xlu0 %6666
    %6668 = vrot.lane.b32.xlu0 %v6633, 64
    %v6669 = vpop.permute.xlu0 %6668
    %6670 = vrot.lane.b32.xlu0 %v6634, 64
    %v6671 = vpop.permute.xlu0 %6670
    %6672 = vrot.lane.b32.xlu0 %v6635, 64
    %v6673 = vpop.permute.xlu0 %6672
    %6674 = vrot.lane.b32.xlu0 %v6636, 64
    %v6675 = vpop.permute.xlu0 %6674
    %6676 = vrot.lane.b32.xlu0 %v6637, 64
    %v6677 = vpop.permute.xlu0 %6676
    %6678 = vrot.lane.b32.xlu0 %v6638, 64
    %v6679 = vpop.permute.xlu0 %6678
    %6680 = vrot.lane.b32.xlu0 %v6639, 64
    %v6681 = vpop.permute.xlu0 %6680
    %6682 = vrot.lane.b32.xlu0 %v6640, 64
    %v6683 = vpop.permute.xlu0 %6682
    %6684 = vrot.lane.b32.xlu0 %v6641, 64
    %v6685 = vpop.permute.xlu0 %6684
    %6686 = vrot.lane.b32.xlu0 %v6642, 64
    %v6687 = vpop.permute.xlu0 %6686
    %6688 = vrot.lane.b32.xlu0 %v6643, 64
    %v6689 = vpop.permute.xlu0 %6688
    %6690 = vrot.lane.b32.xlu0 %v6644, 64
    %v6691 = vpop.permute.xlu0 %6690
    %6692 = vrot.lane.b32.xlu0 %v6645, 64
    %v6693 = vpop.permute.xlu0 %6692
    %v6710 = vsel %vm2721, %v6550, %v6663
    %v6711 = vsel %vm2721, %v6551, %v6665
    %v6712 = vsel %vm2721, %v6552, %v6667
    %v6713 = vsel %vm2721, %v6553, %v6669
    %v6714 = vsel %vm2721, %v6554, %v6671
    %v6715 = vsel %vm2721, %v6555, %v6673
    %v6716 = vsel %vm2721, %v6556, %v6675
    %v6717 = vsel %vm2721, %v6557, %v6677
    %v6718 = vsel %vm2721, %v6558, %v6679
    %v6719 = vsel %vm2721, %v6559, %v6681
    %v6720 = vsel %vm2721, %v6560, %v6683
    %v6721 = vsel %vm2721, %v6561, %v6685
    %v6722 = vsel %vm2721, %v6562, %v6687
    %v6723 = vsel %vm2721, %v6563, %v6689
    %v6724 = vsel %vm2721, %v6564, %v6691
    %v6725 = vsel %vm2721, %v6565, %v6693
    %v6726 = vxor.u32 %v6438, 2147483648
    %v6727 = vxor.u32 %v6710, 2147483648
    %v6728 = vxor.u32 %v6439, 2147483648
    %v6729 = vxor.u32 %v6711, 2147483648
    %v6730 = vxor.u32 %v6440, 2147483648
    %v6731 = vxor.u32 %v6712, 2147483648
    %v6732 = vxor.u32 %v6441, 2147483648
    %v6733 = vxor.u32 %v6713, 2147483648
    %v6734 = vxor.u32 %v6442, 2147483648
    %v6735 = vxor.u32 %v6714, 2147483648
    %v6736 = vxor.u32 %v6443, 2147483648
    %v6737 = vxor.u32 %v6715, 2147483648
    %v6738 = vxor.u32 %v6444, 2147483648
    %v6739 = vxor.u32 %v6716, 2147483648
    %v6740 = vxor.u32 %v6445, 2147483648
    %v6741 = vxor.u32 %v6717, 2147483648
    %v6742 = vxor.u32 %v6446, 2147483648
    %v6743 = vxor.u32 %v6718, 2147483648
    %v6744 = vxor.u32 %v6447, 2147483648
    %v6745 = vxor.u32 %v6719, 2147483648
    %v6746 = vxor.u32 %v6448, 2147483648
    %v6747 = vxor.u32 %v6720, 2147483648
    %v6748 = vxor.u32 %v6449, 2147483648
    %v6749 = vxor.u32 %v6721, 2147483648
    %v6750 = vxor.u32 %v6450, 2147483648
    %v6751 = vxor.u32 %v6722, 2147483648
    %v6752 = vxor.u32 %v6451, 2147483648
    %v6753 = vxor.u32 %v6723, 2147483648
    %v6754 = vxor.u32 %v6452, 2147483648
    %v6755 = vxor.u32 %v6724, 2147483648
    %v6756 = vxor.u32 %v6453, 2147483648
    %v6757 = vxor.u32 %v6725, 2147483648
    %v6758 = vmul.f32 %v6726, 1.442695
    %v6759 = vpow.pop %v6758
    %v6760 = vmul.f32 %v6727, 1.442695
    %v6761 = vpow.pop %v6760
    %v6762 = vmul.f32 %v6728, 1.442695
    %v6763 = vpow.pop %v6762
    %v6764 = vmul.f32 %v6729, 1.442695
    %v6765 = vpow.pop %v6764
    %v6766 = vmul.f32 %v6730, 1.442695
    %v6767 = vpow.pop %v6766
    %v6768 = vmul.f32 %v6731, 1.442695
    %v6769 = vpow.pop %v6768
    %v6770 = vmul.f32 %v6732, 1.442695
    %v6771 = vpow.pop %v6770
    %v6772 = vmul.f32 %v6733, 1.442695
    %v6773 = vpow.pop %v6772
    %v6774 = vmul.f32 %v6734, 1.442695
    %v6775 = vpow.pop %v6774
    %v6776 = vmul.f32 %v6735, 1.442695
    %v6777 = vpow.pop %v6776
    %v6778 = vmul.f32 %v6736, 1.442695
    %v6779 = vpow.pop %v6778
    %v6780 = vmul.f32 %v6737, 1.442695
    %v6781 = vpow.pop %v6780
    %v6782 = vmul.f32 %v6738, 1.442695
    %v6783 = vpow.pop %v6782
    %v6784 = vmul.f32 %v6739, 1.442695
    %v6785 = vpow.pop %v6784
    %v6786 = vmul.f32 %v6740, 1.442695
    %v6787 = vpow.pop %v6786
    %v6788 = vmul.f32 %v6741, 1.442695
    %v6789 = vpow.pop %v6788
    %v6790 = vmul.f32 %v6742, 1.442695
    %v6791 = vpow.pop %v6790
    %v6792 = vmul.f32 %v6743, 1.442695
    %v6793 = vpow.pop %v6792
    %v6794 = vmul.f32 %v6744, 1.442695
    %v6795 = vpow.pop %v6794
    %v6796 = vmul.f32 %v6745, 1.442695
    %v6797 = vpow.pop %v6796
    %v6798 = vmul.f32 %v6746, 1.442695
    %v6799 = vpow.pop %v6798
    %v6800 = vmul.f32 %v6747, 1.442695
    %v6801 = vpow.pop %v6800
    %v6802 = vmul.f32 %v6748, 1.442695
    %v6803 = vpow.pop %v6802
    %v6804 = vmul.f32 %v6749, 1.442695
    %v6805 = vpow.pop %v6804
    %v6806 = vmul.f32 %v6750, 1.442695
    %v6807 = vpow.pop %v6806
    %v6808 = vmul.f32 %v6751, 1.442695
    %v6809 = vpow.pop %v6808
    %v6810 = vmul.f32 %v6752, 1.442695
    %v6811 = vpow.pop %v6810
    %v6812 = vmul.f32 %v6753, 1.442695
    %v6813 = vpow.pop %v6812
    %v6814 = vmul.f32 %v6754, 1.442695
    %v6815 = vpow.pop %v6814
    %v6816 = vmul.f32 %v6755, 1.442695
    %v6817 = vpow.pop %v6816
    %v6818 = vmul.f32 %v6756, 1.442695
    %v6819 = vpow.pop %v6818
    %v6820 = vmul.f32 %v6757, 1.442695
    %v6821 = vpow.pop %v6820
    %v6822 = vadd.f32 %v6759, 1.0
    %v6823 = vadd.f32 %v6761, 1.0
    %v6824 = vadd.f32 %v6763, 1.0
    %v6825 = vadd.f32 %v6765, 1.0
    %v6826 = vadd.f32 %v6767, 1.0
    %v6827 = vadd.f32 %v6769, 1.0
    %v6828 = vadd.f32 %v6771, 1.0
    %v6829 = vadd.f32 %v6773, 1.0
    %v6830 = vadd.f32 %v6775, 1.0
    %v6831 = vadd.f32 %v6777, 1.0
    %v6832 = vadd.f32 %v6779, 1.0
    %v6833 = vadd.f32 %v6781, 1.0
    %v6834 = vadd.f32 %v6783, 1.0
    %v6835 = vadd.f32 %v6785, 1.0
    %v6836 = vadd.f32 %v6787, 1.0
    %v6837 = vadd.f32 %v6789, 1.0
    %v6838 = vadd.f32 %v6791, 1.0
    %v6839 = vadd.f32 %v6793, 1.0
    %v6840 = vadd.f32 %v6795, 1.0
    %v6841 = vadd.f32 %v6797, 1.0
    %v6842 = vadd.f32 %v6799, 1.0
    %v6843 = vadd.f32 %v6801, 1.0
    %v6844 = vadd.f32 %v6803, 1.0
    %v6845 = vadd.f32 %v6805, 1.0
    %v6846 = vadd.f32 %v6807, 1.0
    %v6847 = vadd.f32 %v6809, 1.0
    %v6848 = vadd.f32 %v6811, 1.0
    %v6849 = vadd.f32 %v6813, 1.0
    %v6850 = vadd.f32 %v6815, 1.0
    %v6851 = vadd.f32 %v6817, 1.0
    %v6852 = vadd.f32 %v6819, 1.0
    %v6853 = vadd.f32 %v6821, 1.0
    %v6854 = vrcp.pop %v6822
    %v6855 = vmul.f32 1.0, %v6854
    %v6856 = vrcp.pop %v6823
    %v6857 = vmul.f32 1.0, %v6856
    %v6858 = vrcp.pop %v6824
    %v6859 = vmul.f32 1.0, %v6858
    %v6860 = vrcp.pop %v6825
    %v6861 = vmul.f32 1.0, %v6860
    %v6862 = vrcp.pop %v6826
    %v6863 = vmul.f32 1.0, %v6862
    %v6864 = vrcp.pop %v6827
    %v6865 = vmul.f32 1.0, %v6864
    %v6866 = vrcp.pop %v6828
    %v6867 = vmul.f32 1.0, %v6866
    %v6868 = vrcp.pop %v6829
    %v6869 = vmul.f32 1.0, %v6868
    %v6870 = vrcp.pop %v6830
    %v6871 = vmul.f32 1.0, %v6870
    %v6872 = vrcp.pop %v6831
    %v6873 = vmul.f32 1.0, %v6872
    %v6874 = vrcp.pop %v6832
    %v6875 = vmul.f32 1.0, %v6874
    %v6876 = vrcp.pop %v6833
    %v6877 = vmul.f32 1.0, %v6876
    %v6878 = vrcp.pop %v6834
    %v6879 = vmul.f32 1.0, %v6878
    %v6880 = vrcp.pop %v6835
    %v6881 = vmul.f32 1.0, %v6880
    %v6882 = vrcp.pop %v6836
    %v6883 = vmul.f32 1.0, %v6882
    %v6884 = vrcp.pop %v6837
    %v6885 = vmul.f32 1.0, %v6884
    %v6886 = vrcp.pop %v6838
    %v6887 = vmul.f32 1.0, %v6886
    %v6888 = vrcp.pop %v6839
    %v6889 = vmul.f32 1.0, %v6888
    %v6890 = vrcp.pop %v6840
    %v6891 = vmul.f32 1.0, %v6890
    %v6892 = vrcp.pop %v6841
    %v6893 = vmul.f32 1.0, %v6892
    %v6894 = vrcp.pop %v6842
    %v6895 = vmul.f32 1.0, %v6894
    %v6896 = vrcp.pop %v6843
    %v6897 = vmul.f32 1.0, %v6896
    %v6898 = vrcp.pop %v6844
    %v6899 = vmul.f32 1.0, %v6898
    %v6900 = vrcp.pop %v6845
    %v6901 = vmul.f32 1.0, %v6900
    %v6902 = vrcp.pop %v6846
    %v6903 = vmul.f32 1.0, %v6902
    %v6904 = vrcp.pop %v6847
    %v6905 = vmul.f32 1.0, %v6904
    %v6906 = vrcp.pop %v6848
    %v6907 = vmul.f32 1.0, %v6906
    %v6908 = vrcp.pop %v6849
    %v6909 = vmul.f32 1.0, %v6908
    %v6910 = vrcp.pop %v6850
    %v6911 = vmul.f32 1.0, %v6910
    %v6912 = vrcp.pop %v6851
    %v6913 = vmul.f32 1.0, %v6912
    %v6914 = vrcp.pop %v6852
    %v6915 = vmul.f32 1.0, %v6914
    %v6916 = vrcp.pop %v6853
    %v6917 = vmul.f32 1.0, %v6916
    %v6918 = vmul.f32 %v62, %v6855
    %v6919 = vmul.f32 %v63, %v6857
    %v6920 = vmul.f32 %v64, %v6859
    %v6921 = vmul.f32 %v65, %v6861
    %v6922 = vmul.f32 %v66, %v6863
    %v6923 = vmul.f32 %v67, %v6865
    %v6924 = vmul.f32 %v68, %v6867
    %v6925 = vmul.f32 %v69, %v6869
    %v6926 = vmul.f32 %v70, %v6871
    %v6927 = vmul.f32 %v71, %v6873
    %v6928 = vmul.f32 %v72, %v6875
    %v6929 = vmul.f32 %v73, %v6877
    %v6930 = vmul.f32 %v74, %v6879
    %v6931 = vmul.f32 %v75, %v6881
    %v6932 = vmul.f32 %v76, %v6883
    %v6933 = vmul.f32 %v77, %v6885
    %v6934 = vmul.f32 %v78, %v6887
    %v6935 = vmul.f32 %v79, %v6889
    %v6936 = vmul.f32 %v80, %v6891
    %v6937 = vmul.f32 %v81, %v6893
    %v6938 = vmul.f32 %v82, %v6895
    %v6939 = vmul.f32 %v83, %v6897
    %v6940 = vmul.f32 %v84, %v6899
    %v6941 = vmul.f32 %v85, %v6901
    %v6942 = vmul.f32 %v86, %v6903
    %v6943 = vmul.f32 %v87, %v6905
    %v6944 = vmul.f32 %v88, %v6907
    %v6945 = vmul.f32 %v89, %v6909
    %v6946 = vmul.f32 %v90, %v6911
    %v6947 = vmul.f32 %v91, %v6913
    %v6948 = vmul.f32 %v92, %v6915
    %v6949 = vmul.f32 %v93, %v6917
    %6950 = vst [vmem:[%s10] sm:$0xff] %v6918
    %6951 = vst [vmem:[%s10 + $0x8] sm:$0xff] %v6919
    %6952 = vst [vmem:[%s10 + $0x10] sm:$0xff] %v6920
    %6953 = vst [vmem:[%s10 + $0x18] sm:$0xff] %v6921
    %6954 = vst [vmem:[%s10 + $0x20] sm:$0xff] %v6922
    %6955 = vst [vmem:[%s10 + $0x28] sm:$0xff] %v6923
    %6956 = vst [vmem:[%s10 + $0x30] sm:$0xff] %v6924
    %6957 = vst [vmem:[%s10 + $0x38] sm:$0xff] %v6925
    %6958 = vst [vmem:[%s10 + $0x40] sm:$0xff] %v6926
    %6959 = vst [vmem:[%s10 + $0x48] sm:$0xff] %v6927
    %6960 = vst [vmem:[%s10 + $0x50] sm:$0xff] %v6928
    %6961 = vst [vmem:[%s10 + $0x58] sm:$0xff] %v6929
    %6962 = vst [vmem:[%s10 + $0x60] sm:$0xff] %v6930
    %6963 = vst [vmem:[%s10 + $0x68] sm:$0xff] %v6931
    %6964 = vst [vmem:[%s10 + $0x70] sm:$0xff] %v6932
    %6965 = vst [vmem:[%s10 + $0x78] sm:$0xff] %v6933
    %6966 = vst [vmem:[%s10 + $0x80] sm:$0xff] %v6934
    %6967 = vst [vmem:[%s10 + $0x88] sm:$0xff] %v6935
    %6968 = vst [vmem:[%s10 + $0x90] sm:$0xff] %v6936
    %6969 = vst [vmem:[%s10 + $0x98] sm:$0xff] %v6937
    %6970 = vst [vmem:[%s10 + $0xa0] sm:$0xff] %v6938
    %6971 = vst [vmem:[%s10 + $0xa8] sm:$0xff] %v6939
    %6972 = vst [vmem:[%s10 + $0xb0] sm:$0xff] %v6940
    %6973 = vst [vmem:[%s10 + $0xb8] sm:$0xff] %v6941
    %6974 = vst [vmem:[%s10 + $0xc0] sm:$0xff] %v6942
    %6975 = vst [vmem:[%s10 + $0xc8] sm:$0xff] %v6943
    %6976 = vst [vmem:[%s10 + $0xd0] sm:$0xff] %v6944
    %6977 = vst [vmem:[%s10 + $0xd8] sm:$0xff] %v6945
    %6978 = vst [vmem:[%s10 + $0xe0] sm:$0xff] %v6946
    %6979 = vst [vmem:[%s10 + $0xe8] sm:$0xff] %v6947
    %6980 = vst [vmem:[%s10 + $0xf0] sm:$0xff] %v6948
    %6981 = vst [vmem:[%s10 + $0xf8] sm:$0xff] %v6949
    // Predicated region
    $region50: #{lmsa_forward.1} parent=1 // pred_check
      _
    $region51: #{lmsa_forward.1} parent=1 // pred_check_branch
      %6983 = sbr.rel (0) target = $region53
    $region52: #{lmsa_forward.1} parent=1 // pred_region
      _
    $region53: #{lmsa_forward.1} parent=1 // pred_fallthru
      _
    // Predicated region
    $region54: #{lmsa_forward.1} parent=1 // pred_check
      _
    $region55: #{lmsa_forward.1} parent=1 // pred_check_branch
      %6985 = sbr.rel (0) target = $region57
    $region56: #{lmsa_forward.1} parent=1 // pred_region
      _
    $region57: #{lmsa_forward.1} parent=1 // pred_fallthru
      _
    %6986 = vsyncpa [#allocation5], 1
    %6987 = vsyncpa [#allocation7], 1

</llo_original>
